<compile_context>
chip_gen: v7x
topology: tpu7x:2x2x1
jax: 0.10.0
libtpu: 0.0.40
codegen_flags: <defaults>
</compile_context>

<pallas_src>
import numpy as np
import jax
import jax.numpy as jnp
from jax import lax
from jax.experimental import pallas as pl
from jax.experimental.pallas import tpu as pltpu

EPS = 1e-5


# ----------------------------- constants (host-side numpy) -----------------------------

def _bilinear_matrix(n_in: int, n_out: int) -> np.ndarray:
    """1-D bilinear interpolation matrix (n_out, n_in), align_corners=True."""
    r = np.arange(n_out, dtype=np.float64)
    src = np.zeros_like(r) if n_out == 1 else r * (n_in - 1) / (n_out - 1)
    i0 = np.clip(np.floor(src).astype(np.int64), 0, n_in - 1)
    i1 = np.minimum(i0 + 1, n_in - 1)
    frac = src - i0
    M = np.zeros((n_out, n_in), dtype=np.float64)
    M[np.arange(n_out), i0] += 1.0 - frac
    M[np.arange(n_out), i1] += frac
    return M.astype(np.float32)


def _upconv_constants(N: int, H: int, W: int):
    """UT     : (HW, S2)   transposed bilinear-x2 interpolation matrix
       m_tiled: (9, N*S2)  per-tap 'same'-padding validity masks, pre-tiled across samples."""
    H2, W2 = 2 * H, 2 * W
    Uh = _bilinear_matrix(H, H2)                     # (H2, H)
    Uw = _bilinear_matrix(W, W2)                     # (W2, W)
    U = np.kron(Uh, Uw)                              # (S2, HW)
    # TODO(synk): for large H,W (v7x's 64 MiB VMEM) keep the upsample separable (Uh then Uw)
    # and tile S2 over a grid instead of materializing the dense kron matrix.
    S2 = H2 * W2
    M = np.zeros((9, S2), np.float32)
    for i in range(3):
        for j in range(3):
            dy, dx = i - 1, j - 1
            m2 = np.zeros((H2, W2), np.float32)
            m2[max(0, -dy):H2 - max(0, dy), max(0, -dx):W2 - max(0, dx)] = 1.0
            M[i * 3 + j] = m2.reshape(-1)
    m_tiled = np.tile(M, (1, N))                     # (9, N*S2)
    return np.ascontiguousarray(U.T), m_tiled


# ----------------------------- the Pallas kernel -----------------------------

def _make_upconv_kernel(N, Cin_pad, Cout, H2, W2):
    S2 = H2 * W2
    cnt = float(N * S2)
    # flattened-lane shift of conv tap (dy, dx): s -> s + dy*W2 + dx
    tap_shift = [(i - 1) * W2 + (j - 1) for i in range(3) for j in range(3)]
    dn = (((0,), (0,)), ((), ()))          # contract dim 0 of both operands
    f32 = jnp.float32

    def kernel(x_ref, ut_ref, m_ref, w_ref, bc_ref,
               g1_ref, b1_ref, g2_ref, b2_ref,
               out_ref, xcol_ref):
        # x_ref   : (N*Cin_pad, HW)     channel-padded input, spatial flattened
        # ut_ref  : (HW, S2)            transposed bilinear upsample matrix
        # m_ref   : (9, N*S2)           per-tap validity masks (tiled across samples)
        # w_ref   : (9*Cin_pad, Cout)   conv weights, row = tap*Cin_pad + cin (pad rows = 0)
        # bc_ref  : (Cout, 1)           conv bias;  g*/b*: BN gamma/beta columns (BN1 padded)
        # out_ref : (N, Cout, S2)       lane-dense output
        # xcol_ref: (9*Cin_pad, N*S2)   scratch: sublane-aligned im2col block

        # ---- 1) bilinear x2 upsample: ONE GEMM over all samples & channels ----
        xu = jnp.dot(x_ref[...], ut_ref[...], preferred_element_type=f32)   # (N*Cin_pad, S2)

        # rearrange (N*Cin_pad, S2) -> (Cin_pad, N*S2): samples side by side on the lane axis
        xcat = jnp.concatenate(
            [xu[n * Cin_pad:(n + 1) * Cin_pad, :] for n in range(N)], axis=1)

        # ---- 2) BN1 (training-mode batch stats, two-pass variance), applied once ----
        mean1 = jnp.sum(xcat, axis=1, keepdims=True) / cnt                  # (Cin_pad, 1)
        d1 = xcat - mean1
        var1 = jnp.sum(d1 * d1, axis=1, keepdims=True) / cnt                # biased variance
        scale1 = g1_ref[...] * lax.rsqrt(var1 + EPS)
        xbn = d1 * scale1 + b1_ref[...]                                     # (Cin_pad, N*S2)
        # padded channels: x==0, gamma/beta pads==0  ->  xbn pad rows are exactly 0

        # ---- 3) im2col: 8 lane-rolls of the slab into a sublane-aligned VMEM scratch ----
        # Roll wraparound across sample boundaries only hits lanes where the 'same'-padding
        # mask is 0, so masking restores correctness for every tap.
        for t in range(9):
            sh = tap_shift[t]
            if sh == 0:
                blk = xbn                                                   # center tap: mask == 1
            else:
                blk = jnp.roll(xbn, -sh, axis=1) * m_ref[t:t + 1, :]
            xcol_ref[t * Cin_pad:(t + 1) * Cin_pad, :] = blk

        # ---- 4) conv: ONE K = 9*Cin_pad GEMM over all samples ----
        y = lax.dot_general(w_ref[...], xcol_ref[...], dn,
                            preferred_element_type=f32) + bc_ref[...]       # (Cout, N*S2)

        # ---- 5) BN2 (training-mode, two-pass variance) + ReLU ----
        mean2 = jnp.sum(y, axis=1, keepdims=True) / cnt                     # (Cout, 1)
        d2 = y - mean2
        var2 = jnp.sum(d2 * d2, axis=1, keepdims=True) / cnt
        scale2 = g2_ref[...] * lax.rsqrt(var2 + EPS)
        ybn = jnp.maximum(d2 * scale2 + b2_ref[...], 0.0)                   # (Cout, N*S2)

        # ---- 6) single lane-dense writeback, split per sample with static slices ----
        for n in range(N):
            out_ref[n] = ybn[:, n * S2:(n + 1) * S2]

    return kernel


# ----------------------------- wrapper -----------------------------

def upconv_forward(x_nchw, Wconv, bc, g1, b1, g2, b2):
    N, Cin, H, W = x_nchw.shape
    Cout = Wconv.shape[0]
    H2, W2 = 2 * H, 2 * W
    S2 = H2 * W2
    Cin_pad = int(-(-Cin // 8) * 8)                  # sublane-align every im2col tap block

    UT, m_tiled = _upconv_constants(N, H, W)

    # zero-pad channels so each tap block starts on an 8-sublane boundary
    xp = jnp.zeros((N, Cin_pad, H * W), jnp.float32)
    xp = xp.at[:, :Cin, :].set(x_nchw.reshape(N, Cin, H * W).astype(jnp.float32))
    x_flat = xp.reshape(N * Cin_pad, H * W)

    # conv weights in im2col order: row = tap(i*3+j)*Cin_pad + cin, col = cout; pad rows zero
    wtap = jnp.transpose(Wconv.astype(jnp.float32), (2, 3, 1, 0))           # (3,3,Cin,Cout)
    wcol = jnp.zeros((3, 3, Cin_pad, Cout), jnp.float32).at[:, :, :Cin, :].set(wtap)
    wcol = wcol.reshape(9 * Cin_pad, Cout)

    g1p = jnp.zeros((Cin_pad, 1), jnp.float32).at[:Cin, 0].set(g1)
    b1p = jnp.zeros((Cin_pad, 1), jnp.float32).at[:Cin, 0].set(b1)

    operands = (x_flat, jnp.asarray(UT), jnp.asarray(m_tiled), wcol,
                bc.reshape(Cout, 1).astype(jnp.float32), g1p, b1p,
                g2.reshape(Cout, 1).astype(jnp.float32),
                b2.reshape(Cout, 1).astype(jnp.float32))

    # VMEM budget computed from the actual resident buffers (not hardcoded)
    in_bytes = sum(int(np.prod(o.shape)) * 4 for o in operands)
    out_bytes = N * Cout * S2 * 4
    scratch_bytes = 9 * Cin_pad * N * S2 * 4
    vlim = int(min(max(2 * (in_bytes + out_bytes + scratch_bytes) + (2 << 20), 16 << 20),
                   64 << 20))

    kernel = _make_upconv_kernel(N, Cin_pad, Cout, H2, W2)
    # TODO(synk): at larger N/H/W, add a grid over N / S2 row-tiles ("parallel") with per-core
    # partial BN sums merged in a finalize pass, so v7x's second TensorCore is used.
    out_cf = pl.pallas_call(
        kernel,
        out_shape=jax.ShapeDtypeStruct((N, Cout, S2), jnp.float32),
        scratch_shapes=[pltpu.VMEM((9 * Cin_pad, N * S2), jnp.float32)],
        compiler_params=pltpu.CompilerParams(vmem_limit_bytes=vlim),
    )(*operands)
    return out_cf.reshape(N, Cout, H2, W2)           # already NCHW; reshape is free


# ----------------------------- pure-JAX reference -----------------------------

def reference(x, g1, b1, Wconv, bc, g2, b2):
    N, Cin, H, W = x.shape
    Uh = jnp.asarray(_bilinear_matrix(H, 2 * H))
    Uw = jnp.asarray(_bilinear_matrix(W, 2 * W))
    xu = jnp.einsum("rh,nchw->ncrw", Uh, x)
    xu = jnp.einsum("ncrw,vw->ncrv", xu, Uw)
    m1 = jnp.mean(xu, axis=(0, 2, 3), keepdims=True)
    v1 = jnp.var(xu, axis=(0, 2, 3), keepdims=True)
    xn = (xu - m1) * lax.rsqrt(v1 + EPS) * g1.reshape(1, -1, 1, 1) + b1.reshape(1, -1, 1, 1)
    y = lax.conv_general_dilated(xn, Wconv, (1, 1), "SAME",
                                 dimension_numbers=("NCHW", "OIHW", "NCHW"))
    y = y + bc.reshape(1, -1, 1, 1)
    m2 = jnp.mean(y, axis=(0, 2, 3), keepdims=True)
    v2 = jnp.var(y, axis=(0, 2, 3), keepdims=True)
    y = (y - m2) * lax.rsqrt(v2 + EPS) * g2.reshape(1, -1, 1, 1) + b2.reshape(1, -1, 1, 1)
    return jnp.maximum(y, 0.0)


# ----------------------------- main -----------------------------

if __name__ == "__main__":
    N, Cin, Cout, H, W = 2, 4, 8, 16, 16

    key = jax.random.PRNGKey(0)
    ks = jax.random.split(key, 7)
    Wconv = jax.random.normal(ks[0], (Cout, Cin, 3, 3), jnp.float32) / np.sqrt(Cin * 9)
    bc = 0.1 * jax.random.normal(ks[1], (Cout,), jnp.float32)
    g1 = 1.0 + 0.1 * jax.random.normal(ks[2], (Cin,), jnp.float32)
    b1 = 0.1 * jax.random.normal(ks[3], (Cin,), jnp.float32)
    g2 = 1.0 + 0.1 * jax.random.normal(ks[4], (Cout,), jnp.float32)
    b2 = 0.1 * jax.random.normal(ks[5], (Cout,), jnp.float32)
    x = jax.random.normal(ks[6], (N, Cin, H, W), jnp.float32)

    out = jax.block_until_ready(upconv_forward(x, Wconv, bc, g1, b1, g2, b2))
    ref = jax.block_until_ready(reference(x, g1, b1, Wconv, bc, g2, b2))

    assert out.shape == (N, Cout, 2 * H, 2 * W), out.shape
    err = float(np.max(np.abs(np.asarray(out) - np.asarray(ref))))
    assert np.allclose(np.asarray(out), np.asarray(ref), atol=2e-3, rtol=2e-3), (
        "max abs diff = %g" % err)

    print("KERNEL_OK")
</pallas_src>

<mosaic_0001>
module attributes {stable_mosaic.version = 11 : i64} {
  func.func @kernel(%arg0: memref<16x256xf32, #tpu.memory_space<vmem>>, %arg1: memref<256x1024xf32, #tpu.memory_space<vmem>>, %arg2: memref<9x2048xf32, #tpu.memory_space<vmem>>, %arg3: memref<72x8xf32, #tpu.memory_space<vmem>>, %arg4: memref<8x1xf32, #tpu.memory_space<vmem>>, %arg5: memref<8x1xf32, #tpu.memory_space<vmem>>, %arg6: memref<8x1xf32, #tpu.memory_space<vmem>>, %arg7: memref<8x1xf32, #tpu.memory_space<vmem>>, %arg8: memref<8x1xf32, #tpu.memory_space<vmem>>, %arg9: memref<2x8x1024xf32, #tpu.memory_space<vmem>>, %arg10: memref<72x2048xf32, #tpu.memory_space<vmem>>) attributes {dimension_semantics = [], scalar_prefetch = 0 : i64, scratch_operands = 1 : i64, tpu.core_type = #tpu.core_type<tc>} {
    %c0 = arith.constant 0 : index
    %c0_0 = arith.constant 0 : index
    %0 = vector.load %arg0[%c0, %c0_0] : memref<16x256xf32, #tpu.memory_space<vmem>>, vector<16x256xf32>
    %c0_1 = arith.constant 0 : index
    %c0_2 = arith.constant 0 : index
    %1 = vector.load %arg1[%c0_1, %c0_2] : memref<256x1024xf32, #tpu.memory_space<vmem>>, vector<256x1024xf32>
    %cst = arith.constant dense<0.000000e+00> : vector<16x1024xf32>
    %2 = tpu.matmul %0, %1, %cst {dimension_numbers = #tpu.dot_dimension_numbers<[1], [0], [0], [1], [0, 0, 1, 1], [], []>} : vector<16x256xf32>, vector<256x1024xf32>, vector<16x1024xf32> -> vector<16x1024xf32>
    %3 = vector.extract_strided_slice %2 {offsets = [0, 0], sizes = [8, 1024], strides = [1, 1]} : vector<16x1024xf32> to vector<8x1024xf32>
    %4 = vector.extract_strided_slice %2 {offsets = [8, 0], sizes = [8, 1024], strides = [1, 1]} : vector<16x1024xf32> to vector<8x1024xf32>
    %5 = tpu.concatenate %3, %4 in 1 : vector<8x1024xf32>, vector<8x1024xf32> -> vector<8x2048xf32>
    %cst_3 = arith.constant dense<0.000000e+00> : vector<8xf32>
    %6 = vector.multi_reduction <add>, %5, %cst_3 [1] : vector<8x2048xf32> to vector<8xf32>
    %7 = vector.shape_cast %6 : vector<8xf32> to vector<8x1xf32>
    %cst_4 = arith.constant 2.048000e+03 : f32
    %8 = vector.broadcast %cst_4 : f32 to vector<8x1xf32>
    %9 = arith.divf %7, %8 : vector<8x1xf32>
    %10 = vector.broadcast %9 : vector<8x1xf32> to vector<8x2048xf32>
    %11 = arith.subf %5, %10 : vector<8x2048xf32>
    %12 = arith.mulf %11, %11 : vector<8x2048xf32>
    %cst_5 = arith.constant dense<0.000000e+00> : vector<8xf32>
    %13 = vector.multi_reduction <add>, %12, %cst_5 [1] : vector<8x2048xf32> to vector<8xf32>
    %14 = vector.shape_cast %13 : vector<8xf32> to vector<8x1xf32>
    %cst_6 = arith.constant 2.048000e+03 : f32
    %15 = vector.broadcast %cst_6 : f32 to vector<8x1xf32>
    %16 = arith.divf %14, %15 : vector<8x1xf32>
    %c0_7 = arith.constant 0 : index
    %c0_8 = arith.constant 0 : index
    %17 = vector.load %arg5[%c0_7, %c0_8] : memref<8x1xf32, #tpu.memory_space<vmem>>, vector<8x1xf32>
    %cst_9 = arith.constant 9.99999974E-6 : f32
    %18 = vector.broadcast %cst_9 : f32 to vector<8x1xf32>
    %19 = arith.addf %16, %18 : vector<8x1xf32>
    %20 = math.rsqrt %19 : vector<8x1xf32>
    %21 = arith.mulf %17, %20 : vector<8x1xf32>
    %22 = vector.broadcast %21 : vector<8x1xf32> to vector<8x2048xf32>
    %23 = arith.mulf %11, %22 : vector<8x2048xf32>
    %c0_10 = arith.constant 0 : index
    %c0_11 = arith.constant 0 : index
    %24 = vector.load %arg6[%c0_10, %c0_11] : memref<8x1xf32, #tpu.memory_space<vmem>>, vector<8x1xf32>
    %25 = vector.broadcast %24 : vector<8x1xf32> to vector<8x2048xf32>
    %26 = arith.addf %23, %25 : vector<8x2048xf32>
    %27 = vector.extract_strided_slice %26 {offsets = [0, 2015], sizes = [8, 33], strides = [1, 1]} : vector<8x2048xf32> to vector<8x33xf32>
    %28 = vector.extract_strided_slice %26 {offsets = [0, 0], sizes = [8, 2015], strides = [1, 1]} : vector<8x2048xf32> to vector<8x2015xf32>
    %29 = tpu.concatenate %27, %28 in 1 : vector<8x33xf32>, vector<8x2015xf32> -> vector<8x2048xf32>
    %c0_12 = arith.constant 0 : index
    %c0_13 = arith.constant 0 : index
    %30 = vector.load %arg2[%c0_12, %c0_13] : memref<9x2048xf32, #tpu.memory_space<vmem>>, vector<1x2048xf32>
    %31 = vector.broadcast %30 : vector<1x2048xf32> to vector<8x2048xf32>
    %32 = arith.mulf %29, %31 : vector<8x2048xf32>
    %c0_14 = arith.constant 0 : index
    %c0_15 = arith.constant 0 : index
    %33 = vector.load %arg10[%c0_14, %c0_15] : memref<72x2048xf32, #tpu.memory_space<vmem>>, vector<8x2048xf32>
    tpu.vector_store %arg10[%c0_14, %c0_15], %32 {strides = array<i32>} : memref<72x2048xf32, #tpu.memory_space<vmem>>, vector<8x2048xf32>,
    %34 = vector.extract_strided_slice %26 {offsets = [0, 2016], sizes = [8, 32], strides = [1, 1]} : vector<8x2048xf32> to vector<8x32xf32>
    %35 = vector.extract_strided_slice %26 {offsets = [0, 0], sizes = [8, 2016], strides = [1, 1]} : vector<8x2048xf32> to vector<8x2016xf32>
    %36 = tpu.concatenate %34, %35 in 1 : vector<8x32xf32>, vector<8x2016xf32> -> vector<8x2048xf32>
    %c1 = arith.constant 1 : index
    %c0_16 = arith.constant 0 : index
    %37 = vector.load %arg2[%c1, %c0_16] : memref<9x2048xf32, #tpu.memory_space<vmem>>, vector<1x2048xf32>
    %38 = vector.broadcast %37 : vector<1x2048xf32> to vector<8x2048xf32>
    %39 = arith.mulf %36, %38 : vector<8x2048xf32>
    %c8 = arith.constant 8 : index
    %c0_17 = arith.constant 0 : index
    %40 = vector.load %arg10[%c8, %c0_17] : memref<72x2048xf32, #tpu.memory_space<vmem>>, vector<8x2048xf32>
    tpu.vector_store %arg10[%c8, %c0_17], %39 {strides = array<i32>} : memref<72x2048xf32, #tpu.memory_space<vmem>>, vector<8x2048xf32>,
    %41 = vector.extract_strided_slice %26 {offsets = [0, 2017], sizes = [8, 31], strides = [1, 1]} : vector<8x2048xf32> to vector<8x31xf32>
    %42 = vector.extract_strided_slice %26 {offsets = [0, 0], sizes = [8, 2017], strides = [1, 1]} : vector<8x2048xf32> to vector<8x2017xf32>
    %43 = tpu.concatenate %41, %42 in 1 : vector<8x31xf32>, vector<8x2017xf32> -> vector<8x2048xf32>
    %c2 = arith.constant 2 : index
    %c0_18 = arith.constant 0 : index
    %44 = vector.load %arg2[%c2, %c0_18] : memref<9x2048xf32, #tpu.memory_space<vmem>>, vector<1x2048xf32>
    %45 = vector.broadcast %44 : vector<1x2048xf32> to vector<8x2048xf32>
    %46 = arith.mulf %43, %45 : vector<8x2048xf32>
    %c16 = arith.constant 16 : index
    %c0_19 = arith.constant 0 : index
    %47 = vector.load %arg10[%c16, %c0_19] : memref<72x2048xf32, #tpu.memory_space<vmem>>, vector<8x2048xf32>
    tpu.vector_store %arg10[%c16, %c0_19], %46 {strides = array<i32>} : memref<72x2048xf32, #tpu.memory_space<vmem>>, vector<8x2048xf32>,
    %48 = vector.extract_strided_slice %26 {offsets = [0, 2047], sizes = [8, 1], strides = [1, 1]} : vector<8x2048xf32> to vector<8x1xf32>
    %49 = vector.extract_strided_slice %26 {offsets = [0, 0], sizes = [8, 2047], strides = [1, 1]} : vector<8x2048xf32> to vector<8x2047xf32>
    %50 = tpu.concatenate %48, %49 in 1 : vector<8x1xf32>, vector<8x2047xf32> -> vector<8x2048xf32>
    %c3 = arith.constant 3 : index
    %c0_20 = arith.constant 0 : index
    %51 = vector.load %arg2[%c3, %c0_20] : memref<9x2048xf32, #tpu.memory_space<vmem>>, vector<1x2048xf32>
    %52 = vector.broadcast %51 : vector<1x2048xf32> to vector<8x2048xf32>
    %53 = arith.mulf %50, %52 : vector<8x2048xf32>
    %c24 = arith.constant 24 : index
    %c0_21 = arith.constant 0 : index
    %54 = vector.load %arg10[%c24, %c0_21] : memref<72x2048xf32, #tpu.memory_space<vmem>>, vector<8x2048xf32>
    tpu.vector_store %arg10[%c24, %c0_21], %53 {strides = array<i32>} : memref<72x2048xf32, #tpu.memory_space<vmem>>, vector<8x2048xf32>,
    %c32 = arith.constant 32 : index
    %c0_22 = arith.constant 0 : index
    %55 = vector.load %arg10[%c32, %c0_22] : memref<72x2048xf32, #tpu.memory_space<vmem>>, vector<8x2048xf32>
    tpu.vector_store %arg10[%c32, %c0_22], %26 {strides = array<i32>} : memref<72x2048xf32, #tpu.memory_space<vmem>>, vector<8x2048xf32>,
    %56 = vector.extract_strided_slice %26 {offsets = [0, 1], sizes = [8, 2047], strides = [1, 1]} : vector<8x2048xf32> to vector<8x2047xf32>
    %57 = vector.extract_strided_slice %26 {offsets = [0, 0], sizes = [8, 1], strides = [1, 1]} : vector<8x2048xf32> to vector<8x1xf32>
    %58 = tpu.concatenate %56, %57 in 1 : vector<8x2047xf32>, vector<8x1xf32> -> vector<8x2048xf32>
    %c5 = arith.constant 5 : index
    %c0_23 = arith.constant 0 : index
    %59 = vector.load %arg2[%c5, %c0_23] : memref<9x2048xf32, #tpu.memory_space<vmem>>, vector<1x2048xf32>
    %60 = vector.broadcast %59 : vector<1x2048xf32> to vector<8x2048xf32>
    %61 = arith.mulf %58, %60 : vector<8x2048xf32>
    %c40 = arith.constant 40 : index
    %c0_24 = arith.constant 0 : index
    %62 = vector.load %arg10[%c40, %c0_24] : memref<72x2048xf32, #tpu.memory_space<vmem>>, vector<8x2048xf32>
    tpu.vector_store %arg10[%c40, %c0_24], %61 {strides = array<i32>} : memref<72x2048xf32, #tpu.memory_space<vmem>>, vector<8x2048xf32>,
    %63 = vector.extract_strided_slice %26 {offsets = [0, 31], sizes = [8, 2017], strides = [1, 1]} : vector<8x2048xf32> to vector<8x2017xf32>
    %64 = vector.extract_strided_slice %26 {offsets = [0, 0], sizes = [8, 31], strides = [1, 1]} : vector<8x2048xf32> to vector<8x31xf32>
    %65 = tpu.concatenate %63, %64 in 1 : vector<8x2017xf32>, vector<8x31xf32> -> vector<8x2048xf32>
    %c6 = arith.constant 6 : index
    %c0_25 = arith.constant 0 : index
    %66 = vector.load %arg2[%c6, %c0_25] : memref<9x2048xf32, #tpu.memory_space<vmem>>, vector<1x2048xf32>
    %67 = vector.broadcast %66 : vector<1x2048xf32> to vector<8x2048xf32>
    %68 = arith.mulf %65, %67 : vector<8x2048xf32>
    %c48 = arith.constant 48 : index
    %c0_26 = arith.constant 0 : index
    %69 = vector.load %arg10[%c48, %c0_26] : memref<72x2048xf32, #tpu.memory_space<vmem>>, vector<8x2048xf32>
    tpu.vector_store %arg10[%c48, %c0_26], %68 {strides = array<i32>} : memref<72x2048xf32, #tpu.memory_space<vmem>>, vector<8x2048xf32>,
    %70 = vector.extract_strided_slice %26 {offsets = [0, 32], sizes = [8, 2016], strides = [1, 1]} : vector<8x2048xf32> to vector<8x2016xf32>
    %71 = vector.extract_strided_slice %26 {offsets = [0, 0], sizes = [8, 32], strides = [1, 1]} : vector<8x2048xf32> to vector<8x32xf32>
    %72 = tpu.concatenate %70, %71 in 1 : vector<8x2016xf32>, vector<8x32xf32> -> vector<8x2048xf32>
    %c7 = arith.constant 7 : index
    %c0_27 = arith.constant 0 : index
    %73 = vector.load %arg2[%c7, %c0_27] : memref<9x2048xf32, #tpu.memory_space<vmem>>, vector<1x2048xf32>
    %74 = vector.broadcast %73 : vector<1x2048xf32> to vector<8x2048xf32>
    %75 = arith.mulf %72, %74 : vector<8x2048xf32>
    %c56 = arith.constant 56 : index
    %c0_28 = arith.constant 0 : index
    %76 = vector.load %arg10[%c56, %c0_28] : memref<72x2048xf32, #tpu.memory_space<vmem>>, vector<8x2048xf32>
    tpu.vector_store %arg10[%c56, %c0_28], %75 {strides = array<i32>} : memref<72x2048xf32, #tpu.memory_space<vmem>>, vector<8x2048xf32>,
    %77 = vector.extract_strided_slice %26 {offsets = [0, 33], sizes = [8, 2015], strides = [1, 1]} : vector<8x2048xf32> to vector<8x2015xf32>
    %78 = vector.extract_strided_slice %26 {offsets = [0, 0], sizes = [8, 33], strides = [1, 1]} : vector<8x2048xf32> to vector<8x33xf32>
    %79 = tpu.concatenate %77, %78 in 1 : vector<8x2015xf32>, vector<8x33xf32> -> vector<8x2048xf32>
    %c8_29 = arith.constant 8 : index
    %c0_30 = arith.constant 0 : index
    %80 = vector.load %arg2[%c8_29, %c0_30] : memref<9x2048xf32, #tpu.memory_space<vmem>>, vector<1x2048xf32>
    %81 = vector.broadcast %80 : vector<1x2048xf32> to vector<8x2048xf32>
    %82 = arith.mulf %79, %81 : vector<8x2048xf32>
    %c64 = arith.constant 64 : index
    %c0_31 = arith.constant 0 : index
    %83 = vector.load %arg10[%c64, %c0_31] : memref<72x2048xf32, #tpu.memory_space<vmem>>, vector<8x2048xf32>
    tpu.vector_store %arg10[%c64, %c0_31], %82 {strides = array<i32>} : memref<72x2048xf32, #tpu.memory_space<vmem>>, vector<8x2048xf32>,
    %c0_32 = arith.constant 0 : index
    %c0_33 = arith.constant 0 : index
    %84 = vector.load %arg3[%c0_32, %c0_33] : memref<72x8xf32, #tpu.memory_space<vmem>>, vector<72x8xf32>
    %c0_34 = arith.constant 0 : index
    %c0_35 = arith.constant 0 : index
    %85 = vector.load %arg10[%c0_34, %c0_35] : memref<72x2048xf32, #tpu.memory_space<vmem>>, vector<72x2048xf32>
    %cst_36 = arith.constant dense<0.000000e+00> : vector<8x2048xf32>
    %86 = tpu.matmul %84, %85, %cst_36 {dimension_numbers = #tpu.dot_dimension_numbers<[0], [0], [1], [1], [0, 1, 1, 1], [], []>} : vector<72x8xf32>, vector<72x2048xf32>, vector<8x2048xf32> -> vector<8x2048xf32>
    %c0_37 = arith.constant 0 : index
    %c0_38 = arith.constant 0 : index
    %87 = vector.load %arg4[%c0_37, %c0_38] : memref<8x1xf32, #tpu.memory_space<vmem>>, vector<8x1xf32>
    %88 = vector.broadcast %87 : vector<8x1xf32> to vector<8x2048xf32>
    %89 = arith.addf %86, %88 : vector<8x2048xf32>
    %cst_39 = arith.constant dense<0.000000e+00> : vector<8xf32>
    %90 = vector.multi_reduction <add>, %89, %cst_39 [1] : vector<8x2048xf32> to vector<8xf32>
    %91 = vector.shape_cast %90 : vector<8xf32> to vector<8x1xf32>
    %cst_40 = arith.constant 2.048000e+03 : f32
    %92 = vector.broadcast %cst_40 : f32 to vector<8x1xf32>
    %93 = arith.divf %91, %92 : vector<8x1xf32>
    %94 = vector.broadcast %93 : vector<8x1xf32> to vector<8x2048xf32>
    %95 = arith.subf %89, %94 : vector<8x2048xf32>
    %96 = arith.mulf %95, %95 : vector<8x2048xf32>
    %cst_41 = arith.constant dense<0.000000e+00> : vector<8xf32>
    %97 = vector.multi_reduction <add>, %96, %cst_41 [1] : vector<8x2048xf32> to vector<8xf32>
    %98 = vector.shape_cast %97 : vector<8xf32> to vector<8x1xf32>
    %cst_42 = arith.constant 2.048000e+03 : f32
    %99 = vector.broadcast %cst_42 : f32 to vector<8x1xf32>
    %100 = arith.divf %98, %99 : vector<8x1xf32>
    %c0_43 = arith.constant 0 : index
    %c0_44 = arith.constant 0 : index
    %101 = vector.load %arg7[%c0_43, %c0_44] : memref<8x1xf32, #tpu.memory_space<vmem>>, vector<8x1xf32>
    %cst_45 = arith.constant 9.99999974E-6 : f32
    %102 = vector.broadcast %cst_45 : f32 to vector<8x1xf32>
    %103 = arith.addf %100, %102 : vector<8x1xf32>
    %104 = math.rsqrt %103 : vector<8x1xf32>
    %105 = arith.mulf %101, %104 : vector<8x1xf32>
    %106 = vector.broadcast %105 : vector<8x1xf32> to vector<8x2048xf32>
    %107 = arith.mulf %95, %106 : vector<8x2048xf32>
    %c0_46 = arith.constant 0 : index
    %c0_47 = arith.constant 0 : index
    %108 = vector.load %arg8[%c0_46, %c0_47] : memref<8x1xf32, #tpu.memory_space<vmem>>, vector<8x1xf32>
    %109 = vector.broadcast %108 : vector<8x1xf32> to vector<8x2048xf32>
    %110 = arith.addf %107, %109 : vector<8x2048xf32>
    %cst_48 = arith.constant 0.000000e+00 : f32
    %111 = vector.broadcast %cst_48 : f32 to vector<8x2048xf32>
    %112 = arith.maximumf %110, %111 : vector<8x2048xf32>
    %113 = vector.extract_strided_slice %112 {offsets = [0, 0], sizes = [8, 1024], strides = [1, 1]} : vector<8x2048xf32> to vector<8x1024xf32>
    %c0_49 = arith.constant 0 : index
    %c0_50 = arith.constant 0 : index
    %c0_51 = arith.constant 0 : index
    %114 = vector.load %arg9[%c0_49, %c0_50, %c0_51] : memref<2x8x1024xf32, #tpu.memory_space<vmem>>, vector<1x8x1024xf32>
    %115 = vector.shape_cast %114 : vector<1x8x1024xf32> to vector<8x1024xf32>
    %116 = vector.shape_cast %113 : vector<8x1024xf32> to vector<1x8x1024xf32>
    tpu.vector_store %arg9[%c0_49, %c0_50, %c0_51], %116 {strides = array<i32>} : memref<2x8x1024xf32, #tpu.memory_space<vmem>>, vector<1x8x1024xf32>,
    %117 = vector.extract_strided_slice %112 {offsets = [0, 1024], sizes = [8, 1024], strides = [1, 1]} : vector<8x2048xf32> to vector<8x1024xf32>
    %c1_52 = arith.constant 1 : index
    %c0_53 = arith.constant 0 : index
    %c0_54 = arith.constant 0 : index
    %118 = vector.load %arg9[%c1_52, %c0_53, %c0_54] : memref<2x8x1024xf32, #tpu.memory_space<vmem>>, vector<1x8x1024xf32>
    %119 = vector.shape_cast %118 : vector<1x8x1024xf32> to vector<8x1024xf32>
    %120 = vector.shape_cast %117 : vector<8x1024xf32> to vector<1x8x1024xf32>
    tpu.vector_store %arg9[%c1_52, %c0_53, %c0_54], %120 {strides = array<i32>} : memref<2x8x1024xf32, #tpu.memory_space<vmem>>, vector<1x8x1024xf32>,
    return
  }
}

</mosaic_0001>

<llo_original>
// kernel: tpu_custom_call.1
$region0: #{tpu_custom_call.1}
  #allocation0 [shape = 'u32[]', space=smem, size = 0x4, offset = 0x4, fixed_abs, tag = 'smem constant byte address 0x4 - core index']
  #allocation1 [shape = 'u32[144,128]{1,0:T(1,128)}', space=vmem, size = 0x12000, scoped, tag = 'internal scratch']
  #allocation2 [shape = 'f32[72,2048]{1,0:T(8,128)}', space=vmem, size = 0x90000, scoped, tag = 'scratch operand']
  %s0 = inlined_call_operand.vmem [shape: f32[16,256], index: 0, kind: input, shape index: {}]
  %s1 = inlined_call_operand.hbm [shape: f32[256,1024], index: 1, kind: input, shape index: {}]
  %s2 = inlined_call_operand.hbm [shape: f32[9,2048], index: 2, kind: input, shape index: {}]
  %s3 = inlined_call_operand.vmem [shape: f32[72,8], index: 3, kind: input, shape index: {}]
  %s4 = inlined_call_operand.vmem [shape: f32[8,1], index: 4, kind: input, shape index: {}]
  %s5 = inlined_call_operand.vmem [shape: f32[8,1], index: 5, kind: input, shape index: {}]
  %s6 = inlined_call_operand.vmem [shape: f32[8,1], index: 6, kind: input, shape index: {}]
  %s7 = inlined_call_operand.vmem [shape: f32[8,1], index: 7, kind: input, shape index: {}]
  %s8 = inlined_call_operand.vmem [shape: f32[8,1], index: 8, kind: input, shape index: {}]
  %s9 = inlined_call_operand.hbm [shape: f32[2,8,1024], index: 9, kind: output, shape index: {}]
  %s10 = sld [smem:[#allocation0]]
  $region54: #{tpu_custom_call.1} parent=0
    _
  %s12 = ssub.s32 1, %s10
  %s13 = scalar_select 0, %s12, %s10
  $region1: #{tpu_custom_call.1} parent=0
    #allocation3 [shape = 'u8[1048576]{0}', space=vmem, size = 0x100000, scoped, tag = 'input window, operand 1, single buffered']
    #allocation4 [shape = 's32[1]{0}', space=sflag, size = 0x4, scoped, tag = 'scoped memory for tpu_custom_call.1']
    #allocation5 [shape = 's32[1]{0}', space=sflag, size = 0x4, scoped, tag = 'scoped memory for tpu_custom_call.1']
    #allocation6 [shape = 'u8[131072]{0}', space=vmem, size = 0x20000, scoped, tag = 'input window, operand 2, single buffered']
    #allocation7 [shape = 's32[1]{0}', space=sflag, size = 0x4, scoped, tag = 'scoped memory for tpu_custom_call.1']
    #allocation8 [shape = 'u8[65536]{0}', space=vmem, size = 0x10000, scoped, tag = 'output window, operand 0, single buffered']
    %14 = vsyncpa [#allocation4], 0
    %15 = vsyncpa [#allocation7], 0
    %16 = vsyncpa [#allocation5], 0
    // Predicated region
    $region2: #{tpu_custom_call.1} parent=1 // pred_check
      _
    $region3: #{tpu_custom_call.1} parent=1 // pred_check_branch
      %18 = sbr.rel (0) target = $region5
    $region4: #{tpu_custom_call.1} parent=1 // pred_region
      _
    $region5: #{tpu_custom_call.1} parent=1 // pred_fallthru
      _
    // Predicated region
    $region6: #{tpu_custom_call.1} parent=1 // pred_check
      _
    $region7: #{tpu_custom_call.1} parent=1 // pred_check_branch
      %20 = sbr.rel (0) target = $region9
    $region8: #{tpu_custom_call.1} parent=1 // pred_region
      %s22 = ssub.s32 32768, 32768
      %23 = vsyncadd [#allocation4], %s22
      %s24 = sshll.u32 [#allocation3], 4
      %s25 = int_to_ptr.vmem [resolvable:$true] %s24
      %30 = dma.hbm_to_vmem [thread:$0]  %s1, 32768, %s25, [#allocation4], 1024, 1024, 64
    $region9: #{tpu_custom_call.1} parent=1 // pred_fallthru
      _
    // Predicated region
    $region10: #{tpu_custom_call.1} parent=1 // pred_check
      _
    $region11: #{tpu_custom_call.1} parent=1 // pred_check_branch
      %32 = sbr.rel (0) target = $region13
    $region12: #{tpu_custom_call.1} parent=1 // pred_region
      %s34 = ssub.s32 4096, 4096
      %35 = vsyncadd [#allocation7], %s34
      %s36 = sshll.u32 [#allocation6], 4
      %s37 = int_to_ptr.vmem [resolvable:$true] %s36
      %42 = dma.hbm_to_vmem [thread:$0]  %s2, 4096, %s37, [#allocation7], 2048, 2048, 128
    $region13: #{tpu_custom_call.1} parent=1 // pred_fallthru
      _
    // Predicated region
    $region14: #{tpu_custom_call.1} parent=1 // pred_check
      _
    $region15: #{tpu_custom_call.1} parent=1 // pred_check_branch
      %44 = sbr.rel (0) target = $region17
    $region16: #{tpu_custom_call.1} parent=1 // pred_region
      _
    $region17: #{tpu_custom_call.1} parent=1 // pred_fallthru
      _
    // Predicated region
    $region18: #{tpu_custom_call.1} parent=1 // pred_check
      _
    $region19: #{tpu_custom_call.1} parent=1 // pred_check_branch
      %46 = sbr.rel (0) target = $region21
    $region20: #{tpu_custom_call.1} parent=1 // pred_region
      _
    $region21: #{tpu_custom_call.1} parent=1 // pred_fallthru
      _
    // Predicated region
    $region22: #{tpu_custom_call.1} parent=1 // pred_check
      _
    $region23: #{tpu_custom_call.1} parent=1 // pred_check_branch
      %48 = sbr.rel (0) target = $region25
    $region24: #{tpu_custom_call.1} parent=1 // pred_region
      _
    $region25: #{tpu_custom_call.1} parent=1 // pred_fallthru
      _
    // Predicated region
    $region26: #{tpu_custom_call.1} parent=1 // pred_check
      _
    $region27: #{tpu_custom_call.1} parent=1 // pred_check_branch
      %50 = sbr.rel (0) target = $region29
    $region28: #{tpu_custom_call.1} parent=1 // pred_region
      _
    $region29: #{tpu_custom_call.1} parent=1 // pred_fallthru
      _
    // Predicated region
    $region30: #{tpu_custom_call.1} parent=1 // pred_check
      _
    $region31: #{tpu_custom_call.1} parent=1 // pred_check_branch
      %52 = sbr.rel (0) target = $region33
    $region32: #{tpu_custom_call.1} parent=1 // pred_region
      _
    $region33: #{tpu_custom_call.1} parent=1 // pred_fallthru
      _
    // Predicated region
    $region34: #{tpu_custom_call.1} parent=1 // pred_check
      _
    $region35: #{tpu_custom_call.1} parent=1 // pred_check_branch
      %54 = sbr.rel (0) target = $region37
    $region36: #{tpu_custom_call.1} parent=1 // pred_region
      _
    $region37: #{tpu_custom_call.1} parent=1 // pred_fallthru
      _
    // Predicated region
    $region38: #{tpu_custom_call.1} parent=1 // pred_check
      _
    $region39: #{tpu_custom_call.1} parent=1 // pred_check_branch
      %56 = sbr.rel (0) target = $region41
    $region40: #{tpu_custom_call.1} parent=1 // pred_region
      %57 = dma.done [#allocation4], 32768
    $region41: #{tpu_custom_call.1} parent=1 // pred_fallthru
      _
    // Predicated region
    $region42: #{tpu_custom_call.1} parent=1 // pred_check
      _
    $region43: #{tpu_custom_call.1} parent=1 // pred_check_branch
      %59 = sbr.rel (0) target = $region45
    $region44: #{tpu_custom_call.1} parent=1 // pred_region
      %60 = dma.done [#allocation7], 4096
    $region45: #{tpu_custom_call.1} parent=1 // pred_fallthru
      _
    %v61 = vld [vmem:[%s0] sm:$0xff]
    %v62 = vld [vmem:[%s0 + $0x8] sm:$0xff]
    %v63 = vld [vmem:[%s0 + $0x10] sm:$0xff]
    %v64 = vld [vmem:[%s0 + $0x18] sm:$0xff]
    %v65 = vld [vmem:[#allocation3] sm:$0xff]
    %v66 = vld [vmem:[#allocation3 + $0x8] sm:$0xff]
    %v67 = vld [vmem:[#allocation3 + $0x10] sm:$0xff]
    %v68 = vld [vmem:[#allocation3 + $0x18] sm:$0xff]
    %v69 = vld [vmem:[#allocation3 + $0x20] sm:$0xff]
    %v70 = vld [vmem:[#allocation3 + $0x28] sm:$0xff]
    %v71 = vld [vmem:[#allocation3 + $0x30] sm:$0xff]
    %v72 = vld [vmem:[#allocation3 + $0x38] sm:$0xff]
    %v73 = vld [vmem:[#allocation3 + $0x40] sm:$0xff]
    %v74 = vld [vmem:[#allocation3 + $0x48] sm:$0xff]
    %v75 = vld [vmem:[#allocation3 + $0x50] sm:$0xff]
    %v76 = vld [vmem:[#allocation3 + $0x58] sm:$0xff]
    %v77 = vld [vmem:[#allocation3 + $0x60] sm:$0xff]
    %v78 = vld [vmem:[#allocation3 + $0x68] sm:$0xff]
    %v79 = vld [vmem:[#allocation3 + $0x70] sm:$0xff]
    %v80 = vld [vmem:[#allocation3 + $0x78] sm:$0xff]
    %v81 = vld [vmem:[#allocation3 + $0x80] sm:$0xff]
    %v82 = vld [vmem:[#allocation3 + $0x88] sm:$0xff]
    %v83 = vld [vmem:[#allocation3 + $0x90] sm:$0xff]
    %v84 = vld [vmem:[#allocation3 + $0x98] sm:$0xff]
    %v85 = vld [vmem:[#allocation3 + $0xa0] sm:$0xff]
    %v86 = vld [vmem:[#allocation3 + $0xa8] sm:$0xff]
    %v87 = vld [vmem:[#allocation3 + $0xb0] sm:$0xff]
    %v88 = vld [vmem:[#allocation3 + $0xb8] sm:$0xff]
    %v89 = vld [vmem:[#allocation3 + $0xc0] sm:$0xff]
    %v90 = vld [vmem:[#allocation3 + $0xc8] sm:$0xff]
    %v91 = vld [vmem:[#allocation3 + $0xd0] sm:$0xff]
    %v92 = vld [vmem:[#allocation3 + $0xd8] sm:$0xff]
    %v93 = vld [vmem:[#allocation3 + $0xe0] sm:$0xff]
    %v94 = vld [vmem:[#allocation3 + $0xe8] sm:$0xff]
    %v95 = vld [vmem:[#allocation3 + $0xf0] sm:$0xff]
    %v96 = vld [vmem:[#allocation3 + $0xf8] sm:$0xff]
    %v97 = vld [vmem:[#allocation3 + $0x100] sm:$0xff]
    %v98 = vld [vmem:[#allocation3 + $0x108] sm:$0xff]
    %v99 = vld [vmem:[#allocation3 + $0x110] sm:$0xff]
    %v100 = vld [vmem:[#allocation3 + $0x118] sm:$0xff]
    %v101 = vld [vmem:[#allocation3 + $0x120] sm:$0xff]
    %v102 = vld [vmem:[#allocation3 + $0x128] sm:$0xff]
    %v103 = vld [vmem:[#allocation3 + $0x130] sm:$0xff]
    %v104 = vld [vmem:[#allocation3 + $0x138] sm:$0xff]
    %v105 = vld [vmem:[#allocation3 + $0x140] sm:$0xff]
    %v106 = vld [vmem:[#allocation3 + $0x148] sm:$0xff]
    %v107 = vld [vmem:[#allocation3 + $0x150] sm:$0xff]
    %v108 = vld [vmem:[#allocation3 + $0x158] sm:$0xff]
    %v109 = vld [vmem:[#allocation3 + $0x160] sm:$0xff]
    %v110 = vld [vmem:[#allocation3 + $0x168] sm:$0xff]
    %v111 = vld [vmem:[#allocation3 + $0x170] sm:$0xff]
    %v112 = vld [vmem:[#allocation3 + $0x178] sm:$0xff]
    %v113 = vld [vmem:[#allocation3 + $0x180] sm:$0xff]
    %v114 = vld [vmem:[#allocation3 + $0x188] sm:$0xff]
    %v115 = vld [vmem:[#allocation3 + $0x190] sm:$0xff]
    %v116 = vld [vmem:[#allocation3 + $0x198] sm:$0xff]
    %v117 = vld [vmem:[#allocation3 + $0x1a0] sm:$0xff]
    %v118 = vld [vmem:[#allocation3 + $0x1a8] sm:$0xff]
    %v119 = vld [vmem:[#allocation3 + $0x1b0] sm:$0xff]
    %v120 = vld [vmem:[#allocation3 + $0x1b8] sm:$0xff]
    %v121 = vld [vmem:[#allocation3 + $0x1c0] sm:$0xff]
    %v122 = vld [vmem:[#allocation3 + $0x1c8] sm:$0xff]
    %v123 = vld [vmem:[#allocation3 + $0x1d0] sm:$0xff]
    %v124 = vld [vmem:[#allocation3 + $0x1d8] sm:$0xff]
    %v125 = vld [vmem:[#allocation3 + $0x1e0] sm:$0xff]
    %v126 = vld [vmem:[#allocation3 + $0x1e8] sm:$0xff]
    %v127 = vld [vmem:[#allocation3 + $0x1f0] sm:$0xff]
    %v128 = vld [vmem:[#allocation3 + $0x1f8] sm:$0xff]
    %v129 = vld [vmem:[#allocation3 + $0x200] sm:$0xff]
    %v130 = vld [vmem:[#allocation3 + $0x208] sm:$0xff]
    %v131 = vld [vmem:[#allocation3 + $0x210] sm:$0xff]
    %v132 = vld [vmem:[#allocation3 + $0x218] sm:$0xff]
    %v133 = vld [vmem:[#allocation3 + $0x220] sm:$0xff]
    %v134 = vld [vmem:[#allocation3 + $0x228] sm:$0xff]
    %v135 = vld [vmem:[#allocation3 + $0x230] sm:$0xff]
    %v136 = vld [vmem:[#allocation3 + $0x238] sm:$0xff]
    %v137 = vld [vmem:[#allocation3 + $0x240] sm:$0xff]
    %v138 = vld [vmem:[#allocation3 + $0x248] sm:$0xff]
    %v139 = vld [vmem:[#allocation3 + $0x250] sm:$0xff]
    %v140 = vld [vmem:[#allocation3 + $0x258] sm:$0xff]
    %v141 = vld [vmem:[#allocation3 + $0x260] sm:$0xff]
    %v142 = vld [vmem:[#allocation3 + $0x268] sm:$0xff]
    %v143 = vld [vmem:[#allocation3 + $0x270] sm:$0xff]
    %v144 = vld [vmem:[#allocation3 + $0x278] sm:$0xff]
    %v145 = vld [vmem:[#allocation3 + $0x280] sm:$0xff]
    %v146 = vld [vmem:[#allocation3 + $0x288] sm:$0xff]
    %v147 = vld [vmem:[#allocation3 + $0x290] sm:$0xff]
    %v148 = vld [vmem:[#allocation3 + $0x298] sm:$0xff]
    %v149 = vld [vmem:[#allocation3 + $0x2a0] sm:$0xff]
    %v150 = vld [vmem:[#allocation3 + $0x2a8] sm:$0xff]
    %v151 = vld [vmem:[#allocation3 + $0x2b0] sm:$0xff]
    %v152 = vld [vmem:[#allocation3 + $0x2b8] sm:$0xff]
    %v153 = vld [vmem:[#allocation3 + $0x2c0] sm:$0xff]
    %v154 = vld [vmem:[#allocation3 + $0x2c8] sm:$0xff]
    %v155 = vld [vmem:[#allocation3 + $0x2d0] sm:$0xff]
    %v156 = vld [vmem:[#allocation3 + $0x2d8] sm:$0xff]
    %v157 = vld [vmem:[#allocation3 + $0x2e0] sm:$0xff]
    %v158 = vld [vmem:[#allocation3 + $0x2e8] sm:$0xff]
    %v159 = vld [vmem:[#allocation3 + $0x2f0] sm:$0xff]
    %v160 = vld [vmem:[#allocation3 + $0x2f8] sm:$0xff]
    %v161 = vld [vmem:[#allocation3 + $0x300] sm:$0xff]
    %v162 = vld [vmem:[#allocation3 + $0x308] sm:$0xff]
    %v163 = vld [vmem:[#allocation3 + $0x310] sm:$0xff]
    %v164 = vld [vmem:[#allocation3 + $0x318] sm:$0xff]
    %v165 = vld [vmem:[#allocation3 + $0x320] sm:$0xff]
    %v166 = vld [vmem:[#allocation3 + $0x328] sm:$0xff]
    %v167 = vld [vmem:[#allocation3 + $0x330] sm:$0xff]
    %v168 = vld [vmem:[#allocation3 + $0x338] sm:$0xff]
    %v169 = vld [vmem:[#allocation3 + $0x340] sm:$0xff]
    %v170 = vld [vmem:[#allocation3 + $0x348] sm:$0xff]
    %v171 = vld [vmem:[#allocation3 + $0x350] sm:$0xff]
    %v172 = vld [vmem:[#allocation3 + $0x358] sm:$0xff]
    %v173 = vld [vmem:[#allocation3 + $0x360] sm:$0xff]
    %v174 = vld [vmem:[#allocation3 + $0x368] sm:$0xff]
    %v175 = vld [vmem:[#allocation3 + $0x370] sm:$0xff]
    %v176 = vld [vmem:[#allocation3 + $0x378] sm:$0xff]
    %v177 = vld [vmem:[#allocation3 + $0x380] sm:$0xff]
    %v178 = vld [vmem:[#allocation3 + $0x388] sm:$0xff]
    %v179 = vld [vmem:[#allocation3 + $0x390] sm:$0xff]
    %v180 = vld [vmem:[#allocation3 + $0x398] sm:$0xff]
    %v181 = vld [vmem:[#allocation3 + $0x3a0] sm:$0xff]
    %v182 = vld [vmem:[#allocation3 + $0x3a8] sm:$0xff]
    %v183 = vld [vmem:[#allocation3 + $0x3b0] sm:$0xff]
    %v184 = vld [vmem:[#allocation3 + $0x3b8] sm:$0xff]
    %v185 = vld [vmem:[#allocation3 + $0x3c0] sm:$0xff]
    %v186 = vld [vmem:[#allocation3 + $0x3c8] sm:$0xff]
    %v187 = vld [vmem:[#allocation3 + $0x3d0] sm:$0xff]
    %v188 = vld [vmem:[#allocation3 + $0x3d8] sm:$0xff]
    %v189 = vld [vmem:[#allocation3 + $0x3e0] sm:$0xff]
    %v190 = vld [vmem:[#allocation3 + $0x3e8] sm:$0xff]
    %v191 = vld [vmem:[#allocation3 + $0x3f0] sm:$0xff]
    %v192 = vld [vmem:[#allocation3 + $0x3f8] sm:$0xff]
    %v193 = vld [vmem:[#allocation3 + $0x400] sm:$0xff]
    %v194 = vld [vmem:[#allocation3 + $0x408] sm:$0xff]
    %v195 = vld [vmem:[#allocation3 + $0x410] sm:$0xff]
    %v196 = vld [vmem:[#allocation3 + $0x418] sm:$0xff]
    %v197 = vld [vmem:[#allocation3 + $0x420] sm:$0xff]
    %v198 = vld [vmem:[#allocation3 + $0x428] sm:$0xff]
    %v199 = vld [vmem:[#allocation3 + $0x430] sm:$0xff]
    %v200 = vld [vmem:[#allocation3 + $0x438] sm:$0xff]
    %v201 = vld [vmem:[#allocation3 + $0x440] sm:$0xff]
    %v202 = vld [vmem:[#allocation3 + $0x448] sm:$0xff]
    %v203 = vld [vmem:[#allocation3 + $0x450] sm:$0xff]
    %v204 = vld [vmem:[#allocation3 + $0x458] sm:$0xff]
    %v205 = vld [vmem:[#allocation3 + $0x460] sm:$0xff]
    %v206 = vld [vmem:[#allocation3 + $0x468] sm:$0xff]
    %v207 = vld [vmem:[#allocation3 + $0x470] sm:$0xff]
    %v208 = vld [vmem:[#allocation3 + $0x478] sm:$0xff]
    %v209 = vld [vmem:[#allocation3 + $0x480] sm:$0xff]
    %v210 = vld [vmem:[#allocation3 + $0x488] sm:$0xff]
    %v211 = vld [vmem:[#allocation3 + $0x490] sm:$0xff]
    %v212 = vld [vmem:[#allocation3 + $0x498] sm:$0xff]
    %v213 = vld [vmem:[#allocation3 + $0x4a0] sm:$0xff]
    %v214 = vld [vmem:[#allocation3 + $0x4a8] sm:$0xff]
    %v215 = vld [vmem:[#allocation3 + $0x4b0] sm:$0xff]
    %v216 = vld [vmem:[#allocation3 + $0x4b8] sm:$0xff]
    %v217 = vld [vmem:[#allocation3 + $0x4c0] sm:$0xff]
    %v218 = vld [vmem:[#allocation3 + $0x4c8] sm:$0xff]
    %v219 = vld [vmem:[#allocation3 + $0x4d0] sm:$0xff]
    %v220 = vld [vmem:[#allocation3 + $0x4d8] sm:$0xff]
    %v221 = vld [vmem:[#allocation3 + $0x4e0] sm:$0xff]
    %v222 = vld [vmem:[#allocation3 + $0x4e8] sm:$0xff]
    %v223 = vld [vmem:[#allocation3 + $0x4f0] sm:$0xff]
    %v224 = vld [vmem:[#allocation3 + $0x4f8] sm:$0xff]
    %v225 = vld [vmem:[#allocation3 + $0x500] sm:$0xff]
    %v226 = vld [vmem:[#allocation3 + $0x508] sm:$0xff]
    %v227 = vld [vmem:[#allocation3 + $0x510] sm:$0xff]
    %v228 = vld [vmem:[#allocation3 + $0x518] sm:$0xff]
    %v229 = vld [vmem:[#allocation3 + $0x520] sm:$0xff]
    %v230 = vld [vmem:[#allocation3 + $0x528] sm:$0xff]
    %v231 = vld [vmem:[#allocation3 + $0x530] sm:$0xff]
    %v232 = vld [vmem:[#allocation3 + $0x538] sm:$0xff]
    %v233 = vld [vmem:[#allocation3 + $0x540] sm:$0xff]
    %v234 = vld [vmem:[#allocation3 + $0x548] sm:$0xff]
    %v235 = vld [vmem:[#allocation3 + $0x550] sm:$0xff]
    %v236 = vld [vmem:[#allocation3 + $0x558] sm:$0xff]
    %v237 = vld [vmem:[#allocation3 + $0x560] sm:$0xff]
    %v238 = vld [vmem:[#allocation3 + $0x568] sm:$0xff]
    %v239 = vld [vmem:[#allocation3 + $0x570] sm:$0xff]
    %v240 = vld [vmem:[#allocation3 + $0x578] sm:$0xff]
    %v241 = vld [vmem:[#allocation3 + $0x580] sm:$0xff]
    %v242 = vld [vmem:[#allocation3 + $0x588] sm:$0xff]
    %v243 = vld [vmem:[#allocation3 + $0x590] sm:$0xff]
    %v244 = vld [vmem:[#allocation3 + $0x598] sm:$0xff]
    %v245 = vld [vmem:[#allocation3 + $0x5a0] sm:$0xff]
    %v246 = vld [vmem:[#allocation3 + $0x5a8] sm:$0xff]
    %v247 = vld [vmem:[#allocation3 + $0x5b0] sm:$0xff]
    %v248 = vld [vmem:[#allocation3 + $0x5b8] sm:$0xff]
    %v249 = vld [vmem:[#allocation3 + $0x5c0] sm:$0xff]
    %v250 = vld [vmem:[#allocation3 + $0x5c8] sm:$0xff]
    %v251 = vld [vmem:[#allocation3 + $0x5d0] sm:$0xff]
    %v252 = vld [vmem:[#allocation3 + $0x5d8] sm:$0xff]
    %v253 = vld [vmem:[#allocation3 + $0x5e0] sm:$0xff]
    %v254 = vld [vmem:[#allocation3 + $0x5e8] sm:$0xff]
    %v255 = vld [vmem:[#allocation3 + $0x5f0] sm:$0xff]
    %v256 = vld [vmem:[#allocation3 + $0x5f8] sm:$0xff]
    %v257 = vld [vmem:[#allocation3 + $0x600] sm:$0xff]
    %v258 = vld [vmem:[#allocation3 + $0x608] sm:$0xff]
    %v259 = vld [vmem:[#allocation3 + $0x610] sm:$0xff]
    %v260 = vld [vmem:[#allocation3 + $0x618] sm:$0xff]
    %v261 = vld [vmem:[#allocation3 + $0x620] sm:$0xff]
    %v262 = vld [vmem:[#allocation3 + $0x628] sm:$0xff]
    %v263 = vld [vmem:[#allocation3 + $0x630] sm:$0xff]
    %v264 = vld [vmem:[#allocation3 + $0x638] sm:$0xff]
    %v265 = vld [vmem:[#allocation3 + $0x640] sm:$0xff]
    %v266 = vld [vmem:[#allocation3 + $0x648] sm:$0xff]
    %v267 = vld [vmem:[#allocation3 + $0x650] sm:$0xff]
    %v268 = vld [vmem:[#allocation3 + $0x658] sm:$0xff]
    %v269 = vld [vmem:[#allocation3 + $0x660] sm:$0xff]
    %v270 = vld [vmem:[#allocation3 + $0x668] sm:$0xff]
    %v271 = vld [vmem:[#allocation3 + $0x670] sm:$0xff]
    %v272 = vld [vmem:[#allocation3 + $0x678] sm:$0xff]
    %v273 = vld [vmem:[#allocation3 + $0x680] sm:$0xff]
    %v274 = vld [vmem:[#allocation3 + $0x688] sm:$0xff]
    %v275 = vld [vmem:[#allocation3 + $0x690] sm:$0xff]
    %v276 = vld [vmem:[#allocation3 + $0x698] sm:$0xff]
    %v277 = vld [vmem:[#allocation3 + $0x6a0] sm:$0xff]
    %v278 = vld [vmem:[#allocation3 + $0x6a8] sm:$0xff]
    %v279 = vld [vmem:[#allocation3 + $0x6b0] sm:$0xff]
    %v280 = vld [vmem:[#allocation3 + $0x6b8] sm:$0xff]
    %v281 = vld [vmem:[#allocation3 + $0x6c0] sm:$0xff]
    %v282 = vld [vmem:[#allocation3 + $0x6c8] sm:$0xff]
    %v283 = vld [vmem:[#allocation3 + $0x6d0] sm:$0xff]
    %v284 = vld [vmem:[#allocation3 + $0x6d8] sm:$0xff]
    %v285 = vld [vmem:[#allocation3 + $0x6e0] sm:$0xff]
    %v286 = vld [vmem:[#allocation3 + $0x6e8] sm:$0xff]
    %v287 = vld [vmem:[#allocation3 + $0x6f0] sm:$0xff]
    %v288 = vld [vmem:[#allocation3 + $0x6f8] sm:$0xff]
    %v289 = vld [vmem:[#allocation3 + $0x700] sm:$0xff]
    %v290 = vld [vmem:[#allocation3 + $0x708] sm:$0xff]
    %v291 = vld [vmem:[#allocation3 + $0x710] sm:$0xff]
    %v292 = vld [vmem:[#allocation3 + $0x718] sm:$0xff]
    %v293 = vld [vmem:[#allocation3 + $0x720] sm:$0xff]
    %v294 = vld [vmem:[#allocation3 + $0x728] sm:$0xff]
    %v295 = vld [vmem:[#allocation3 + $0x730] sm:$0xff]
    %v296 = vld [vmem:[#allocation3 + $0x738] sm:$0xff]
    %v297 = vld [vmem:[#allocation3 + $0x740] sm:$0xff]
    %v298 = vld [vmem:[#allocation3 + $0x748] sm:$0xff]
    %v299 = vld [vmem:[#allocation3 + $0x750] sm:$0xff]
    %v300 = vld [vmem:[#allocation3 + $0x758] sm:$0xff]
    %v301 = vld [vmem:[#allocation3 + $0x760] sm:$0xff]
    %v302 = vld [vmem:[#allocation3 + $0x768] sm:$0xff]
    %v303 = vld [vmem:[#allocation3 + $0x770] sm:$0xff]
    %v304 = vld [vmem:[#allocation3 + $0x778] sm:$0xff]
    %v305 = vld [vmem:[#allocation3 + $0x780] sm:$0xff]
    %v306 = vld [vmem:[#allocation3 + $0x788] sm:$0xff]
    %v307 = vld [vmem:[#allocation3 + $0x790] sm:$0xff]
    %v308 = vld [vmem:[#allocation3 + $0x798] sm:$0xff]
    %v309 = vld [vmem:[#allocation3 + $0x7a0] sm:$0xff]
    %v310 = vld [vmem:[#allocation3 + $0x7a8] sm:$0xff]
    %v311 = vld [vmem:[#allocation3 + $0x7b0] sm:$0xff]
    %v312 = vld [vmem:[#allocation3 + $0x7b8] sm:$0xff]
    %v313 = vld [vmem:[#allocation3 + $0x7c0] sm:$0xff]
    %v314 = vld [vmem:[#allocation3 + $0x7c8] sm:$0xff]
    %v315 = vld [vmem:[#allocation3 + $0x7d0] sm:$0xff]
    %v316 = vld [vmem:[#allocation3 + $0x7d8] sm:$0xff]
    %v317 = vld [vmem:[#allocation3 + $0x7e0] sm:$0xff]
    %v318 = vld [vmem:[#allocation3 + $0x7e8] sm:$0xff]
    %v319 = vld [vmem:[#allocation3 + $0x7f0] sm:$0xff]
    %v320 = vld [vmem:[#allocation3 + $0x7f8] sm:$0xff]
    %321 = vmatprep.subr.mxu0 %v66
    %322 = vmatpush1.msra.mxu0 %v65
    %323 = vmatprep.subr.mxu0 %v74
    %324 = vmatpush1.msra.mxu0 %v73
    %325 = vmatprep.subr.mxu0 %v82
    %326 = vmatpush1.msra.mxu0 %v81
    %327 = vmatprep.subr.mxu0 %v90
    %328 = vmatpush1.msra.mxu0 %v89
    %329 = vmatprep.subr.mxu0 %v98
    %330 = vmatpush1.msra.mxu0 %v97
    %331 = vmatprep.subr.mxu0 %v106
    %332 = vmatpush1.msra.mxu0 %v105
    %333 = vmatprep.subr.mxu0 %v114
    %334 = vmatpush1.msra.mxu0 %v113
    %335 = vmatprep.subr.mxu0 %v122
    %336 = vmatpush1.msra.mxu0 %v121
    %337 = vmatprep.subr.mxu0 %v130
    %338 = vmatpush1.msra.mxu0 %v129
    %339 = vmatprep.subr.mxu0 %v138
    %340 = vmatpush1.msra.mxu0 %v137
    %341 = vmatprep.subr.mxu0 %v146
    %342 = vmatpush1.msra.mxu0 %v145
    %343 = vmatprep.subr.mxu0 %v154
    %344 = vmatpush1.msra.mxu0 %v153
    %345 = vmatprep.subr.mxu0 %v162
    %346 = vmatpush1.msra.mxu0 %v161
    %347 = vmatprep.subr.mxu0 %v170
    %348 = vmatpush1.msra.mxu0 %v169
    %349 = vmatprep.subr.mxu0 %v178
    %350 = vmatpush1.msra.mxu0 %v177
    %351 = vmatprep.subr.mxu0 %v186
    %352 = vmatpush1.msra.mxu0 %v185
    %353 = vmatprep.subr.mxu0 %v194
    %354 = vmatpush1.msra.mxu0 %v193
    %355 = vmatprep.subr.mxu0 %v202
    %356 = vmatpush1.msra.mxu0 %v201
    %357 = vmatprep.subr.mxu0 %v210
    %358 = vmatpush1.msra.mxu0 %v209
    %359 = vmatprep.subr.mxu0 %v218
    %360 = vmatpush1.msra.mxu0 %v217
    %361 = vmatprep.subr.mxu0 %v226
    %362 = vmatpush1.msra.mxu0 %v225
    %363 = vmatprep.subr.mxu0 %v234
    %364 = vmatpush1.msra.mxu0 %v233
    %365 = vmatprep.subr.mxu0 %v242
    %366 = vmatpush1.msra.mxu0 %v241
    %367 = vmatprep.subr.mxu0 %v250
    %368 = vmatpush1.msra.mxu0 %v249
    %369 = vmatprep.subr.mxu0 %v258
    %370 = vmatpush1.msra.mxu0 %v257
    %371 = vmatprep.subr.mxu0 %v266
    %372 = vmatpush1.msra.mxu0 %v265
    %373 = vmatprep.subr.mxu0 %v274
    %374 = vmatpush1.msra.mxu0 %v273
    %375 = vmatprep.subr.mxu0 %v282
    %376 = vmatpush1.msra.mxu0 %v281
    %377 = vmatprep.subr.mxu0 %v290
    %378 = vmatpush1.msra.mxu0 %v289
    %379 = vmatprep.subr.mxu0 %v298
    %380 = vmatpush1.msra.mxu0 %v297
    %381 = vmatprep.subr.mxu0 %v306
    %382 = vmatpush1.msra.mxu0 %v305
    %383 = vmatprep.subr.mxu0 %v314
    %384 = vmatpush1.msra.mxu0 %v313
    %385 = vmatprep.mubr.f32.mxu0 %v62
    %386 = vmatmul.mubr.f32.gmra.mrb[0].mxu0 %v61
    %v387 = vpop.f32.mrb[0].mxu0
    %v388 = vadd.f32 0.0, %v387
    %v389 = vpop.f32.mrb[0].mxu0
    %v390 = vadd.f32 0.0, %v389
    %391 = vmatprep.mubr.f32.mxu0 %v64
    %392 = vmatmul.mubr.f32.gmra.mrb[0].mxu0 %v63
    %v393 = vpop.f32.mrb[0].mxu0
    %v394 = vadd.f32 0.0, %v393
    %v395 = vpop.f32.mrb[0].mxu0
    %v396 = vadd.f32 0.0, %v395
    %397 = vdwg.mxu0
    %398 = vmatprep.subr.mxu0 %v68
    %399 = vmatpush1.msra.mxu0 %v67
    %400 = vmatprep.subr.mxu0 %v76
    %401 = vmatpush1.msra.mxu0 %v75
    %402 = vmatprep.subr.mxu0 %v84
    %403 = vmatpush1.msra.mxu0 %v83
    %404 = vmatprep.subr.mxu0 %v92
    %405 = vmatpush1.msra.mxu0 %v91
    %406 = vmatprep.subr.mxu0 %v100
    %407 = vmatpush1.msra.mxu0 %v99
    %408 = vmatprep.subr.mxu0 %v108
    %409 = vmatpush1.msra.mxu0 %v107
    %410 = vmatprep.subr.mxu0 %v116
    %411 = vmatpush1.msra.mxu0 %v115
    %412 = vmatprep.subr.mxu0 %v124
    %413 = vmatpush1.msra.mxu0 %v123
    %414 = vmatprep.subr.mxu0 %v132
    %415 = vmatpush1.msra.mxu0 %v131
    %416 = vmatprep.subr.mxu0 %v140
    %417 = vmatpush1.msra.mxu0 %v139
    %418 = vmatprep.subr.mxu0 %v148
    %419 = vmatpush1.msra.mxu0 %v147
    %420 = vmatprep.subr.mxu0 %v156
    %421 = vmatpush1.msra.mxu0 %v155
    %422 = vmatprep.subr.mxu0 %v164
    %423 = vmatpush1.msra.mxu0 %v163
    %424 = vmatprep.subr.mxu0 %v172
    %425 = vmatpush1.msra.mxu0 %v171
    %426 = vmatprep.subr.mxu0 %v180
    %427 = vmatpush1.msra.mxu0 %v179
    %428 = vmatprep.subr.mxu0 %v188
    %429 = vmatpush1.msra.mxu0 %v187
    %430 = vmatprep.subr.mxu0 %v196
    %431 = vmatpush1.msra.mxu0 %v195
    %432 = vmatprep.subr.mxu0 %v204
    %433 = vmatpush1.msra.mxu0 %v203
    %434 = vmatprep.subr.mxu0 %v212
    %435 = vmatpush1.msra.mxu0 %v211
    %436 = vmatprep.subr.mxu0 %v220
    %437 = vmatpush1.msra.mxu0 %v219
    %438 = vmatprep.subr.mxu0 %v228
    %439 = vmatpush1.msra.mxu0 %v227
    %440 = vmatprep.subr.mxu0 %v236
    %441 = vmatpush1.msra.mxu0 %v235
    %442 = vmatprep.subr.mxu0 %v244
    %443 = vmatpush1.msra.mxu0 %v243
    %444 = vmatprep.subr.mxu0 %v252
    %445 = vmatpush1.msra.mxu0 %v251
    %446 = vmatprep.subr.mxu0 %v260
    %447 = vmatpush1.msra.mxu0 %v259
    %448 = vmatprep.subr.mxu0 %v268
    %449 = vmatpush1.msra.mxu0 %v267
    %450 = vmatprep.subr.mxu0 %v276
    %451 = vmatpush1.msra.mxu0 %v275
    %452 = vmatprep.subr.mxu0 %v284
    %453 = vmatpush1.msra.mxu0 %v283
    %454 = vmatprep.subr.mxu0 %v292
    %455 = vmatpush1.msra.mxu0 %v291
    %456 = vmatprep.subr.mxu0 %v300
    %457 = vmatpush1.msra.mxu0 %v299
    %458 = vmatprep.subr.mxu0 %v308
    %459 = vmatpush1.msra.mxu0 %v307
    %460 = vmatprep.subr.mxu0 %v316
    %461 = vmatpush1.msra.mxu0 %v315
    %462 = vmatprep.mubr.f32.mxu0 %v62
    %463 = vmatmul.mubr.f32.gmra.mrb[0].mxu0 %v61
    %v464 = vpop.f32.mrb[0].mxu0
    %v465 = vadd.f32 0.0, %v464
    %v466 = vpop.f32.mrb[0].mxu0
    %v467 = vadd.f32 0.0, %v466
    %468 = vmatprep.mubr.f32.mxu0 %v64
    %469 = vmatmul.mubr.f32.gmra.mrb[0].mxu0 %v63
    %v470 = vpop.f32.mrb[0].mxu0
    %v471 = vadd.f32 0.0, %v470
    %v472 = vpop.f32.mrb[0].mxu0
    %v473 = vadd.f32 0.0, %v472
    %474 = vdwg.mxu0
    %475 = vmatprep.subr.mxu0 %v70
    %476 = vmatpush1.msra.mxu0 %v69
    %477 = vmatprep.subr.mxu0 %v78
    %478 = vmatpush1.msra.mxu0 %v77
    %479 = vmatprep.subr.mxu0 %v86
    %480 = vmatpush1.msra.mxu0 %v85
    %481 = vmatprep.subr.mxu0 %v94
    %482 = vmatpush1.msra.mxu0 %v93
    %483 = vmatprep.subr.mxu0 %v102
    %484 = vmatpush1.msra.mxu0 %v101
    %485 = vmatprep.subr.mxu0 %v110
    %486 = vmatpush1.msra.mxu0 %v109
    %487 = vmatprep.subr.mxu0 %v118
    %488 = vmatpush1.msra.mxu0 %v117
    %489 = vmatprep.subr.mxu0 %v126
    %490 = vmatpush1.msra.mxu0 %v125
    %491 = vmatprep.subr.mxu0 %v134
    %492 = vmatpush1.msra.mxu0 %v133
    %493 = vmatprep.subr.mxu0 %v142
    %494 = vmatpush1.msra.mxu0 %v141
    %495 = vmatprep.subr.mxu0 %v150
    %496 = vmatpush1.msra.mxu0 %v149
    %497 = vmatprep.subr.mxu0 %v158
    %498 = vmatpush1.msra.mxu0 %v157
    %499 = vmatprep.subr.mxu0 %v166
    %500 = vmatpush1.msra.mxu0 %v165
    %501 = vmatprep.subr.mxu0 %v174
    %502 = vmatpush1.msra.mxu0 %v173
    %503 = vmatprep.subr.mxu0 %v182
    %504 = vmatpush1.msra.mxu0 %v181
    %505 = vmatprep.subr.mxu0 %v190
    %506 = vmatpush1.msra.mxu0 %v189
    %507 = vmatprep.subr.mxu0 %v198
    %508 = vmatpush1.msra.mxu0 %v197
    %509 = vmatprep.subr.mxu0 %v206
    %510 = vmatpush1.msra.mxu0 %v205
    %511 = vmatprep.subr.mxu0 %v214
    %512 = vmatpush1.msra.mxu0 %v213
    %513 = vmatprep.subr.mxu0 %v222
    %514 = vmatpush1.msra.mxu0 %v221
    %515 = vmatprep.subr.mxu0 %v230
    %516 = vmatpush1.msra.mxu0 %v229
    %517 = vmatprep.subr.mxu0 %v238
    %518 = vmatpush1.msra.mxu0 %v237
    %519 = vmatprep.subr.mxu0 %v246
    %520 = vmatpush1.msra.mxu0 %v245
    %521 = vmatprep.subr.mxu0 %v254
    %522 = vmatpush1.msra.mxu0 %v253
    %523 = vmatprep.subr.mxu0 %v262
    %524 = vmatpush1.msra.mxu0 %v261
    %525 = vmatprep.subr.mxu0 %v270
    %526 = vmatpush1.msra.mxu0 %v269
    %527 = vmatprep.subr.mxu0 %v278
    %528 = vmatpush1.msra.mxu0 %v277
    %529 = vmatprep.subr.mxu0 %v286
    %530 = vmatpush1.msra.mxu0 %v285
    %531 = vmatprep.subr.mxu0 %v294
    %532 = vmatpush1.msra.mxu0 %v293
    %533 = vmatprep.subr.mxu0 %v302
    %534 = vmatpush1.msra.mxu0 %v301
    %535 = vmatprep.subr.mxu0 %v310
    %536 = vmatpush1.msra.mxu0 %v309
    %537 = vmatprep.subr.mxu0 %v318
    %538 = vmatpush1.msra.mxu0 %v317
    %539 = vmatprep.mubr.f32.mxu0 %v62
    %540 = vmatmul.mubr.f32.gmra.mrb[0].mxu0 %v61
    %v541 = vpop.f32.mrb[0].mxu0
    %v542 = vadd.f32 0.0, %v541
    %v543 = vpop.f32.mrb[0].mxu0
    %v544 = vadd.f32 0.0, %v543
    %545 = vmatprep.mubr.f32.mxu0 %v64
    %546 = vmatmul.mubr.f32.gmra.mrb[0].mxu0 %v63
    %v547 = vpop.f32.mrb[0].mxu0
    %v548 = vadd.f32 0.0, %v547
    %v549 = vpop.f32.mrb[0].mxu0
    %v550 = vadd.f32 0.0, %v549
    %551 = vdwg.mxu0
    %552 = vmatprep.subr.mxu0 %v72
    %553 = vmatpush1.msra.mxu0 %v71
    %554 = vmatprep.subr.mxu0 %v80
    %555 = vmatpush1.msra.mxu0 %v79
    %556 = vmatprep.subr.mxu0 %v88
    %557 = vmatpush1.msra.mxu0 %v87
    %558 = vmatprep.subr.mxu0 %v96
    %559 = vmatpush1.msra.mxu0 %v95
    %560 = vmatprep.subr.mxu0 %v104
    %561 = vmatpush1.msra.mxu0 %v103
    %562 = vmatprep.subr.mxu0 %v112
    %563 = vmatpush1.msra.mxu0 %v111
    %564 = vmatprep.subr.mxu0 %v120
    %565 = vmatpush1.msra.mxu0 %v119
    %566 = vmatprep.subr.mxu0 %v128
    %567 = vmatpush1.msra.mxu0 %v127
    %568 = vmatprep.subr.mxu0 %v136
    %569 = vmatpush1.msra.mxu0 %v135
    %570 = vmatprep.subr.mxu0 %v144
    %571 = vmatpush1.msra.mxu0 %v143
    %572 = vmatprep.subr.mxu0 %v152
    %573 = vmatpush1.msra.mxu0 %v151
    %574 = vmatprep.subr.mxu0 %v160
    %575 = vmatpush1.msra.mxu0 %v159
    %576 = vmatprep.subr.mxu0 %v168
    %577 = vmatpush1.msra.mxu0 %v167
    %578 = vmatprep.subr.mxu0 %v176
    %579 = vmatpush1.msra.mxu0 %v175
    %580 = vmatprep.subr.mxu0 %v184
    %581 = vmatpush1.msra.mxu0 %v183
    %582 = vmatprep.subr.mxu0 %v192
    %583 = vmatpush1.msra.mxu0 %v191
    %584 = vmatprep.subr.mxu0 %v200
    %585 = vmatpush1.msra.mxu0 %v199
    %586 = vmatprep.subr.mxu0 %v208
    %587 = vmatpush1.msra.mxu0 %v207
    %588 = vmatprep.subr.mxu0 %v216
    %589 = vmatpush1.msra.mxu0 %v215
    %590 = vmatprep.subr.mxu0 %v224
    %591 = vmatpush1.msra.mxu0 %v223
    %592 = vmatprep.subr.mxu0 %v232
    %593 = vmatpush1.msra.mxu0 %v231
    %594 = vmatprep.subr.mxu0 %v240
    %595 = vmatpush1.msra.mxu0 %v239
    %596 = vmatprep.subr.mxu0 %v248
    %597 = vmatpush1.msra.mxu0 %v247
    %598 = vmatprep.subr.mxu0 %v256
    %599 = vmatpush1.msra.mxu0 %v255
    %600 = vmatprep.subr.mxu0 %v264
    %601 = vmatpush1.msra.mxu0 %v263
    %602 = vmatprep.subr.mxu0 %v272
    %603 = vmatpush1.msra.mxu0 %v271
    %604 = vmatprep.subr.mxu0 %v280
    %605 = vmatpush1.msra.mxu0 %v279
    %606 = vmatprep.subr.mxu0 %v288
    %607 = vmatpush1.msra.mxu0 %v287
    %608 = vmatprep.subr.mxu0 %v296
    %609 = vmatpush1.msra.mxu0 %v295
    %610 = vmatprep.subr.mxu0 %v304
    %611 = vmatpush1.msra.mxu0 %v303
    %612 = vmatprep.subr.mxu0 %v312
    %613 = vmatpush1.msra.mxu0 %v311
    %614 = vmatprep.subr.mxu0 %v320
    %615 = vmatpush1.msra.mxu0 %v319
    %616 = vmatprep.mubr.f32.mxu0 %v62
    %617 = vmatmul.mubr.f32.gmra.mrb[0].mxu0 %v61
    %v618 = vpop.f32.mrb[0].mxu0
    %v619 = vadd.f32 0.0, %v618
    %v620 = vpop.f32.mrb[0].mxu0
    %v621 = vadd.f32 0.0, %v620
    %622 = vmatprep.mubr.f32.mxu0 %v64
    %623 = vmatmul.mubr.f32.gmra.mrb[0].mxu0 %v63
    %v624 = vpop.f32.mrb[0].mxu0
    %v625 = vadd.f32 0.0, %v624
    %v626 = vpop.f32.mrb[0].mxu0
    %v627 = vadd.f32 0.0, %v626
    %628 = vdwg.mxu0
    %v629 = vadd.f32 %v388, %v390
    %v630 = vadd.f32 %v629, %v465
    %v631 = vadd.f32 %v630, %v467
    %v632 = vadd.f32 %v631, %v542
    %v633 = vadd.f32 %v632, %v544
    %v634 = vadd.f32 %v633, %v619
    %v635 = vadd.f32 %v634, %v621
    %v636 = vadd.f32 %v635, %v394
    %v637 = vadd.f32 %v636, %v396
    %v638 = vadd.f32 %v637, %v471
    %v639 = vadd.f32 %v638, %v473
    %v640 = vadd.f32 %v639, %v548
    %v641 = vadd.f32 %v640, %v550
    %v642 = vadd.f32 %v641, %v625
    %v643 = vadd.f32 %v642, %v627
    %644 = vadd.xlane.f32.xlu0 %v643
    %v645 = vpop.xlane.xlu0 %644
    %v646 = vrcp.pop 2048.0
    %v647 = vmul.f32 %v645, %v646
    %v648 = vsub.f32 %v388, %v647
    %v649 = vsub.f32 %v390, %v647
    %v650 = vsub.f32 %v465, %v647
    %v651 = vsub.f32 %v467, %v647
    %v652 = vsub.f32 %v542, %v647
    %v653 = vsub.f32 %v544, %v647
    %v654 = vsub.f32 %v619, %v647
    %v655 = vsub.f32 %v621, %v647
    %v656 = vsub.f32 %v394, %v647
    %v657 = vsub.f32 %v396, %v647
    %v658 = vsub.f32 %v471, %v647
    %v659 = vsub.f32 %v473, %v647
    %v660 = vsub.f32 %v548, %v647
    %v661 = vsub.f32 %v550, %v647
    %v662 = vsub.f32 %v625, %v647
    %v663 = vsub.f32 %v627, %v647
    %v664 = vmul.f32 %v648, %v648
    %v665 = vmul.f32 %v649, %v649
    %v666 = vmul.f32 %v650, %v650
    %v667 = vmul.f32 %v651, %v651
    %v668 = vmul.f32 %v652, %v652
    %v669 = vmul.f32 %v653, %v653
    %v670 = vmul.f32 %v654, %v654
    %v671 = vmul.f32 %v655, %v655
    %v672 = vmul.f32 %v656, %v656
    %v673 = vmul.f32 %v657, %v657
    %v674 = vmul.f32 %v658, %v658
    %v675 = vmul.f32 %v659, %v659
    %v676 = vmul.f32 %v660, %v660
    %v677 = vmul.f32 %v661, %v661
    %v678 = vmul.f32 %v662, %v662
    %v679 = vmul.f32 %v663, %v663
    %v680 = vadd.f32 %v664, %v665
    %v681 = vadd.f32 %v680, %v666
    %v682 = vadd.f32 %v681, %v667
    %v683 = vadd.f32 %v682, %v668
    %v684 = vadd.f32 %v683, %v669
    %v685 = vadd.f32 %v684, %v670
    %v686 = vadd.f32 %v685, %v671
    %v687 = vadd.f32 %v686, %v672
    %v688 = vadd.f32 %v687, %v673
    %v689 = vadd.f32 %v688, %v674
    %v690 = vadd.f32 %v689, %v675
    %v691 = vadd.f32 %v690, %v676
    %v692 = vadd.f32 %v691, %v677
    %v693 = vadd.f32 %v692, %v678
    %v694 = vadd.f32 %v693, %v679
    %695 = vadd.xlane.f32.xlu0 %v694
    %v696 = vpop.xlane.xlu0 %695
    %v697 = vmul.f32 %v696, %v646
    %v698 = vld [vmem:[%s5] sm:$0xff]
    %v699 = vadd.f32 %v697, 1e-05
    %v700 = vrsqrt.pop %v699
    %v701 = vmul.f32 %v698, %v700
    %703 = vset.pattern.permute.xlu0 0
    %704 = vperm.xlu0 %703, %v701
    %v705 = vpop.permute.xlu0 %704
    %v707 = vmul.f32 %v648, %v705
    %v708 = vmul.f32 %v649, %v705
    %v709 = vmul.f32 %v650, %v705
    %v710 = vmul.f32 %v651, %v705
    %v711 = vmul.f32 %v652, %v705
    %v712 = vmul.f32 %v653, %v705
    %v713 = vmul.f32 %v654, %v705
    %v714 = vmul.f32 %v655, %v705
    %v715 = vmul.f32 %v656, %v705
    %v716 = vmul.f32 %v657, %v705
    %v717 = vmul.f32 %v658, %v705
    %v718 = vmul.f32 %v659, %v705
    %v719 = vmul.f32 %v660, %v705
    %v720 = vmul.f32 %v661, %v705
    %v721 = vmul.f32 %v662, %v705
    %v722 = vmul.f32 %v663, %v705
    %v723 = vld [vmem:[%s6] sm:$0xff]
    %725 = vset.pattern.permute.xlu0 0
    %726 = vperm.xlu0 %725, %v723
    %v727 = vpop.permute.xlu0 %726
    %v729 = vadd.f32 %v707, %v727
    %v730 = vadd.f32 %v708, %v727
    %v731 = vadd.f32 %v709, %v727
    %v732 = vadd.f32 %v710, %v727
    %v733 = vadd.f32 %v711, %v727
    %v734 = vadd.f32 %v712, %v727
    %v735 = vadd.f32 %v713, %v727
    %v736 = vadd.f32 %v714, %v727
    %v737 = vadd.f32 %v715, %v727
    %v738 = vadd.f32 %v716, %v727
    %v739 = vadd.f32 %v717, %v727
    %v740 = vadd.f32 %v718, %v727
    %v741 = vadd.f32 %v719, %v727
    %v742 = vadd.f32 %v720, %v727
    %v743 = vadd.f32 %v721, %v727
    %v744 = vadd.f32 %v722, %v727
    %746 = vrot.lane.b32.xlu0 %v744, 33
    %v747 = vpop.permute.xlu0 %746
    %764 = vrot.lane.b32.xlu0 %v729, 33
    %v765 = vpop.permute.xlu0 %764
    %766 = vrot.lane.b32.xlu0 %v730, 33
    %v767 = vpop.permute.xlu0 %766
    %768 = vrot.lane.b32.xlu0 %v731, 33
    %v769 = vpop.permute.xlu0 %768
    %770 = vrot.lane.b32.xlu0 %v732, 33
    %v771 = vpop.permute.xlu0 %770
    %772 = vrot.lane.b32.xlu0 %v733, 33
    %v773 = vpop.permute.xlu0 %772
    %774 = vrot.lane.b32.xlu0 %v734, 33
    %v775 = vpop.permute.xlu0 %774
    %776 = vrot.lane.b32.xlu0 %v735, 33
    %v777 = vpop.permute.xlu0 %776
    %778 = vrot.lane.b32.xlu0 %v736, 33
    %v779 = vpop.permute.xlu0 %778
    %780 = vrot.lane.b32.xlu0 %v737, 33
    %v781 = vpop.permute.xlu0 %780
    %782 = vrot.lane.b32.xlu0 %v738, 33
    %v783 = vpop.permute.xlu0 %782
    %784 = vrot.lane.b32.xlu0 %v739, 33
    %v785 = vpop.permute.xlu0 %784
    %786 = vrot.lane.b32.xlu0 %v740, 33
    %v787 = vpop.permute.xlu0 %786
    %788 = vrot.lane.b32.xlu0 %v741, 33
    %v789 = vpop.permute.xlu0 %788
    %790 = vrot.lane.b32.xlu0 %v742, 33
    %v791 = vpop.permute.xlu0 %790
    %792 = vrot.lane.b32.xlu0 %v743, 33
    %v793 = vpop.permute.xlu0 %792
    %vm794 = vcmask 269312
    %v795 = vsel %vm794, %v765, %v767
    %v796 = vsel %vm794, %v767, %v769
    %v797 = vsel %vm794, %v769, %v771
    %v798 = vsel %vm794, %v771, %v773
    %v799 = vsel %vm794, %v773, %v775
    %v800 = vsel %vm794, %v775, %v777
    %v801 = vsel %vm794, %v777, %v779
    %v802 = vsel %vm794, %v779, %v781
    %v803 = vsel %vm794, %v781, %v783
    %v804 = vsel %vm794, %v783, %v785
    %v805 = vsel %vm794, %v785, %v787
    %v806 = vsel %vm794, %v787, %v789
    %v807 = vsel %vm794, %v789, %v791
    %v808 = vsel %vm794, %v791, %v793
    %v809 = vsel %vm794, %v793, %v747
    %v826 = vsel %vm794, %v747, %v765
    %v827 = vld [vmem:[#allocation6] ss:$8 sm:$0xf]
    %v828 = vld [vmem:[#allocation6] ss:$8 sm:$0xf0]
    %v829 = vor.u32 %v827, %v828
    %s830 = scalar_lea.vmem [#allocation6], 64
    %v831 = vld [vmem:[%s830] ss:$8 sm:$0xf]
    %v832 = vld [vmem:[%s830] ss:$8 sm:$0xf0]
    %v833 = vor.u32 %v831, %v832
    %v836 = vlaneseq
    %v837 = vshrl.u32 %v836, 7
    %v838 = vsub.s32 0, %v837
    %v839 = vrot.slane %v829, %v838
    %v840 = vlaneseq
    %v841 = vshrl.u32 %v840, 7
    %v842 = vsub.s32 1, %v841
    %v843 = vrot.slane %v829, %v842
    %v844 = vlaneseq
    %v845 = vshrl.u32 %v844, 7
    %v846 = vsub.s32 2, %v845
    %v847 = vrot.slane %v829, %v846
    %v848 = vlaneseq
    %v849 = vshrl.u32 %v848, 7
    %v850 = vsub.s32 3, %v849
    %v851 = vrot.slane %v829, %v850
    %v852 = vlaneseq
    %v853 = vshrl.u32 %v852, 7
    %v854 = vsub.s32 4, %v853
    %v855 = vrot.slane %v829, %v854
    %v856 = vlaneseq
    %v857 = vshrl.u32 %v856, 7
    %v858 = vsub.s32 5, %v857
    %v859 = vrot.slane %v829, %v858
    %v860 = vlaneseq
    %v861 = vshrl.u32 %v860, 7
    %v862 = vsub.s32 6, %v861
    %v863 = vrot.slane %v829, %v862
    %v864 = vlaneseq
    %v865 = vshrl.u32 %v864, 7
    %v866 = vsub.s32 7, %v865
    %v867 = vrot.slane %v829, %v866
    %v868 = vlaneseq
    %v869 = vshrl.u32 %v868, 7
    %v870 = vsub.s32 0, %v869
    %v871 = vrot.slane %v833, %v870
    %v872 = vlaneseq
    %v873 = vshrl.u32 %v872, 7
    %v874 = vsub.s32 1, %v873
    %v875 = vrot.slane %v833, %v874
    %v876 = vlaneseq
    %v877 = vshrl.u32 %v876, 7
    %v878 = vsub.s32 2, %v877
    %v879 = vrot.slane %v833, %v878
    %v880 = vlaneseq
    %v881 = vshrl.u32 %v880, 7
    %v882 = vsub.s32 3, %v881
    %v883 = vrot.slane %v833, %v882
    %v884 = vlaneseq
    %v885 = vshrl.u32 %v884, 7
    %v886 = vsub.s32 4, %v885
    %v887 = vrot.slane %v833, %v886
    %v888 = vlaneseq
    %v889 = vshrl.u32 %v888, 7
    %v890 = vsub.s32 5, %v889
    %v891 = vrot.slane %v833, %v890
    %v892 = vlaneseq
    %v893 = vshrl.u32 %v892, 7
    %v894 = vsub.s32 6, %v893
    %v895 = vrot.slane %v833, %v894
    %v896 = vlaneseq
    %v897 = vshrl.u32 %v896, 7
    %v898 = vsub.s32 7, %v897
    %v899 = vrot.slane %v833, %v898
    %v916 = vmul.f32 %v826, %v839
    %v917 = vmul.f32 %v795, %v843
    %v918 = vmul.f32 %v796, %v847
    %v919 = vmul.f32 %v797, %v851
    %v920 = vmul.f32 %v798, %v855
    %v921 = vmul.f32 %v799, %v859
    %v922 = vmul.f32 %v800, %v863
    %v923 = vmul.f32 %v801, %v867
    %v924 = vmul.f32 %v802, %v871
    %v925 = vmul.f32 %v803, %v875
    %v926 = vmul.f32 %v804, %v879
    %v927 = vmul.f32 %v805, %v883
    %v928 = vmul.f32 %v806, %v887
    %v929 = vmul.f32 %v807, %v891
    %v930 = vmul.f32 %v808, %v895
    %v931 = vmul.f32 %v809, %v899
    %932 = vst [vmem:[#allocation2] sm:$0xff] %v916
    %933 = vst [vmem:[#allocation2 + $0x8] sm:$0xff] %v917
    %934 = vst [vmem:[#allocation2 + $0x10] sm:$0xff] %v918
    %935 = vst [vmem:[#allocation2 + $0x18] sm:$0xff] %v919
    %936 = vst [vmem:[#allocation2 + $0x20] sm:$0xff] %v920
    %937 = vst [vmem:[#allocation2 + $0x28] sm:$0xff] %v921
    %938 = vst [vmem:[#allocation2 + $0x30] sm:$0xff] %v922
    %939 = vst [vmem:[#allocation2 + $0x38] sm:$0xff] %v923
    %940 = vst [vmem:[#allocation2 + $0x40] sm:$0xff] %v924
    %941 = vst [vmem:[#allocation2 + $0x48] sm:$0xff] %v925
    %942 = vst [vmem:[#allocation2 + $0x50] sm:$0xff] %v926
    %943 = vst [vmem:[#allocation2 + $0x58] sm:$0xff] %v927
    %944 = vst [vmem:[#allocation2 + $0x60] sm:$0xff] %v928
    %945 = vst [vmem:[#allocation2 + $0x68] sm:$0xff] %v929
    %946 = vst [vmem:[#allocation2 + $0x70] sm:$0xff] %v930
    %947 = vst [vmem:[#allocation2 + $0x78] sm:$0xff] %v931
    %948 = vrot.lane.b32.xlu0 %v744, 32
    %v949 = vpop.permute.xlu0 %948
    %951 = vrot.lane.b32.xlu0 %v729, 32
    %v952 = vpop.permute.xlu0 %951
    %953 = vrot.lane.b32.xlu0 %v730, 32
    %v954 = vpop.permute.xlu0 %953
    %955 = vrot.lane.b32.xlu0 %v731, 32
    %v956 = vpop.permute.xlu0 %955
    %957 = vrot.lane.b32.xlu0 %v732, 32
    %v958 = vpop.permute.xlu0 %957
    %959 = vrot.lane.b32.xlu0 %v733, 32
    %v960 = vpop.permute.xlu0 %959
    %961 = vrot.lane.b32.xlu0 %v734, 32
    %v962 = vpop.permute.xlu0 %961
    %963 = vrot.lane.b32.xlu0 %v735, 32
    %v964 = vpop.permute.xlu0 %963
    %965 = vrot.lane.b32.xlu0 %v736, 32
    %v966 = vpop.permute.xlu0 %965
    %967 = vrot.lane.b32.xlu0 %v737, 32
    %v968 = vpop.permute.xlu0 %967
    %969 = vrot.lane.b32.xlu0 %v738, 32
    %v970 = vpop.permute.xlu0 %969
    %971 = vrot.lane.b32.xlu0 %v739, 32
    %v972 = vpop.permute.xlu0 %971
    %973 = vrot.lane.b32.xlu0 %v740, 32
    %v974 = vpop.permute.xlu0 %973
    %975 = vrot.lane.b32.xlu0 %v741, 32
    %v976 = vpop.permute.xlu0 %975
    %977 = vrot.lane.b32.xlu0 %v742, 32
    %v978 = vpop.permute.xlu0 %977
    %979 = vrot.lane.b32.xlu0 %v743, 32
    %v980 = vpop.permute.xlu0 %979
    %vm981 = vcmask 261120
    %v982 = vsel %vm981, %v952, %v954
    %v983 = vsel %vm981, %v954, %v956
    %v984 = vsel %vm981, %v956, %v958
    %v985 = vsel %vm981, %v958, %v960
    %v986 = vsel %vm981, %v960, %v962
    %v987 = vsel %vm981, %v962, %v964
    %v988 = vsel %vm981, %v964, %v966
    %v989 = vsel %vm981, %v966, %v968
    %v990 = vsel %vm981, %v968, %v970
    %v991 = vsel %vm981, %v970, %v972
    %v992 = vsel %vm981, %v972, %v974
    %v993 = vsel %vm981, %v974, %v976
    %v994 = vsel %vm981, %v976, %v978
    %v995 = vsel %vm981, %v978, %v980
    %v996 = vsel %vm981, %v980, %v949
    %v1013 = vsel %vm981, %v949, %v952
    %s1014 = scalar_lea.vmem [#allocation6], 1
    %v1015 = vld [vmem:[%s1014] ss:$8 sm:$0xf]
    %v1016 = vld [vmem:[%s1014] ss:$8 sm:$0xf0]
    %v1017 = vor.u32 %v1015, %v1016
    %s1018 = scalar_lea.vmem [#allocation6], 65
    %v1019 = vld [vmem:[%s1018] ss:$8 sm:$0xf]
    %v1020 = vld [vmem:[%s1018] ss:$8 sm:$0xf0]
    %v1021 = vor.u32 %v1019, %v1020
    %v1024 = vlaneseq
    %v1025 = vshrl.u32 %v1024, 7
    %v1026 = vsub.s32 0, %v1025
    %v1027 = vrot.slane %v1017, %v1026
    %v1028 = vlaneseq
    %v1029 = vshrl.u32 %v1028, 7
    %v1030 = vsub.s32 1, %v1029
    %v1031 = vrot.slane %v1017, %v1030
    %v1032 = vlaneseq
    %v1033 = vshrl.u32 %v1032, 7
    %v1034 = vsub.s32 2, %v1033
    %v1035 = vrot.slane %v1017, %v1034
    %v1036 = vlaneseq
    %v1037 = vshrl.u32 %v1036, 7
    %v1038 = vsub.s32 3, %v1037
    %v1039 = vrot.slane %v1017, %v1038
    %v1040 = vlaneseq
    %v1041 = vshrl.u32 %v1040, 7
    %v1042 = vsub.s32 4, %v1041
    %v1043 = vrot.slane %v1017, %v1042
    %v1044 = vlaneseq
    %v1045 = vshrl.u32 %v1044, 7
    %v1046 = vsub.s32 5, %v1045
    %v1047 = vrot.slane %v1017, %v1046
    %v1048 = vlaneseq
    %v1049 = vshrl.u32 %v1048, 7
    %v1050 = vsub.s32 6, %v1049
    %v1051 = vrot.slane %v1017, %v1050
    %v1052 = vlaneseq
    %v1053 = vshrl.u32 %v1052, 7
    %v1054 = vsub.s32 7, %v1053
    %v1055 = vrot.slane %v1017, %v1054
    %v1056 = vlaneseq
    %v1057 = vshrl.u32 %v1056, 7
    %v1058 = vsub.s32 0, %v1057
    %v1059 = vrot.slane %v1021, %v1058
    %v1060 = vlaneseq
    %v1061 = vshrl.u32 %v1060, 7
    %v1062 = vsub.s32 1, %v1061
    %v1063 = vrot.slane %v1021, %v1062
    %v1064 = vlaneseq
    %v1065 = vshrl.u32 %v1064, 7
    %v1066 = vsub.s32 2, %v1065
    %v1067 = vrot.slane %v1021, %v1066
    %v1068 = vlaneseq
    %v1069 = vshrl.u32 %v1068, 7
    %v1070 = vsub.s32 3, %v1069
    %v1071 = vrot.slane %v1021, %v1070
    %v1072 = vlaneseq
    %v1073 = vshrl.u32 %v1072, 7
    %v1074 = vsub.s32 4, %v1073
    %v1075 = vrot.slane %v1021, %v1074
    %v1076 = vlaneseq
    %v1077 = vshrl.u32 %v1076, 7
    %v1078 = vsub.s32 5, %v1077
    %v1079 = vrot.slane %v1021, %v1078
    %v1080 = vlaneseq
    %v1081 = vshrl.u32 %v1080, 7
    %v1082 = vsub.s32 6, %v1081
    %v1083 = vrot.slane %v1021, %v1082
    %v1084 = vlaneseq
    %v1085 = vshrl.u32 %v1084, 7
    %v1086 = vsub.s32 7, %v1085
    %v1087 = vrot.slane %v1021, %v1086
    %v1104 = vmul.f32 %v1013, %v1027
    %v1105 = vmul.f32 %v982, %v1031
    %v1106 = vmul.f32 %v983, %v1035
    %v1107 = vmul.f32 %v984, %v1039
    %v1108 = vmul.f32 %v985, %v1043
    %v1109 = vmul.f32 %v986, %v1047
    %v1110 = vmul.f32 %v987, %v1051
    %v1111 = vmul.f32 %v988, %v1055
    %v1112 = vmul.f32 %v989, %v1059
    %v1113 = vmul.f32 %v990, %v1063
    %v1114 = vmul.f32 %v991, %v1067
    %v1115 = vmul.f32 %v992, %v1071
    %v1116 = vmul.f32 %v993, %v1075
    %v1117 = vmul.f32 %v994, %v1079
    %v1118 = vmul.f32 %v995, %v1083
    %v1119 = vmul.f32 %v996, %v1087
    %1120 = vst [vmem:[#allocation2 + $0x80] sm:$0xff] %v1104
    %1121 = vst [vmem:[#allocation2 + $0x88] sm:$0xff] %v1105
    %1122 = vst [vmem:[#allocation2 + $0x90] sm:$0xff] %v1106
    %1123 = vst [vmem:[#allocation2 + $0x98] sm:$0xff] %v1107
    %1124 = vst [vmem:[#allocation2 + $0xa0] sm:$0xff] %v1108
    %1125 = vst [vmem:[#allocation2 + $0xa8] sm:$0xff] %v1109
    %1126 = vst [vmem:[#allocation2 + $0xb0] sm:$0xff] %v1110
    %1127 = vst [vmem:[#allocation2 + $0xb8] sm:$0xff] %v1111
    %1128 = vst [vmem:[#allocation2 + $0xc0] sm:$0xff] %v1112
    %1129 = vst [vmem:[#allocation2 + $0xc8] sm:$0xff] %v1113
    %1130 = vst [vmem:[#allocation2 + $0xd0] sm:$0xff] %v1114
    %1131 = vst [vmem:[#allocation2 + $0xd8] sm:$0xff] %v1115
    %1132 = vst [vmem:[#allocation2 + $0xe0] sm:$0xff] %v1116
    %1133 = vst [vmem:[#allocation2 + $0xe8] sm:$0xff] %v1117
    %1134 = vst [vmem:[#allocation2 + $0xf0] sm:$0xff] %v1118
    %1135 = vst [vmem:[#allocation2 + $0xf8] sm:$0xff] %v1119
    %1136 = vrot.lane.b32.xlu0 %v744, 31
    %v1137 = vpop.permute.xlu0 %1136
    %1139 = vrot.lane.b32.xlu0 %v729, 31
    %v1140 = vpop.permute.xlu0 %1139
    %1141 = vrot.lane.b32.xlu0 %v730, 31
    %v1142 = vpop.permute.xlu0 %1141
    %1143 = vrot.lane.b32.xlu0 %v731, 31
    %v1144 = vpop.permute.xlu0 %1143
    %1145 = vrot.lane.b32.xlu0 %v732, 31
    %v1146 = vpop.permute.xlu0 %1145
    %1147 = vrot.lane.b32.xlu0 %v733, 31
    %v1148 = vpop.permute.xlu0 %1147
    %1149 = vrot.lane.b32.xlu0 %v734, 31
    %v1150 = vpop.permute.xlu0 %1149
    %1151 = vrot.lane.b32.xlu0 %v735, 31
    %v1152 = vpop.permute.xlu0 %1151
    %1153 = vrot.lane.b32.xlu0 %v736, 31
    %v1154 = vpop.permute.xlu0 %1153
    %1155 = vrot.lane.b32.xlu0 %v737, 31
    %v1156 = vpop.permute.xlu0 %1155
    %1157 = vrot.lane.b32.xlu0 %v738, 31
    %v1158 = vpop.permute.xlu0 %1157
    %1159 = vrot.lane.b32.xlu0 %v739, 31
    %v1160 = vpop.permute.xlu0 %1159
    %1161 = vrot.lane.b32.xlu0 %v740, 31
    %v1162 = vpop.permute.xlu0 %1161
    %1163 = vrot.lane.b32.xlu0 %v741, 31
    %v1164 = vpop.permute.xlu0 %1163
    %1165 = vrot.lane.b32.xlu0 %v742, 31
    %v1166 = vpop.permute.xlu0 %1165
    %1167 = vrot.lane.b32.xlu0 %v743, 31
    %v1168 = vpop.permute.xlu0 %1167
    %vm1169 = vcmask 252928
    %v1170 = vsel %vm1169, %v1140, %v1142
    %v1171 = vsel %vm1169, %v1142, %v1144
    %v1172 = vsel %vm1169, %v1144, %v1146
    %v1173 = vsel %vm1169, %v1146, %v1148
    %v1174 = vsel %vm1169, %v1148, %v1150
    %v1175 = vsel %vm1169, %v1150, %v1152
    %v1176 = vsel %vm1169, %v1152, %v1154
    %v1177 = vsel %vm1169, %v1154, %v1156
    %v1178 = vsel %vm1169, %v1156, %v1158
    %v1179 = vsel %vm1169, %v1158, %v1160
    %v1180 = vsel %vm1169, %v1160, %v1162
    %v1181 = vsel %vm1169, %v1162, %v1164
    %v1182 = vsel %vm1169, %v1164, %v1166
    %v1183 = vsel %vm1169, %v1166, %v1168
    %v1184 = vsel %vm1169, %v1168, %v1137
    %v1201 = vsel %vm1169, %v1137, %v1140
    %s1202 = scalar_lea.vmem [#allocation6], 2
    %v1203 = vld [vmem:[%s1202] ss:$8 sm:$0xf]
    %v1204 = vld [vmem:[%s1202] ss:$8 sm:$0xf0]
    %v1205 = vor.u32 %v1203, %v1204
    %s1206 = scalar_lea.vmem [#allocation6], 66
    %v1207 = vld [vmem:[%s1206] ss:$8 sm:$0xf]
    %v1208 = vld [vmem:[%s1206] ss:$8 sm:$0xf0]
    %v1209 = vor.u32 %v1207, %v1208
    %v1212 = vlaneseq
    %v1213 = vshrl.u32 %v1212, 7
    %v1214 = vsub.s32 0, %v1213
    %v1215 = vrot.slane %v1205, %v1214
    %v1216 = vlaneseq
    %v1217 = vshrl.u32 %v1216, 7
    %v1218 = vsub.s32 1, %v1217
    %v1219 = vrot.slane %v1205, %v1218
    %v1220 = vlaneseq
    %v1221 = vshrl.u32 %v1220, 7
    %v1222 = vsub.s32 2, %v1221
    %v1223 = vrot.slane %v1205, %v1222
    %v1224 = vlaneseq
    %v1225 = vshrl.u32 %v1224, 7
    %v1226 = vsub.s32 3, %v1225
    %v1227 = vrot.slane %v1205, %v1226
    %v1228 = vlaneseq
    %v1229 = vshrl.u32 %v1228, 7
    %v1230 = vsub.s32 4, %v1229
    %v1231 = vrot.slane %v1205, %v1230
    %v1232 = vlaneseq
    %v1233 = vshrl.u32 %v1232, 7
    %v1234 = vsub.s32 5, %v1233
    %v1235 = vrot.slane %v1205, %v1234
    %v1236 = vlaneseq
    %v1237 = vshrl.u32 %v1236, 7
    %v1238 = vsub.s32 6, %v1237
    %v1239 = vrot.slane %v1205, %v1238
    %v1240 = vlaneseq
    %v1241 = vshrl.u32 %v1240, 7
    %v1242 = vsub.s32 7, %v1241
    %v1243 = vrot.slane %v1205, %v1242
    %v1244 = vlaneseq
    %v1245 = vshrl.u32 %v1244, 7
    %v1246 = vsub.s32 0, %v1245
    %v1247 = vrot.slane %v1209, %v1246
    %v1248 = vlaneseq
    %v1249 = vshrl.u32 %v1248, 7
    %v1250 = vsub.s32 1, %v1249
    %v1251 = vrot.slane %v1209, %v1250
    %v1252 = vlaneseq
    %v1253 = vshrl.u32 %v1252, 7
    %v1254 = vsub.s32 2, %v1253
    %v1255 = vrot.slane %v1209, %v1254
    %v1256 = vlaneseq
    %v1257 = vshrl.u32 %v1256, 7
    %v1258 = vsub.s32 3, %v1257
    %v1259 = vrot.slane %v1209, %v1258
    %v1260 = vlaneseq
    %v1261 = vshrl.u32 %v1260, 7
    %v1262 = vsub.s32 4, %v1261
    %v1263 = vrot.slane %v1209, %v1262
    %v1264 = vlaneseq
    %v1265 = vshrl.u32 %v1264, 7
    %v1266 = vsub.s32 5, %v1265
    %v1267 = vrot.slane %v1209, %v1266
    %v1268 = vlaneseq
    %v1269 = vshrl.u32 %v1268, 7
    %v1270 = vsub.s32 6, %v1269
    %v1271 = vrot.slane %v1209, %v1270
    %v1272 = vlaneseq
    %v1273 = vshrl.u32 %v1272, 7
    %v1274 = vsub.s32 7, %v1273
    %v1275 = vrot.slane %v1209, %v1274
    %v1292 = vmul.f32 %v1201, %v1215
    %v1293 = vmul.f32 %v1170, %v1219
    %v1294 = vmul.f32 %v1171, %v1223
    %v1295 = vmul.f32 %v1172, %v1227
    %v1296 = vmul.f32 %v1173, %v1231
    %v1297 = vmul.f32 %v1174, %v1235
    %v1298 = vmul.f32 %v1175, %v1239
    %v1299 = vmul.f32 %v1176, %v1243
    %v1300 = vmul.f32 %v1177, %v1247
    %v1301 = vmul.f32 %v1178, %v1251
    %v1302 = vmul.f32 %v1179, %v1255
    %v1303 = vmul.f32 %v1180, %v1259
    %v1304 = vmul.f32 %v1181, %v1263
    %v1305 = vmul.f32 %v1182, %v1267
    %v1306 = vmul.f32 %v1183, %v1271
    %v1307 = vmul.f32 %v1184, %v1275
    %1308 = vst [vmem:[#allocation2 + $0x100] sm:$0xff] %v1292
    %1309 = vst [vmem:[#allocation2 + $0x108] sm:$0xff] %v1293
    %1310 = vst [vmem:[#allocation2 + $0x110] sm:$0xff] %v1294
    %1311 = vst [vmem:[#allocation2 + $0x118] sm:$0xff] %v1295
    %1312 = vst [vmem:[#allocation2 + $0x120] sm:$0xff] %v1296
    %1313 = vst [vmem:[#allocation2 + $0x128] sm:$0xff] %v1297
    %1314 = vst [vmem:[#allocation2 + $0x130] sm:$0xff] %v1298
    %1315 = vst [vmem:[#allocation2 + $0x138] sm:$0xff] %v1299
    %1316 = vst [vmem:[#allocation2 + $0x140] sm:$0xff] %v1300
    %1317 = vst [vmem:[#allocation2 + $0x148] sm:$0xff] %v1301
    %1318 = vst [vmem:[#allocation2 + $0x150] sm:$0xff] %v1302
    %1319 = vst [vmem:[#allocation2 + $0x158] sm:$0xff] %v1303
    %1320 = vst [vmem:[#allocation2 + $0x160] sm:$0xff] %v1304
    %1321 = vst [vmem:[#allocation2 + $0x168] sm:$0xff] %v1305
    %1322 = vst [vmem:[#allocation2 + $0x170] sm:$0xff] %v1306
    %1323 = vst [vmem:[#allocation2 + $0x178] sm:$0xff] %v1307
    %1324 = vrot.lane.b32.xlu0 %v744, 1
    %v1325 = vpop.permute.xlu0 %1324
    %1327 = vrot.lane.b32.xlu0 %v729, 1
    %v1328 = vpop.permute.xlu0 %1327
    %1329 = vrot.lane.b32.xlu0 %v730, 1
    %v1330 = vpop.permute.xlu0 %1329
    %1331 = vrot.lane.b32.xlu0 %v731, 1
    %v1332 = vpop.permute.xlu0 %1331
    %1333 = vrot.lane.b32.xlu0 %v732, 1
    %v1334 = vpop.permute.xlu0 %1333
    %1335 = vrot.lane.b32.xlu0 %v733, 1
    %v1336 = vpop.permute.xlu0 %1335
    %1337 = vrot.lane.b32.xlu0 %v734, 1
    %v1338 = vpop.permute.xlu0 %1337
    %1339 = vrot.lane.b32.xlu0 %v735, 1
    %v1340 = vpop.permute.xlu0 %1339
    %1341 = vrot.lane.b32.xlu0 %v736, 1
    %v1342 = vpop.permute.xlu0 %1341
    %1343 = vrot.lane.b32.xlu0 %v737, 1
    %v1344 = vpop.permute.xlu0 %1343
    %1345 = vrot.lane.b32.xlu0 %v738, 1
    %v1346 = vpop.permute.xlu0 %1345
    %1347 = vrot.lane.b32.xlu0 %v739, 1
    %v1348 = vpop.permute.xlu0 %1347
    %1349 = vrot.lane.b32.xlu0 %v740, 1
    %v1350 = vpop.permute.xlu0 %1349
    %1351 = vrot.lane.b32.xlu0 %v741, 1
    %v1352 = vpop.permute.xlu0 %1351
    %1353 = vrot.lane.b32.xlu0 %v742, 1
    %v1354 = vpop.permute.xlu0 %1353
    %1355 = vrot.lane.b32.xlu0 %v743, 1
    %v1356 = vpop.permute.xlu0 %1355
    %vm1357 = vcmask 7168
    %v1358 = vsel %vm1357, %v1328, %v1330
    %v1359 = vsel %vm1357, %v1330, %v1332
    %v1360 = vsel %vm1357, %v1332, %v1334
    %v1361 = vsel %vm1357, %v1334, %v1336
    %v1362 = vsel %vm1357, %v1336, %v1338
    %v1363 = vsel %vm1357, %v1338, %v1340
    %v1364 = vsel %vm1357, %v1340, %v1342
    %v1365 = vsel %vm1357, %v1342, %v1344
    %v1366 = vsel %vm1357, %v1344, %v1346
    %v1367 = vsel %vm1357, %v1346, %v1348
    %v1368 = vsel %vm1357, %v1348, %v1350
    %v1369 = vsel %vm1357, %v1350, %v1352
    %v1370 = vsel %vm1357, %v1352, %v1354
    %v1371 = vsel %vm1357, %v1354, %v1356
    %v1372 = vsel %vm1357, %v1356, %v1325
    %v1389 = vsel %vm1357, %v1325, %v1328
    %s1390 = scalar_lea.vmem [#allocation6], 3
    %v1391 = vld [vmem:[%s1390] ss:$8 sm:$0xf]
    %v1392 = vld [vmem:[%s1390] ss:$8 sm:$0xf0]
    %v1393 = vor.u32 %v1391, %v1392
    %s1394 = scalar_lea.vmem [#allocation6], 67
    %v1395 = vld [vmem:[%s1394] ss:$8 sm:$0xf]
    %v1396 = vld [vmem:[%s1394] ss:$8 sm:$0xf0]
    %v1397 = vor.u32 %v1395, %v1396
    %v1400 = vlaneseq
    %v1401 = vshrl.u32 %v1400, 7
    %v1402 = vsub.s32 0, %v1401
    %v1403 = vrot.slane %v1393, %v1402
    %v1404 = vlaneseq
    %v1405 = vshrl.u32 %v1404, 7
    %v1406 = vsub.s32 1, %v1405
    %v1407 = vrot.slane %v1393, %v1406
    %v1408 = vlaneseq
    %v1409 = vshrl.u32 %v1408, 7
    %v1410 = vsub.s32 2, %v1409
    %v1411 = vrot.slane %v1393, %v1410
    %v1412 = vlaneseq
    %v1413 = vshrl.u32 %v1412, 7
    %v1414 = vsub.s32 3, %v1413
    %v1415 = vrot.slane %v1393, %v1414
    %v1416 = vlaneseq
    %v1417 = vshrl.u32 %v1416, 7
    %v1418 = vsub.s32 4, %v1417
    %v1419 = vrot.slane %v1393, %v1418
    %v1420 = vlaneseq
    %v1421 = vshrl.u32 %v1420, 7
    %v1422 = vsub.s32 5, %v1421
    %v1423 = vrot.slane %v1393, %v1422
    %v1424 = vlaneseq
    %v1425 = vshrl.u32 %v1424, 7
    %v1426 = vsub.s32 6, %v1425
    %v1427 = vrot.slane %v1393, %v1426
    %v1428 = vlaneseq
    %v1429 = vshrl.u32 %v1428, 7
    %v1430 = vsub.s32 7, %v1429
    %v1431 = vrot.slane %v1393, %v1430
    %v1432 = vlaneseq
    %v1433 = vshrl.u32 %v1432, 7
    %v1434 = vsub.s32 0, %v1433
    %v1435 = vrot.slane %v1397, %v1434
    %v1436 = vlaneseq
    %v1437 = vshrl.u32 %v1436, 7
    %v1438 = vsub.s32 1, %v1437
    %v1439 = vrot.slane %v1397, %v1438
    %v1440 = vlaneseq
    %v1441 = vshrl.u32 %v1440, 7
    %v1442 = vsub.s32 2, %v1441
    %v1443 = vrot.slane %v1397, %v1442
    %v1444 = vlaneseq
    %v1445 = vshrl.u32 %v1444, 7
    %v1446 = vsub.s32 3, %v1445
    %v1447 = vrot.slane %v1397, %v1446
    %v1448 = vlaneseq
    %v1449 = vshrl.u32 %v1448, 7
    %v1450 = vsub.s32 4, %v1449
    %v1451 = vrot.slane %v1397, %v1450
    %v1452 = vlaneseq
    %v1453 = vshrl.u32 %v1452, 7
    %v1454 = vsub.s32 5, %v1453
    %v1455 = vrot.slane %v1397, %v1454
    %v1456 = vlaneseq
    %v1457 = vshrl.u32 %v1456, 7
    %v1458 = vsub.s32 6, %v1457
    %v1459 = vrot.slane %v1397, %v1458
    %v1460 = vlaneseq
    %v1461 = vshrl.u32 %v1460, 7
    %v1462 = vsub.s32 7, %v1461
    %v1463 = vrot.slane %v1397, %v1462
    %v1480 = vmul.f32 %v1389, %v1403
    %v1481 = vmul.f32 %v1358, %v1407
    %v1482 = vmul.f32 %v1359, %v1411
    %v1483 = vmul.f32 %v1360, %v1415
    %v1484 = vmul.f32 %v1361, %v1419
    %v1485 = vmul.f32 %v1362, %v1423
    %v1486 = vmul.f32 %v1363, %v1427
    %v1487 = vmul.f32 %v1364, %v1431
    %v1488 = vmul.f32 %v1365, %v1435
    %v1489 = vmul.f32 %v1366, %v1439
    %v1490 = vmul.f32 %v1367, %v1443
    %v1491 = vmul.f32 %v1368, %v1447
    %v1492 = vmul.f32 %v1369, %v1451
    %v1493 = vmul.f32 %v1370, %v1455
    %v1494 = vmul.f32 %v1371, %v1459
    %v1495 = vmul.f32 %v1372, %v1463
    %1496 = vst [vmem:[#allocation2 + $0x180] sm:$0xff] %v1480
    %1497 = vst [vmem:[#allocation2 + $0x188] sm:$0xff] %v1481
    %1498 = vst [vmem:[#allocation2 + $0x190] sm:$0xff] %v1482
    %1499 = vst [vmem:[#allocation2 + $0x198] sm:$0xff] %v1483
    %1500 = vst [vmem:[#allocation2 + $0x1a0] sm:$0xff] %v1484
    %1501 = vst [vmem:[#allocation2 + $0x1a8] sm:$0xff] %v1485
    %1502 = vst [vmem:[#allocation2 + $0x1b0] sm:$0xff] %v1486
    %1503 = vst [vmem:[#allocation2 + $0x1b8] sm:$0xff] %v1487
    %1504 = vst [vmem:[#allocation2 + $0x1c0] sm:$0xff] %v1488
    %1505 = vst [vmem:[#allocation2 + $0x1c8] sm:$0xff] %v1489
    %1506 = vst [vmem:[#allocation2 + $0x1d0] sm:$0xff] %v1490
    %1507 = vst [vmem:[#allocation2 + $0x1d8] sm:$0xff] %v1491
    %1508 = vst [vmem:[#allocation2 + $0x1e0] sm:$0xff] %v1492
    %1509 = vst [vmem:[#allocation2 + $0x1e8] sm:$0xff] %v1493
    %1510 = vst [vmem:[#allocation2 + $0x1f0] sm:$0xff] %v1494
    %1511 = vst [vmem:[#allocation2 + $0x1f8] sm:$0xff] %v1495
    %1512 = vst [vmem:[#allocation2 + $0x200] sm:$0xff] %v729
    %1513 = vst [vmem:[#allocation2 + $0x208] sm:$0xff] %v730
    %1514 = vst [vmem:[#allocation2 + $0x210] sm:$0xff] %v731
    %1515 = vst [vmem:[#allocation2 + $0x218] sm:$0xff] %v732
    %1516 = vst [vmem:[#allocation2 + $0x220] sm:$0xff] %v733
    %1517 = vst [vmem:[#allocation2 + $0x228] sm:$0xff] %v734
    %1518 = vst [vmem:[#allocation2 + $0x230] sm:$0xff] %v735
    %1519 = vst [vmem:[#allocation2 + $0x238] sm:$0xff] %v736
    %1520 = vst [vmem:[#allocation2 + $0x240] sm:$0xff] %v737
    %1521 = vst [vmem:[#allocation2 + $0x248] sm:$0xff] %v738
    %1522 = vst [vmem:[#allocation2 + $0x250] sm:$0xff] %v739
    %1523 = vst [vmem:[#allocation2 + $0x258] sm:$0xff] %v740
    %1524 = vst [vmem:[#allocation2 + $0x260] sm:$0xff] %v741
    %1525 = vst [vmem:[#allocation2 + $0x268] sm:$0xff] %v742
    %1526 = vst [vmem:[#allocation2 + $0x270] sm:$0xff] %v743
    %1527 = vst [vmem:[#allocation2 + $0x278] sm:$0xff] %v744
    %1528 = vrot.lane.b32.xlu0 %v729, 127
    %v1529 = vpop.permute.xlu0 %1528
    %1530 = vrot.lane.b32.xlu0 %v730, 127
    %v1531 = vpop.permute.xlu0 %1530
    %1532 = vrot.lane.b32.xlu0 %v731, 127
    %v1533 = vpop.permute.xlu0 %1532
    %1534 = vrot.lane.b32.xlu0 %v732, 127
    %v1535 = vpop.permute.xlu0 %1534
    %1536 = vrot.lane.b32.xlu0 %v733, 127
    %v1537 = vpop.permute.xlu0 %1536
    %1538 = vrot.lane.b32.xlu0 %v734, 127
    %v1539 = vpop.permute.xlu0 %1538
    %1540 = vrot.lane.b32.xlu0 %v735, 127
    %v1541 = vpop.permute.xlu0 %1540
    %1542 = vrot.lane.b32.xlu0 %v736, 127
    %v1543 = vpop.permute.xlu0 %1542
    %1544 = vrot.lane.b32.xlu0 %v737, 127
    %v1545 = vpop.permute.xlu0 %1544
    %1546 = vrot.lane.b32.xlu0 %v738, 127
    %v1547 = vpop.permute.xlu0 %1546
    %1548 = vrot.lane.b32.xlu0 %v739, 127
    %v1549 = vpop.permute.xlu0 %1548
    %1550 = vrot.lane.b32.xlu0 %v740, 127
    %v1551 = vpop.permute.xlu0 %1550
    %1552 = vrot.lane.b32.xlu0 %v741, 127
    %v1553 = vpop.permute.xlu0 %1552
    %1554 = vrot.lane.b32.xlu0 %v742, 127
    %v1555 = vpop.permute.xlu0 %1554
    %1556 = vrot.lane.b32.xlu0 %v743, 127
    %v1557 = vpop.permute.xlu0 %1556
    %1558 = vrot.lane.b32.xlu0 %v744, 127
    %v1559 = vpop.permute.xlu0 %1558
    %vm1560 = vcmask 1039360
    %v1561 = vsel %vm1560, %v1529, %v1531
    %v1562 = vsel %vm1560, %v1531, %v1533
    %v1563 = vsel %vm1560, %v1533, %v1535
    %v1564 = vsel %vm1560, %v1535, %v1537
    %v1565 = vsel %vm1560, %v1537, %v1539
    %v1566 = vsel %vm1560, %v1539, %v1541
    %v1567 = vsel %vm1560, %v1541, %v1543
    %v1568 = vsel %vm1560, %v1543, %v1545
    %v1569 = vsel %vm1560, %v1545, %v1547
    %v1570 = vsel %vm1560, %v1547, %v1549
    %v1571 = vsel %vm1560, %v1549, %v1551
    %v1572 = vsel %vm1560, %v1551, %v1553
    %v1573 = vsel %vm1560, %v1553, %v1555
    %v1574 = vsel %vm1560, %v1555, %v1557
    %v1575 = vsel %vm1560, %v1557, %v1559
    %v1593 = vsel %vm1560, %v1559, %v1529
    %s1594 = scalar_lea.vmem [#allocation6], 5
    %v1595 = vld [vmem:[%s1594] ss:$8 sm:$0xf]
    %v1596 = vld [vmem:[%s1594] ss:$8 sm:$0xf0]
    %v1597 = vor.u32 %v1595, %v1596
    %s1598 = scalar_lea.vmem [#allocation6], 69
    %v1599 = vld [vmem:[%s1598] ss:$8 sm:$0xf]
    %v1600 = vld [vmem:[%s1598] ss:$8 sm:$0xf0]
    %v1601 = vor.u32 %v1599, %v1600
    %v1604 = vlaneseq
    %v1605 = vshrl.u32 %v1604, 7
    %v1606 = vsub.s32 0, %v1605
    %v1607 = vrot.slane %v1597, %v1606
    %v1608 = vlaneseq
    %v1609 = vshrl.u32 %v1608, 7
    %v1610 = vsub.s32 1, %v1609
    %v1611 = vrot.slane %v1597, %v1610
    %v1612 = vlaneseq
    %v1613 = vshrl.u32 %v1612, 7
    %v1614 = vsub.s32 2, %v1613
    %v1615 = vrot.slane %v1597, %v1614
    %v1616 = vlaneseq
    %v1617 = vshrl.u32 %v1616, 7
    %v1618 = vsub.s32 3, %v1617
    %v1619 = vrot.slane %v1597, %v1618
    %v1620 = vlaneseq
    %v1621 = vshrl.u32 %v1620, 7
    %v1622 = vsub.s32 4, %v1621
    %v1623 = vrot.slane %v1597, %v1622
    %v1624 = vlaneseq
    %v1625 = vshrl.u32 %v1624, 7
    %v1626 = vsub.s32 5, %v1625
    %v1627 = vrot.slane %v1597, %v1626
    %v1628 = vlaneseq
    %v1629 = vshrl.u32 %v1628, 7
    %v1630 = vsub.s32 6, %v1629
    %v1631 = vrot.slane %v1597, %v1630
    %v1632 = vlaneseq
    %v1633 = vshrl.u32 %v1632, 7
    %v1634 = vsub.s32 7, %v1633
    %v1635 = vrot.slane %v1597, %v1634
    %v1636 = vlaneseq
    %v1637 = vshrl.u32 %v1636, 7
    %v1638 = vsub.s32 0, %v1637
    %v1639 = vrot.slane %v1601, %v1638
    %v1640 = vlaneseq
    %v1641 = vshrl.u32 %v1640, 7
    %v1642 = vsub.s32 1, %v1641
    %v1643 = vrot.slane %v1601, %v1642
    %v1644 = vlaneseq
    %v1645 = vshrl.u32 %v1644, 7
    %v1646 = vsub.s32 2, %v1645
    %v1647 = vrot.slane %v1601, %v1646
    %v1648 = vlaneseq
    %v1649 = vshrl.u32 %v1648, 7
    %v1650 = vsub.s32 3, %v1649
    %v1651 = vrot.slane %v1601, %v1650
    %v1652 = vlaneseq
    %v1653 = vshrl.u32 %v1652, 7
    %v1654 = vsub.s32 4, %v1653
    %v1655 = vrot.slane %v1601, %v1654
    %v1656 = vlaneseq
    %v1657 = vshrl.u32 %v1656, 7
    %v1658 = vsub.s32 5, %v1657
    %v1659 = vrot.slane %v1601, %v1658
    %v1660 = vlaneseq
    %v1661 = vshrl.u32 %v1660, 7
    %v1662 = vsub.s32 6, %v1661
    %v1663 = vrot.slane %v1601, %v1662
    %v1664 = vlaneseq
    %v1665 = vshrl.u32 %v1664, 7
    %v1666 = vsub.s32 7, %v1665
    %v1667 = vrot.slane %v1601, %v1666
    %v1684 = vmul.f32 %v1561, %v1607
    %v1685 = vmul.f32 %v1562, %v1611
    %v1686 = vmul.f32 %v1563, %v1615
    %v1687 = vmul.f32 %v1564, %v1619
    %v1688 = vmul.f32 %v1565, %v1623
    %v1689 = vmul.f32 %v1566, %v1627
    %v1690 = vmul.f32 %v1567, %v1631
    %v1691 = vmul.f32 %v1568, %v1635
    %v1692 = vmul.f32 %v1569, %v1639
    %v1693 = vmul.f32 %v1570, %v1643
    %v1694 = vmul.f32 %v1571, %v1647
    %v1695 = vmul.f32 %v1572, %v1651
    %v1696 = vmul.f32 %v1573, %v1655
    %v1697 = vmul.f32 %v1574, %v1659
    %v1698 = vmul.f32 %v1575, %v1663
    %v1699 = vmul.f32 %v1593, %v1667
    %1700 = vst [vmem:[#allocation2 + $0x280] sm:$0xff] %v1684
    %1701 = vst [vmem:[#allocation2 + $0x288] sm:$0xff] %v1685
    %1702 = vst [vmem:[#allocation2 + $0x290] sm:$0xff] %v1686
    %1703 = vst [vmem:[#allocation2 + $0x298] sm:$0xff] %v1687
    %1704 = vst [vmem:[#allocation2 + $0x2a0] sm:$0xff] %v1688
    %1705 = vst [vmem:[#allocation2 + $0x2a8] sm:$0xff] %v1689
    %1706 = vst [vmem:[#allocation2 + $0x2b0] sm:$0xff] %v1690
    %1707 = vst [vmem:[#allocation2 + $0x2b8] sm:$0xff] %v1691
    %1708 = vst [vmem:[#allocation2 + $0x2c0] sm:$0xff] %v1692
    %1709 = vst [vmem:[#allocation2 + $0x2c8] sm:$0xff] %v1693
    %1710 = vst [vmem:[#allocation2 + $0x2d0] sm:$0xff] %v1694
    %1711 = vst [vmem:[#allocation2 + $0x2d8] sm:$0xff] %v1695
    %1712 = vst [vmem:[#allocation2 + $0x2e0] sm:$0xff] %v1696
    %1713 = vst [vmem:[#allocation2 + $0x2e8] sm:$0xff] %v1697
    %1714 = vst [vmem:[#allocation2 + $0x2f0] sm:$0xff] %v1698
    %1715 = vst [vmem:[#allocation2 + $0x2f8] sm:$0xff] %v1699
    %1716 = vrot.lane.b32.xlu0 %v729, 97
    %v1717 = vpop.permute.xlu0 %1716
    %1718 = vrot.lane.b32.xlu0 %v730, 97
    %v1719 = vpop.permute.xlu0 %1718
    %1720 = vrot.lane.b32.xlu0 %v731, 97
    %v1721 = vpop.permute.xlu0 %1720
    %1722 = vrot.lane.b32.xlu0 %v732, 97
    %v1723 = vpop.permute.xlu0 %1722
    %1724 = vrot.lane.b32.xlu0 %v733, 97
    %v1725 = vpop.permute.xlu0 %1724
    %1726 = vrot.lane.b32.xlu0 %v734, 97
    %v1727 = vpop.permute.xlu0 %1726
    %1728 = vrot.lane.b32.xlu0 %v735, 97
    %v1729 = vpop.permute.xlu0 %1728
    %1730 = vrot.lane.b32.xlu0 %v736, 97
    %v1731 = vpop.permute.xlu0 %1730
    %1732 = vrot.lane.b32.xlu0 %v737, 97
    %v1733 = vpop.permute.xlu0 %1732
    %1734 = vrot.lane.b32.xlu0 %v738, 97
    %v1735 = vpop.permute.xlu0 %1734
    %1736 = vrot.lane.b32.xlu0 %v739, 97
    %v1737 = vpop.permute.xlu0 %1736
    %1738 = vrot.lane.b32.xlu0 %v740, 97
    %v1739 = vpop.permute.xlu0 %1738
    %1740 = vrot.lane.b32.xlu0 %v741, 97
    %v1741 = vpop.permute.xlu0 %1740
    %1742 = vrot.lane.b32.xlu0 %v742, 97
    %v1743 = vpop.permute.xlu0 %1742
    %1744 = vrot.lane.b32.xlu0 %v743, 97
    %v1745 = vpop.permute.xlu0 %1744
    %1746 = vrot.lane.b32.xlu0 %v744, 97
    %v1747 = vpop.permute.xlu0 %1746
    %vm1748 = vcmask 793600
    %v1749 = vsel %vm1748, %v1717, %v1719
    %v1750 = vsel %vm1748, %v1719, %v1721
    %v1751 = vsel %vm1748, %v1721, %v1723
    %v1752 = vsel %vm1748, %v1723, %v1725
    %v1753 = vsel %vm1748, %v1725, %v1727
    %v1754 = vsel %vm1748, %v1727, %v1729
    %v1755 = vsel %vm1748, %v1729, %v1731
    %v1756 = vsel %vm1748, %v1731, %v1733
    %v1757 = vsel %vm1748, %v1733, %v1735
    %v1758 = vsel %vm1748, %v1735, %v1737
    %v1759 = vsel %vm1748, %v1737, %v1739
    %v1760 = vsel %vm1748, %v1739, %v1741
    %v1761 = vsel %vm1748, %v1741, %v1743
    %v1762 = vsel %vm1748, %v1743, %v1745
    %v1763 = vsel %vm1748, %v1745, %v1747
    %v1781 = vsel %vm1748, %v1747, %v1717
    %s1782 = scalar_lea.vmem [#allocation6], 6
    %v1783 = vld [vmem:[%s1782] ss:$8 sm:$0xf]
    %v1784 = vld [vmem:[%s1782] ss:$8 sm:$0xf0]
    %v1785 = vor.u32 %v1783, %v1784
    %s1786 = scalar_lea.vmem [#allocation6], 70
    %v1787 = vld [vmem:[%s1786] ss:$8 sm:$0xf]
    %v1788 = vld [vmem:[%s1786] ss:$8 sm:$0xf0]
    %v1789 = vor.u32 %v1787, %v1788
    %v1792 = vlaneseq
    %v1793 = vshrl.u32 %v1792, 7
    %v1794 = vsub.s32 0, %v1793
    %v1795 = vrot.slane %v1785, %v1794
    %v1796 = vlaneseq
    %v1797 = vshrl.u32 %v1796, 7
    %v1798 = vsub.s32 1, %v1797
    %v1799 = vrot.slane %v1785, %v1798
    %v1800 = vlaneseq
    %v1801 = vshrl.u32 %v1800, 7
    %v1802 = vsub.s32 2, %v1801
    %v1803 = vrot.slane %v1785, %v1802
    %v1804 = vlaneseq
    %v1805 = vshrl.u32 %v1804, 7
    %v1806 = vsub.s32 3, %v1805
    %v1807 = vrot.slane %v1785, %v1806
    %v1808 = vlaneseq
    %v1809 = vshrl.u32 %v1808, 7
    %v1810 = vsub.s32 4, %v1809
    %v1811 = vrot.slane %v1785, %v1810
    %v1812 = vlaneseq
    %v1813 = vshrl.u32 %v1812, 7
    %v1814 = vsub.s32 5, %v1813
    %v1815 = vrot.slane %v1785, %v1814
    %v1816 = vlaneseq
    %v1817 = vshrl.u32 %v1816, 7
    %v1818 = vsub.s32 6, %v1817
    %v1819 = vrot.slane %v1785, %v1818
    %v1820 = vlaneseq
    %v1821 = vshrl.u32 %v1820, 7
    %v1822 = vsub.s32 7, %v1821
    %v1823 = vrot.slane %v1785, %v1822
    %v1824 = vlaneseq
    %v1825 = vshrl.u32 %v1824, 7
    %v1826 = vsub.s32 0, %v1825
    %v1827 = vrot.slane %v1789, %v1826
    %v1828 = vlaneseq
    %v1829 = vshrl.u32 %v1828, 7
    %v1830 = vsub.s32 1, %v1829
    %v1831 = vrot.slane %v1789, %v1830
    %v1832 = vlaneseq
    %v1833 = vshrl.u32 %v1832, 7
    %v1834 = vsub.s32 2, %v1833
    %v1835 = vrot.slane %v1789, %v1834
    %v1836 = vlaneseq
    %v1837 = vshrl.u32 %v1836, 7
    %v1838 = vsub.s32 3, %v1837
    %v1839 = vrot.slane %v1789, %v1838
    %v1840 = vlaneseq
    %v1841 = vshrl.u32 %v1840, 7
    %v1842 = vsub.s32 4, %v1841
    %v1843 = vrot.slane %v1789, %v1842
    %v1844 = vlaneseq
    %v1845 = vshrl.u32 %v1844, 7
    %v1846 = vsub.s32 5, %v1845
    %v1847 = vrot.slane %v1789, %v1846
    %v1848 = vlaneseq
    %v1849 = vshrl.u32 %v1848, 7
    %v1850 = vsub.s32 6, %v1849
    %v1851 = vrot.slane %v1789, %v1850
    %v1852 = vlaneseq
    %v1853 = vshrl.u32 %v1852, 7
    %v1854 = vsub.s32 7, %v1853
    %v1855 = vrot.slane %v1789, %v1854
    %v1872 = vmul.f32 %v1749, %v1795
    %v1873 = vmul.f32 %v1750, %v1799
    %v1874 = vmul.f32 %v1751, %v1803
    %v1875 = vmul.f32 %v1752, %v1807
    %v1876 = vmul.f32 %v1753, %v1811
    %v1877 = vmul.f32 %v1754, %v1815
    %v1878 = vmul.f32 %v1755, %v1819
    %v1879 = vmul.f32 %v1756, %v1823
    %v1880 = vmul.f32 %v1757, %v1827
    %v1881 = vmul.f32 %v1758, %v1831
    %v1882 = vmul.f32 %v1759, %v1835
    %v1883 = vmul.f32 %v1760, %v1839
    %v1884 = vmul.f32 %v1761, %v1843
    %v1885 = vmul.f32 %v1762, %v1847
    %v1886 = vmul.f32 %v1763, %v1851
    %v1887 = vmul.f32 %v1781, %v1855
    %1888 = vst [vmem:[#allocation2 + $0x300] sm:$0xff] %v1872
    %1889 = vst [vmem:[#allocation2 + $0x308] sm:$0xff] %v1873
    %1890 = vst [vmem:[#allocation2 + $0x310] sm:$0xff] %v1874
    %1891 = vst [vmem:[#allocation2 + $0x318] sm:$0xff] %v1875
    %1892 = vst [vmem:[#allocation2 + $0x320] sm:$0xff] %v1876
    %1893 = vst [vmem:[#allocation2 + $0x328] sm:$0xff] %v1877
    %1894 = vst [vmem:[#allocation2 + $0x330] sm:$0xff] %v1878
    %1895 = vst [vmem:[#allocation2 + $0x338] sm:$0xff] %v1879
    %1896 = vst [vmem:[#allocation2 + $0x340] sm:$0xff] %v1880
    %1897 = vst [vmem:[#allocation2 + $0x348] sm:$0xff] %v1881
    %1898 = vst [vmem:[#allocation2 + $0x350] sm:$0xff] %v1882
    %1899 = vst [vmem:[#allocation2 + $0x358] sm:$0xff] %v1883
    %1900 = vst [vmem:[#allocation2 + $0x360] sm:$0xff] %v1884
    %1901 = vst [vmem:[#allocation2 + $0x368] sm:$0xff] %v1885
    %1902 = vst [vmem:[#allocation2 + $0x370] sm:$0xff] %v1886
    %1903 = vst [vmem:[#allocation2 + $0x378] sm:$0xff] %v1887
    %1904 = vrot.lane.b32.xlu0 %v729, 96
    %v1905 = vpop.permute.xlu0 %1904
    %1906 = vrot.lane.b32.xlu0 %v730, 96
    %v1907 = vpop.permute.xlu0 %1906
    %1908 = vrot.lane.b32.xlu0 %v731, 96
    %v1909 = vpop.permute.xlu0 %1908
    %1910 = vrot.lane.b32.xlu0 %v732, 96
    %v1911 = vpop.permute.xlu0 %1910
    %1912 = vrot.lane.b32.xlu0 %v733, 96
    %v1913 = vpop.permute.xlu0 %1912
    %1914 = vrot.lane.b32.xlu0 %v734, 96
    %v1915 = vpop.permute.xlu0 %1914
    %1916 = vrot.lane.b32.xlu0 %v735, 96
    %v1917 = vpop.permute.xlu0 %1916
    %1918 = vrot.lane.b32.xlu0 %v736, 96
    %v1919 = vpop.permute.xlu0 %1918
    %1920 = vrot.lane.b32.xlu0 %v737, 96
    %v1921 = vpop.permute.xlu0 %1920
    %1922 = vrot.lane.b32.xlu0 %v738, 96
    %v1923 = vpop.permute.xlu0 %1922
    %1924 = vrot.lane.b32.xlu0 %v739, 96
    %v1925 = vpop.permute.xlu0 %1924
    %1926 = vrot.lane.b32.xlu0 %v740, 96
    %v1927 = vpop.permute.xlu0 %1926
    %1928 = vrot.lane.b32.xlu0 %v741, 96
    %v1929 = vpop.permute.xlu0 %1928
    %1930 = vrot.lane.b32.xlu0 %v742, 96
    %v1931 = vpop.permute.xlu0 %1930
    %1932 = vrot.lane.b32.xlu0 %v743, 96
    %v1933 = vpop.permute.xlu0 %1932
    %1934 = vrot.lane.b32.xlu0 %v744, 96
    %v1935 = vpop.permute.xlu0 %1934
    %vm1936 = vcmask 785408
    %v1937 = vsel %vm1936, %v1905, %v1907
    %v1938 = vsel %vm1936, %v1907, %v1909
    %v1939 = vsel %vm1936, %v1909, %v1911
    %v1940 = vsel %vm1936, %v1911, %v1913
    %v1941 = vsel %vm1936, %v1913, %v1915
    %v1942 = vsel %vm1936, %v1915, %v1917
    %v1943 = vsel %vm1936, %v1917, %v1919
    %v1944 = vsel %vm1936, %v1919, %v1921
    %v1945 = vsel %vm1936, %v1921, %v1923
    %v1946 = vsel %vm1936, %v1923, %v1925
    %v1947 = vsel %vm1936, %v1925, %v1927
    %v1948 = vsel %vm1936, %v1927, %v1929
    %v1949 = vsel %vm1936, %v1929, %v1931
    %v1950 = vsel %vm1936, %v1931, %v1933
    %v1951 = vsel %vm1936, %v1933, %v1935
    %v1969 = vsel %vm1936, %v1935, %v1905
    %s1970 = scalar_lea.vmem [#allocation6], 7
    %v1971 = vld [vmem:[%s1970] ss:$8 sm:$0xf]
    %v1972 = vld [vmem:[%s1970] ss:$8 sm:$0xf0]
    %v1973 = vor.u32 %v1971, %v1972
    %s1974 = scalar_lea.vmem [#allocation6], 71
    %v1975 = vld [vmem:[%s1974] ss:$8 sm:$0xf]
    %v1976 = vld [vmem:[%s1974] ss:$8 sm:$0xf0]
    %v1977 = vor.u32 %v1975, %v1976
    %v1980 = vlaneseq
    %v1981 = vshrl.u32 %v1980, 7
    %v1982 = vsub.s32 0, %v1981
    %v1983 = vrot.slane %v1973, %v1982
    %v1984 = vlaneseq
    %v1985 = vshrl.u32 %v1984, 7
    %v1986 = vsub.s32 1, %v1985
    %v1987 = vrot.slane %v1973, %v1986
    %v1988 = vlaneseq
    %v1989 = vshrl.u32 %v1988, 7
    %v1990 = vsub.s32 2, %v1989
    %v1991 = vrot.slane %v1973, %v1990
    %v1992 = vlaneseq
    %v1993 = vshrl.u32 %v1992, 7
    %v1994 = vsub.s32 3, %v1993
    %v1995 = vrot.slane %v1973, %v1994
    %v1996 = vlaneseq
    %v1997 = vshrl.u32 %v1996, 7
    %v1998 = vsub.s32 4, %v1997
    %v1999 = vrot.slane %v1973, %v1998
    %v2000 = vlaneseq
    %v2001 = vshrl.u32 %v2000, 7
    %v2002 = vsub.s32 5, %v2001
    %v2003 = vrot.slane %v1973, %v2002
    %v2004 = vlaneseq
    %v2005 = vshrl.u32 %v2004, 7
    %v2006 = vsub.s32 6, %v2005
    %v2007 = vrot.slane %v1973, %v2006
    %v2008 = vlaneseq
    %v2009 = vshrl.u32 %v2008, 7
    %v2010 = vsub.s32 7, %v2009
    %v2011 = vrot.slane %v1973, %v2010
    %v2012 = vlaneseq
    %v2013 = vshrl.u32 %v2012, 7
    %v2014 = vsub.s32 0, %v2013
    %v2015 = vrot.slane %v1977, %v2014
    %v2016 = vlaneseq
    %v2017 = vshrl.u32 %v2016, 7
    %v2018 = vsub.s32 1, %v2017
    %v2019 = vrot.slane %v1977, %v2018
    %v2020 = vlaneseq
    %v2021 = vshrl.u32 %v2020, 7
    %v2022 = vsub.s32 2, %v2021
    %v2023 = vrot.slane %v1977, %v2022
    %v2024 = vlaneseq
    %v2025 = vshrl.u32 %v2024, 7
    %v2026 = vsub.s32 3, %v2025
    %v2027 = vrot.slane %v1977, %v2026
    %v2028 = vlaneseq
    %v2029 = vshrl.u32 %v2028, 7
    %v2030 = vsub.s32 4, %v2029
    %v2031 = vrot.slane %v1977, %v2030
    %v2032 = vlaneseq
    %v2033 = vshrl.u32 %v2032, 7
    %v2034 = vsub.s32 5, %v2033
    %v2035 = vrot.slane %v1977, %v2034
    %v2036 = vlaneseq
    %v2037 = vshrl.u32 %v2036, 7
    %v2038 = vsub.s32 6, %v2037
    %v2039 = vrot.slane %v1977, %v2038
    %v2040 = vlaneseq
    %v2041 = vshrl.u32 %v2040, 7
    %v2042 = vsub.s32 7, %v2041
    %v2043 = vrot.slane %v1977, %v2042
    %v2060 = vmul.f32 %v1937, %v1983
    %v2061 = vmul.f32 %v1938, %v1987
    %v2062 = vmul.f32 %v1939, %v1991
    %v2063 = vmul.f32 %v1940, %v1995
    %v2064 = vmul.f32 %v1941, %v1999
    %v2065 = vmul.f32 %v1942, %v2003
    %v2066 = vmul.f32 %v1943, %v2007
    %v2067 = vmul.f32 %v1944, %v2011
    %v2068 = vmul.f32 %v1945, %v2015
    %v2069 = vmul.f32 %v1946, %v2019
    %v2070 = vmul.f32 %v1947, %v2023
    %v2071 = vmul.f32 %v1948, %v2027
    %v2072 = vmul.f32 %v1949, %v2031
    %v2073 = vmul.f32 %v1950, %v2035
    %v2074 = vmul.f32 %v1951, %v2039
    %v2075 = vmul.f32 %v1969, %v2043
    %2076 = vst [vmem:[#allocation2 + $0x380] sm:$0xff] %v2060
    %2077 = vst [vmem:[#allocation2 + $0x388] sm:$0xff] %v2061
    %2078 = vst [vmem:[#allocation2 + $0x390] sm:$0xff] %v2062
    %2079 = vst [vmem:[#allocation2 + $0x398] sm:$0xff] %v2063
    %2080 = vst [vmem:[#allocation2 + $0x3a0] sm:$0xff] %v2064
    %2081 = vst [vmem:[#allocation2 + $0x3a8] sm:$0xff] %v2065
    %2082 = vst [vmem:[#allocation2 + $0x3b0] sm:$0xff] %v2066
    %2083 = vst [vmem:[#allocation2 + $0x3b8] sm:$0xff] %v2067
    %2084 = vst [vmem:[#allocation2 + $0x3c0] sm:$0xff] %v2068
    %2085 = vst [vmem:[#allocation2 + $0x3c8] sm:$0xff] %v2069
    %2086 = vst [vmem:[#allocation2 + $0x3d0] sm:$0xff] %v2070
    %2087 = vst [vmem:[#allocation2 + $0x3d8] sm:$0xff] %v2071
    %2088 = vst [vmem:[#allocation2 + $0x3e0] sm:$0xff] %v2072
    %2089 = vst [vmem:[#allocation2 + $0x3e8] sm:$0xff] %v2073
    %2090 = vst [vmem:[#allocation2 + $0x3f0] sm:$0xff] %v2074
    %2091 = vst [vmem:[#allocation2 + $0x3f8] sm:$0xff] %v2075
    %2092 = vrot.lane.b32.xlu0 %v729, 95
    %v2093 = vpop.permute.xlu0 %2092
    %2094 = vrot.lane.b32.xlu0 %v730, 95
    %v2095 = vpop.permute.xlu0 %2094
    %2096 = vrot.lane.b32.xlu0 %v731, 95
    %v2097 = vpop.permute.xlu0 %2096
    %2098 = vrot.lane.b32.xlu0 %v732, 95
    %v2099 = vpop.permute.xlu0 %2098
    %2100 = vrot.lane.b32.xlu0 %v733, 95
    %v2101 = vpop.permute.xlu0 %2100
    %2102 = vrot.lane.b32.xlu0 %v734, 95
    %v2103 = vpop.permute.xlu0 %2102
    %2104 = vrot.lane.b32.xlu0 %v735, 95
    %v2105 = vpop.permute.xlu0 %2104
    %2106 = vrot.lane.b32.xlu0 %v736, 95
    %v2107 = vpop.permute.xlu0 %2106
    %2108 = vrot.lane.b32.xlu0 %v737, 95
    %v2109 = vpop.permute.xlu0 %2108
    %2110 = vrot.lane.b32.xlu0 %v738, 95
    %v2111 = vpop.permute.xlu0 %2110
    %2112 = vrot.lane.b32.xlu0 %v739, 95
    %v2113 = vpop.permute.xlu0 %2112
    %2114 = vrot.lane.b32.xlu0 %v740, 95
    %v2115 = vpop.permute.xlu0 %2114
    %2116 = vrot.lane.b32.xlu0 %v741, 95
    %v2117 = vpop.permute.xlu0 %2116
    %2118 = vrot.lane.b32.xlu0 %v742, 95
    %v2119 = vpop.permute.xlu0 %2118
    %2120 = vrot.lane.b32.xlu0 %v743, 95
    %v2121 = vpop.permute.xlu0 %2120
    %2122 = vrot.lane.b32.xlu0 %v744, 95
    %v2123 = vpop.permute.xlu0 %2122
    %vm2124 = vcmask 777216
    %v2125 = vsel %vm2124, %v2093, %v2095
    %v2126 = vsel %vm2124, %v2095, %v2097
    %v2127 = vsel %vm2124, %v2097, %v2099
    %v2128 = vsel %vm2124, %v2099, %v2101
    %v2129 = vsel %vm2124, %v2101, %v2103
    %v2130 = vsel %vm2124, %v2103, %v2105
    %v2131 = vsel %vm2124, %v2105, %v2107
    %v2132 = vsel %vm2124, %v2107, %v2109
    %v2133 = vsel %vm2124, %v2109, %v2111
    %v2134 = vsel %vm2124, %v2111, %v2113
    %v2135 = vsel %vm2124, %v2113, %v2115
    %v2136 = vsel %vm2124, %v2115, %v2117
    %v2137 = vsel %vm2124, %v2117, %v2119
    %v2138 = vsel %vm2124, %v2119, %v2121
    %v2139 = vsel %vm2124, %v2121, %v2123
    %v2157 = vsel %vm2124, %v2123, %v2093
    %s2158 = scalar_lea.vmem [#allocation6], 128
    %v2159 = vld [vmem:[%s2158] ss:$8 sm:$0xf]
    %v2160 = vld [vmem:[%s2158] ss:$8 sm:$0xf0]
    %v2161 = vor.u32 %v2159, %v2160
    %s2162 = scalar_lea.vmem [#allocation6], 192
    %v2163 = vld [vmem:[%s2162] ss:$8 sm:$0xf]
    %v2164 = vld [vmem:[%s2162] ss:$8 sm:$0xf0]
    %v2165 = vor.u32 %v2163, %v2164
    %v2168 = vlaneseq
    %v2169 = vshrl.u32 %v2168, 7
    %v2170 = vsub.s32 0, %v2169
    %v2171 = vrot.slane %v2161, %v2170
    %v2172 = vlaneseq
    %v2173 = vshrl.u32 %v2172, 7
    %v2174 = vsub.s32 1, %v2173
    %v2175 = vrot.slane %v2161, %v2174
    %v2176 = vlaneseq
    %v2177 = vshrl.u32 %v2176, 7
    %v2178 = vsub.s32 2, %v2177
    %v2179 = vrot.slane %v2161, %v2178
    %v2180 = vlaneseq
    %v2181 = vshrl.u32 %v2180, 7
    %v2182 = vsub.s32 3, %v2181
    %v2183 = vrot.slane %v2161, %v2182
    %v2184 = vlaneseq
    %v2185 = vshrl.u32 %v2184, 7
    %v2186 = vsub.s32 4, %v2185
    %v2187 = vrot.slane %v2161, %v2186
    %v2188 = vlaneseq
    %v2189 = vshrl.u32 %v2188, 7
    %v2190 = vsub.s32 5, %v2189
    %v2191 = vrot.slane %v2161, %v2190
    %v2192 = vlaneseq
    %v2193 = vshrl.u32 %v2192, 7
    %v2194 = vsub.s32 6, %v2193
    %v2195 = vrot.slane %v2161, %v2194
    %v2196 = vlaneseq
    %v2197 = vshrl.u32 %v2196, 7
    %v2198 = vsub.s32 7, %v2197
    %v2199 = vrot.slane %v2161, %v2198
    %v2200 = vlaneseq
    %v2201 = vshrl.u32 %v2200, 7
    %v2202 = vsub.s32 0, %v2201
    %v2203 = vrot.slane %v2165, %v2202
    %v2204 = vlaneseq
    %v2205 = vshrl.u32 %v2204, 7
    %v2206 = vsub.s32 1, %v2205
    %v2207 = vrot.slane %v2165, %v2206
    %v2208 = vlaneseq
    %v2209 = vshrl.u32 %v2208, 7
    %v2210 = vsub.s32 2, %v2209
    %v2211 = vrot.slane %v2165, %v2210
    %v2212 = vlaneseq
    %v2213 = vshrl.u32 %v2212, 7
    %v2214 = vsub.s32 3, %v2213
    %v2215 = vrot.slane %v2165, %v2214
    %v2216 = vlaneseq
    %v2217 = vshrl.u32 %v2216, 7
    %v2218 = vsub.s32 4, %v2217
    %v2219 = vrot.slane %v2165, %v2218
    %v2220 = vlaneseq
    %v2221 = vshrl.u32 %v2220, 7
    %v2222 = vsub.s32 5, %v2221
    %v2223 = vrot.slane %v2165, %v2222
    %v2224 = vlaneseq
    %v2225 = vshrl.u32 %v2224, 7
    %v2226 = vsub.s32 6, %v2225
    %v2227 = vrot.slane %v2165, %v2226
    %v2228 = vlaneseq
    %v2229 = vshrl.u32 %v2228, 7
    %v2230 = vsub.s32 7, %v2229
    %v2231 = vrot.slane %v2165, %v2230
    %v2248 = vmul.f32 %v2125, %v2171
    %v2249 = vmul.f32 %v2126, %v2175
    %v2250 = vmul.f32 %v2127, %v2179
    %v2251 = vmul.f32 %v2128, %v2183
    %v2252 = vmul.f32 %v2129, %v2187
    %v2253 = vmul.f32 %v2130, %v2191
    %v2254 = vmul.f32 %v2131, %v2195
    %v2255 = vmul.f32 %v2132, %v2199
    %v2256 = vmul.f32 %v2133, %v2203
    %v2257 = vmul.f32 %v2134, %v2207
    %v2258 = vmul.f32 %v2135, %v2211
    %v2259 = vmul.f32 %v2136, %v2215
    %v2260 = vmul.f32 %v2137, %v2219
    %v2261 = vmul.f32 %v2138, %v2223
    %v2262 = vmul.f32 %v2139, %v2227
    %v2263 = vmul.f32 %v2157, %v2231
    %2264 = vst [vmem:[#allocation2 + $0x400] sm:$0xff] %v2248
    %2265 = vst [vmem:[#allocation2 + $0x408] sm:$0xff] %v2249
    %2266 = vst [vmem:[#allocation2 + $0x410] sm:$0xff] %v2250
    %2267 = vst [vmem:[#allocation2 + $0x418] sm:$0xff] %v2251
    %2268 = vst [vmem:[#allocation2 + $0x420] sm:$0xff] %v2252
    %2269 = vst [vmem:[#allocation2 + $0x428] sm:$0xff] %v2253
    %2270 = vst [vmem:[#allocation2 + $0x430] sm:$0xff] %v2254
    %2271 = vst [vmem:[#allocation2 + $0x438] sm:$0xff] %v2255
    %2272 = vst [vmem:[#allocation2 + $0x440] sm:$0xff] %v2256
    %2273 = vst [vmem:[#allocation2 + $0x448] sm:$0xff] %v2257
    %2274 = vst [vmem:[#allocation2 + $0x450] sm:$0xff] %v2258
    %2275 = vst [vmem:[#allocation2 + $0x458] sm:$0xff] %v2259
    %2276 = vst [vmem:[#allocation2 + $0x460] sm:$0xff] %v2260
    %2277 = vst [vmem:[#allocation2 + $0x468] sm:$0xff] %v2261
    %2278 = vst [vmem:[#allocation2 + $0x470] sm:$0xff] %v2262
    %2279 = vst [vmem:[#allocation2 + $0x478] sm:$0xff] %v2263
    %v2280 = vld [vmem:[%s3] sm:$0xff]
    %v2281 = vld [vmem:[%s3 + $0x8] sm:$0xff]
    %v2282 = vld [vmem:[%s3 + $0x10] sm:$0xff]
    %v2283 = vld [vmem:[%s3 + $0x18] sm:$0xff]
    %v2284 = vld [vmem:[%s3 + $0x20] sm:$0xff]
    %v2285 = vld [vmem:[%s3 + $0x28] sm:$0xff]
    %v2286 = vld [vmem:[%s3 + $0x30] sm:$0xff]
    %v2287 = vld [vmem:[%s3 + $0x38] sm:$0xff]
    %v2288 = vld [vmem:[%s3 + $0x40] sm:$0xff]
    %v2289 = vld [vmem:[#allocation2] sm:$0xff]
    %v2290 = vld [vmem:[#allocation2 + $0x8] sm:$0xff]
    %v2291 = vld [vmem:[#allocation2 + $0x10] sm:$0xff]
    %v2292 = vld [vmem:[#allocation2 + $0x18] sm:$0xff]
    %v2293 = vld [vmem:[#allocation2 + $0x20] sm:$0xff]
    %v2294 = vld [vmem:[#allocation2 + $0x28] sm:$0xff]
    %v2295 = vld [vmem:[#allocation2 + $0x30] sm:$0xff]
    %v2296 = vld [vmem:[#allocation2 + $0x38] sm:$0xff]
    %v2297 = vld [vmem:[#allocation2 + $0x40] sm:$0xff]
    %v2298 = vld [vmem:[#allocation2 + $0x48] sm:$0xff]
    %v2299 = vld [vmem:[#allocation2 + $0x50] sm:$0xff]
    %v2300 = vld [vmem:[#allocation2 + $0x58] sm:$0xff]
    %v2301 = vld [vmem:[#allocation2 + $0x60] sm:$0xff]
    %v2302 = vld [vmem:[#allocation2 + $0x68] sm:$0xff]
    %v2303 = vld [vmem:[#allocation2 + $0x70] sm:$0xff]
    %v2304 = vld [vmem:[#allocation2 + $0x78] sm:$0xff]
    %v2305 = vld [vmem:[#allocation2 + $0x80] sm:$0xff]
    %v2306 = vld [vmem:[#allocation2 + $0x88] sm:$0xff]
    %v2307 = vld [vmem:[#allocation2 + $0x90] sm:$0xff]
    %v2308 = vld [vmem:[#allocation2 + $0x98] sm:$0xff]
    %v2309 = vld [vmem:[#allocation2 + $0xa0] sm:$0xff]
    %v2310 = vld [vmem:[#allocation2 + $0xa8] sm:$0xff]
    %v2311 = vld [vmem:[#allocation2 + $0xb0] sm:$0xff]
    %v2312 = vld [vmem:[#allocation2 + $0xb8] sm:$0xff]
    %v2313 = vld [vmem:[#allocation2 + $0xc0] sm:$0xff]
    %v2314 = vld [vmem:[#allocation2 + $0xc8] sm:$0xff]
    %v2315 = vld [vmem:[#allocation2 + $0xd0] sm:$0xff]
    %v2316 = vld [vmem:[#allocation2 + $0xd8] sm:$0xff]
    %v2317 = vld [vmem:[#allocation2 + $0xe0] sm:$0xff]
    %v2318 = vld [vmem:[#allocation2 + $0xe8] sm:$0xff]
    %v2319 = vld [vmem:[#allocation2 + $0xf0] sm:$0xff]
    %v2320 = vld [vmem:[#allocation2 + $0xf8] sm:$0xff]
    %v2321 = vld [vmem:[#allocation2 + $0x100] sm:$0xff]
    %v2322 = vld [vmem:[#allocation2 + $0x108] sm:$0xff]
    %v2323 = vld [vmem:[#allocation2 + $0x110] sm:$0xff]
    %v2324 = vld [vmem:[#allocation2 + $0x118] sm:$0xff]
    %v2325 = vld [vmem:[#allocation2 + $0x120] sm:$0xff]
    %v2326 = vld [vmem:[#allocation2 + $0x128] sm:$0xff]
    %v2327 = vld [vmem:[#allocation2 + $0x130] sm:$0xff]
    %v2328 = vld [vmem:[#allocation2 + $0x138] sm:$0xff]
    %v2329 = vld [vmem:[#allocation2 + $0x140] sm:$0xff]
    %v2330 = vld [vmem:[#allocation2 + $0x148] sm:$0xff]
    %v2331 = vld [vmem:[#allocation2 + $0x150] sm:$0xff]
    %v2332 = vld [vmem:[#allocation2 + $0x158] sm:$0xff]
    %v2333 = vld [vmem:[#allocation2 + $0x160] sm:$0xff]
    %v2334 = vld [vmem:[#allocation2 + $0x168] sm:$0xff]
    %v2335 = vld [vmem:[#allocation2 + $0x170] sm:$0xff]
    %v2336 = vld [vmem:[#allocation2 + $0x178] sm:$0xff]
    %v2337 = vld [vmem:[#allocation2 + $0x180] sm:$0xff]
    %v2338 = vld [vmem:[#allocation2 + $0x188] sm:$0xff]
    %v2339 = vld [vmem:[#allocation2 + $0x190] sm:$0xff]
    %v2340 = vld [vmem:[#allocation2 + $0x198] sm:$0xff]
    %v2341 = vld [vmem:[#allocation2 + $0x1a0] sm:$0xff]
    %v2342 = vld [vmem:[#allocation2 + $0x1a8] sm:$0xff]
    %v2343 = vld [vmem:[#allocation2 + $0x1b0] sm:$0xff]
    %v2344 = vld [vmem:[#allocation2 + $0x1b8] sm:$0xff]
    %v2345 = vld [vmem:[#allocation2 + $0x1c0] sm:$0xff]
    %v2346 = vld [vmem:[#allocation2 + $0x1c8] sm:$0xff]
    %v2347 = vld [vmem:[#allocation2 + $0x1d0] sm:$0xff]
    %v2348 = vld [vmem:[#allocation2 + $0x1d8] sm:$0xff]
    %v2349 = vld [vmem:[#allocation2 + $0x1e0] sm:$0xff]
    %v2350 = vld [vmem:[#allocation2 + $0x1e8] sm:$0xff]
    %v2351 = vld [vmem:[#allocation2 + $0x1f0] sm:$0xff]
    %v2352 = vld [vmem:[#allocation2 + $0x1f8] sm:$0xff]
    %v2353 = vld [vmem:[#allocation2 + $0x200] sm:$0xff]
    %v2354 = vld [vmem:[#allocation2 + $0x208] sm:$0xff]
    %v2355 = vld [vmem:[#allocation2 + $0x210] sm:$0xff]
    %v2356 = vld [vmem:[#allocation2 + $0x218] sm:$0xff]
    %v2357 = vld [vmem:[#allocation2 + $0x220] sm:$0xff]
    %v2358 = vld [vmem:[#allocation2 + $0x228] sm:$0xff]
    %v2359 = vld [vmem:[#allocation2 + $0x230] sm:$0xff]
    %v2360 = vld [vmem:[#allocation2 + $0x238] sm:$0xff]
    %v2361 = vld [vmem:[#allocation2 + $0x240] sm:$0xff]
    %v2362 = vld [vmem:[#allocation2 + $0x248] sm:$0xff]
    %v2363 = vld [vmem:[#allocation2 + $0x250] sm:$0xff]
    %v2364 = vld [vmem:[#allocation2 + $0x258] sm:$0xff]
    %v2365 = vld [vmem:[#allocation2 + $0x260] sm:$0xff]
    %v2366 = vld [vmem:[#allocation2 + $0x268] sm:$0xff]
    %v2367 = vld [vmem:[#allocation2 + $0x270] sm:$0xff]
    %v2368 = vld [vmem:[#allocation2 + $0x278] sm:$0xff]
    %v2369 = vld [vmem:[#allocation2 + $0x280] sm:$0xff]
    %v2370 = vld [vmem:[#allocation2 + $0x288] sm:$0xff]
    %v2371 = vld [vmem:[#allocation2 + $0x290] sm:$0xff]
    %v2372 = vld [vmem:[#allocation2 + $0x298] sm:$0xff]
    %v2373 = vld [vmem:[#allocation2 + $0x2a0] sm:$0xff]
    %v2374 = vld [vmem:[#allocation2 + $0x2a8] sm:$0xff]
    %v2375 = vld [vmem:[#allocation2 + $0x2b0] sm:$0xff]
    %v2376 = vld [vmem:[#allocation2 + $0x2b8] sm:$0xff]
    %v2377 = vld [vmem:[#allocation2 + $0x2c0] sm:$0xff]
    %v2378 = vld [vmem:[#allocation2 + $0x2c8] sm:$0xff]
    %v2379 = vld [vmem:[#allocation2 + $0x2d0] sm:$0xff]
    %v2380 = vld [vmem:[#allocation2 + $0x2d8] sm:$0xff]
    %v2381 = vld [vmem:[#allocation2 + $0x2e0] sm:$0xff]
    %v2382 = vld [vmem:[#allocation2 + $0x2e8] sm:$0xff]
    %v2383 = vld [vmem:[#allocation2 + $0x2f0] sm:$0xff]
    %v2384 = vld [vmem:[#allocation2 + $0x2f8] sm:$0xff]
    %v2385 = vld [vmem:[#allocation2 + $0x300] sm:$0xff]
    %v2386 = vld [vmem:[#allocation2 + $0x308] sm:$0xff]
    %v2387 = vld [vmem:[#allocation2 + $0x310] sm:$0xff]
    %v2388 = vld [vmem:[#allocation2 + $0x318] sm:$0xff]
    %v2389 = vld [vmem:[#allocation2 + $0x320] sm:$0xff]
    %v2390 = vld [vmem:[#allocation2 + $0x328] sm:$0xff]
    %v2391 = vld [vmem:[#allocation2 + $0x330] sm:$0xff]
    %v2392 = vld [vmem:[#allocation2 + $0x338] sm:$0xff]
    %v2393 = vld [vmem:[#allocation2 + $0x340] sm:$0xff]
    %v2394 = vld [vmem:[#allocation2 + $0x348] sm:$0xff]
    %v2395 = vld [vmem:[#allocation2 + $0x350] sm:$0xff]
    %v2396 = vld [vmem:[#allocation2 + $0x358] sm:$0xff]
    %v2397 = vld [vmem:[#allocation2 + $0x360] sm:$0xff]
    %v2398 = vld [vmem:[#allocation2 + $0x368] sm:$0xff]
    %v2399 = vld [vmem:[#allocation2 + $0x370] sm:$0xff]
    %v2400 = vld [vmem:[#allocation2 + $0x378] sm:$0xff]
    %v2401 = vld [vmem:[#allocation2 + $0x380] sm:$0xff]
    %v2402 = vld [vmem:[#allocation2 + $0x388] sm:$0xff]
    %v2403 = vld [vmem:[#allocation2 + $0x390] sm:$0xff]
    %v2404 = vld [vmem:[#allocation2 + $0x398] sm:$0xff]
    %v2405 = vld [vmem:[#allocation2 + $0x3a0] sm:$0xff]
    %v2406 = vld [vmem:[#allocation2 + $0x3a8] sm:$0xff]
    %v2407 = vld [vmem:[#allocation2 + $0x3b0] sm:$0xff]
    %v2408 = vld [vmem:[#allocation2 + $0x3b8] sm:$0xff]
    %v2409 = vld [vmem:[#allocation2 + $0x3c0] sm:$0xff]
    %v2410 = vld [vmem:[#allocation2 + $0x3c8] sm:$0xff]
    %v2411 = vld [vmem:[#allocation2 + $0x3d0] sm:$0xff]
    %v2412 = vld [vmem:[#allocation2 + $0x3d8] sm:$0xff]
    %v2413 = vld [vmem:[#allocation2 + $0x3e0] sm:$0xff]
    %v2414 = vld [vmem:[#allocation2 + $0x3e8] sm:$0xff]
    %v2415 = vld [vmem:[#allocation2 + $0x3f0] sm:$0xff]
    %v2416 = vld [vmem:[#allocation2 + $0x3f8] sm:$0xff]
    %v2417 = vld [vmem:[#allocation2 + $0x400] sm:$0xff]
    %v2418 = vld [vmem:[#allocation2 + $0x408] sm:$0xff]
    %v2419 = vld [vmem:[#allocation2 + $0x410] sm:$0xff]
    %v2420 = vld [vmem:[#allocation2 + $0x418] sm:$0xff]
    %v2421 = vld [vmem:[#allocation2 + $0x420] sm:$0xff]
    %v2422 = vld [vmem:[#allocation2 + $0x428] sm:$0xff]
    %v2423 = vld [vmem:[#allocation2 + $0x430] sm:$0xff]
    %v2424 = vld [vmem:[#allocation2 + $0x438] sm:$0xff]
    %v2425 = vld [vmem:[#allocation2 + $0x440] sm:$0xff]
    %v2426 = vld [vmem:[#allocation2 + $0x448] sm:$0xff]
    %v2427 = vld [vmem:[#allocation2 + $0x450] sm:$0xff]
    %v2428 = vld [vmem:[#allocation2 + $0x458] sm:$0xff]
    %v2429 = vld [vmem:[#allocation2 + $0x460] sm:$0xff]
    %v2430 = vld [vmem:[#allocation2 + $0x468] sm:$0xff]
    %v2431 = vld [vmem:[#allocation2 + $0x470] sm:$0xff]
    %v2432 = vld [vmem:[#allocation2 + $0x478] sm:$0xff]
    %v2433 = vld [vmem:[%s4] sm:$0xff]
    %2435 = vset.pattern.permute.xlu0 0
    %2436 = vperm.xlu0 %2435, %v2433
    %v2437 = vpop.permute.xlu0 %2436
    %2439 = vxpose.xlu0.b32.start [1/16] %v2280, 128
    %2440 = vxpose.xlu0.b32.cont [2/16] %v2281, 128
    %2441 = vxpose.xlu0.b32.cont [3/16] %v2282, 128
    %2442 = vxpose.xlu0.b32.cont [4/16] %v2283, 128
    %2443 = vxpose.xlu0.b32.cont [5/16] %v2284, 128
    %2444 = vxpose.xlu0.b32.cont [6/16] %v2285, 128
    %2445 = vxpose.xlu0.b32.cont [7/16] %v2286, 128
    %2446 = vxpose.xlu0.b32.cont [8/16] %v2287, 128
    %2447 = vxpose.xlu0.b32.cont [9/16] %v2288, 128
    %2448 = vxpose.xlu0.b32.cont [10/16] 0.0, 128
    %2449 = vxpose.xlu0.b32.cont [11/16] 0.0, 128
    %2450 = vxpose.xlu0.b32.cont [12/16] 0.0, 128
    %2451 = vxpose.xlu0.b32.cont [13/16] 0.0, 128
    %2452 = vxpose.xlu0.b32.cont [14/16] 0.0, 128
    %2453 = vxpose.xlu0.b32.cont [15/16] 0.0, 128
    %2454 = vxpose.xlu0.b32.end [16/16] 0.0, 128
    %v2455 = vpop.trf.xlu0
    %v2456 = vpop.trf.xlu0
    %v2457 = vpop.trf.xlu0
    %v2458 = vpop.trf.xlu0
    %v2459 = vpop.trf.xlu0
    %v2460 = vpop.trf.xlu0
    %v2461 = vpop.trf.xlu0
    %v2462 = vpop.trf.xlu0
    %v2463 = vpop.trf.xlu0
    %v2464 = vpop.trf.xlu0
    %v2465 = vpop.trf.xlu0
    %v2466 = vpop.trf.xlu0
    %v2467 = vpop.trf.xlu0
    %v2468 = vpop.trf.xlu0
    %v2469 = vpop.trf.xlu0
    %v2470 = vpop.trf.xlu0
    %vm2471 = vcmask 588800
    %v2473 = vsel %vm2471, %v2455, 0
    %2475 = vmatprep.subr.mxu0 %v2290
    %2476 = vmatpush1.msra.mxu0 %v2289
    %2477 = vmatprep.subr.mxu0 %v2306
    %2478 = vmatpush1.msra.mxu0 %v2305
    %2479 = vmatprep.subr.mxu0 %v2322
    %2480 = vmatpush1.msra.mxu0 %v2321
    %2481 = vmatprep.subr.mxu0 %v2338
    %2482 = vmatpush1.msra.mxu0 %v2337
    %2483 = vmatprep.subr.mxu0 %v2354
    %2484 = vmatpush1.msra.mxu0 %v2353
    %2485 = vmatprep.subr.mxu0 %v2370
    %2486 = vmatpush1.msra.mxu0 %v2369
    %2487 = vmatprep.subr.mxu0 %v2386
    %2488 = vmatpush1.msra.mxu0 %v2385
    %2489 = vmatprep.subr.mxu0 %v2402
    %2490 = vmatpush1.msra.mxu0 %v2401
    %2491 = vmatprep.subr.mxu0 %v2418
    %2492 = vmatpush1.msra.mxu0 %v2417
    %2493 = vmatprep.subr.mxu0 0.0
    %2494 = vmatpush1.msra.mxu0 0.0
    %2495 = vmatprep.subr.mxu0 0.0
    %2496 = vmatpush1.msra.mxu0 0.0
    %2497 = vmatprep.subr.mxu0 0.0
    %2498 = vmatpush1.msra.mxu0 0.0
    %2499 = vmatprep.subr.mxu0 0.0
    %2500 = vmatpush1.msra.mxu0 0.0
    %2501 = vmatprep.subr.mxu0 0.0
    %2502 = vmatpush1.msra.mxu0 0.0
    %2503 = vmatprep.subr.mxu0 0.0
    %2504 = vmatpush1.msra.mxu0 0.0
    %2505 = vmatprep.subr.mxu0 0.0
    %2506 = vmatpush1.msra.mxu0 0.0
    %2507 = vmatprep.subr.mxu0 0.0
    %2508 = vmatpush1.msra.mxu0 0.0
    %2509 = vmatprep.subr.mxu0 0.0
    %2510 = vmatpush1.msra.mxu0 0.0
    %2511 = vmatprep.subr.mxu0 0.0
    %2512 = vmatpush1.msra.mxu0 0.0
    %2513 = vmatprep.subr.mxu0 0.0
    %2514 = vmatpush1.msra.mxu0 0.0
    %2515 = vmatprep.subr.mxu0 0.0
    %2516 = vmatpush1.msra.mxu0 0.0
    %2517 = vmatprep.subr.mxu0 0.0
    %2518 = vmatpush1.msra.mxu0 0.0
    %2519 = vmatprep.subr.mxu0 0.0
    %2520 = vmatpush1.msra.mxu0 0.0
    %2521 = vmatprep.subr.mxu0 0.0
    %2522 = vmatpush1.msra.mxu0 0.0
    %2523 = vmatprep.subr.mxu0 0.0
    %2524 = vmatpush1.msra.mxu0 0.0
    %2525 = vmatprep.subr.mxu0 0.0
    %2526 = vmatpush1.msra.mxu0 0.0
    %2527 = vmatprep.subr.mxu0 0.0
    %2528 = vmatpush1.msra.mxu0 0.0
    %2529 = vmatprep.subr.mxu0 0.0
    %2530 = vmatpush1.msra.mxu0 0.0
    %2531 = vmatprep.subr.mxu0 0.0
    %2532 = vmatpush1.msra.mxu0 0.0
    %2533 = vmatprep.subr.mxu0 0.0
    %2534 = vmatpush1.msra.mxu0 0.0
    %2535 = vmatprep.subr.mxu0 0.0
    %2536 = vmatpush1.msra.mxu0 0.0
    %2537 = vmatprep.subr.mxu0 0.0
    %2538 = vmatpush1.msra.mxu0 0.0
    %2539 = vmatprep.mubr.f32.mxu0 0.0
    %2540 = vmatmul.mubr.f32.gmra.mrb[0].mxu0 %v2473
    %v2541 = vpop.f32.mrb[0].mxu0
    %v2542 = vadd.f32 %v2437, %v2541
    %v2543 = vpop.f32.mrb[0].mxu0
    %v2544 = vadd.f32 %v2437, %v2543
    %2545 = vdwg.mxu0
    %2546 = vmatprep.subr.mxu0 %v2292
    %2547 = vmatpush1.msra.mxu0 %v2291
    %2548 = vmatprep.subr.mxu0 %v2308
    %2549 = vmatpush1.msra.mxu0 %v2307
    %2550 = vmatprep.subr.mxu0 %v2324
    %2551 = vmatpush1.msra.mxu0 %v2323
    %2552 = vmatprep.subr.mxu0 %v2340
    %2553 = vmatpush1.msra.mxu0 %v2339
    %2554 = vmatprep.subr.mxu0 %v2356
    %2555 = vmatpush1.msra.mxu0 %v2355
    %2556 = vmatprep.subr.mxu0 %v2372
    %2557 = vmatpush1.msra.mxu0 %v2371
    %2558 = vmatprep.subr.mxu0 %v2388
    %2559 = vmatpush1.msra.mxu0 %v2387
    %2560 = vmatprep.subr.mxu0 %v2404
    %2561 = vmatpush1.msra.mxu0 %v2403
    %2562 = vmatprep.subr.mxu0 %v2420
    %2563 = vmatpush1.msra.mxu0 %v2419
    %2564 = vmatprep.subr.mxu0 0.0
    %2565 = vmatpush1.msra.mxu0 0.0
    %2566 = vmatprep.subr.mxu0 0.0
    %2567 = vmatpush1.msra.mxu0 0.0
    %2568 = vmatprep.subr.mxu0 0.0
    %2569 = vmatpush1.msra.mxu0 0.0
    %2570 = vmatprep.subr.mxu0 0.0
    %2571 = vmatpush1.msra.mxu0 0.0
    %2572 = vmatprep.subr.mxu0 0.0
    %2573 = vmatpush1.msra.mxu0 0.0
    %2574 = vmatprep.subr.mxu0 0.0
    %2575 = vmatpush1.msra.mxu0 0.0
    %2576 = vmatprep.subr.mxu0 0.0
    %2577 = vmatpush1.msra.mxu0 0.0
    %2578 = vmatprep.subr.mxu0 0.0
    %2579 = vmatpush1.msra.mxu0 0.0
    %2580 = vmatprep.subr.mxu0 0.0
    %2581 = vmatpush1.msra.mxu0 0.0
    %2582 = vmatprep.subr.mxu0 0.0
    %2583 = vmatpush1.msra.mxu0 0.0
    %2584 = vmatprep.subr.mxu0 0.0
    %2585 = vmatpush1.msra.mxu0 0.0
    %2586 = vmatprep.subr.mxu0 0.0
    %2587 = vmatpush1.msra.mxu0 0.0
    %2588 = vmatprep.subr.mxu0 0.0
    %2589 = vmatpush1.msra.mxu0 0.0
    %2590 = vmatprep.subr.mxu0 0.0
    %2591 = vmatpush1.msra.mxu0 0.0
    %2592 = vmatprep.subr.mxu0 0.0
    %2593 = vmatpush1.msra.mxu0 0.0
    %2594 = vmatprep.subr.mxu0 0.0
    %2595 = vmatpush1.msra.mxu0 0.0
    %2596 = vmatprep.subr.mxu0 0.0
    %2597 = vmatpush1.msra.mxu0 0.0
    %2598 = vmatprep.subr.mxu0 0.0
    %2599 = vmatpush1.msra.mxu0 0.0
    %2600 = vmatprep.subr.mxu0 0.0
    %2601 = vmatpush1.msra.mxu0 0.0
    %2602 = vmatprep.subr.mxu0 0.0
    %2603 = vmatpush1.msra.mxu0 0.0
    %2604 = vmatprep.subr.mxu0 0.0
    %2605 = vmatpush1.msra.mxu0 0.0
    %2606 = vmatprep.subr.mxu0 0.0
    %2607 = vmatpush1.msra.mxu0 0.0
    %2608 = vmatprep.subr.mxu0 0.0
    %2609 = vmatpush1.msra.mxu0 0.0
    %2610 = vmatprep.mubr.f32.mxu0 0.0
    %2611 = vmatmul.mubr.f32.gmra.mrb[0].mxu0 %v2473
    %v2612 = vpop.f32.mrb[0].mxu0
    %v2613 = vadd.f32 %v2437, %v2612
    %v2614 = vpop.f32.mrb[0].mxu0
    %v2615 = vadd.f32 %v2437, %v2614
    %2616 = vdwg.mxu0
    %2617 = vmatprep.subr.mxu0 %v2294
    %2618 = vmatpush1.msra.mxu0 %v2293
    %2619 = vmatprep.subr.mxu0 %v2310
    %2620 = vmatpush1.msra.mxu0 %v2309
    %2621 = vmatprep.subr.mxu0 %v2326
    %2622 = vmatpush1.msra.mxu0 %v2325
    %2623 = vmatprep.subr.mxu0 %v2342
    %2624 = vmatpush1.msra.mxu0 %v2341
    %2625 = vmatprep.subr.mxu0 %v2358
    %2626 = vmatpush1.msra.mxu0 %v2357
    %2627 = vmatprep.subr.mxu0 %v2374
    %2628 = vmatpush1.msra.mxu0 %v2373
    %2629 = vmatprep.subr.mxu0 %v2390
    %2630 = vmatpush1.msra.mxu0 %v2389
    %2631 = vmatprep.subr.mxu0 %v2406
    %2632 = vmatpush1.msra.mxu0 %v2405
    %2633 = vmatprep.subr.mxu0 %v2422
    %2634 = vmatpush1.msra.mxu0 %v2421
    %2635 = vmatprep.subr.mxu0 0.0
    %2636 = vmatpush1.msra.mxu0 0.0
    %2637 = vmatprep.subr.mxu0 0.0
    %2638 = vmatpush1.msra.mxu0 0.0
    %2639 = vmatprep.subr.mxu0 0.0
    %2640 = vmatpush1.msra.mxu0 0.0
    %2641 = vmatprep.subr.mxu0 0.0
    %2642 = vmatpush1.msra.mxu0 0.0
    %2643 = vmatprep.subr.mxu0 0.0
    %2644 = vmatpush1.msra.mxu0 0.0
    %2645 = vmatprep.subr.mxu0 0.0
    %2646 = vmatpush1.msra.mxu0 0.0
    %2647 = vmatprep.subr.mxu0 0.0
    %2648 = vmatpush1.msra.mxu0 0.0
    %2649 = vmatprep.subr.mxu0 0.0
    %2650 = vmatpush1.msra.mxu0 0.0
    %2651 = vmatprep.subr.mxu0 0.0
    %2652 = vmatpush1.msra.mxu0 0.0
    %2653 = vmatprep.subr.mxu0 0.0
    %2654 = vmatpush1.msra.mxu0 0.0
    %2655 = vmatprep.subr.mxu0 0.0
    %2656 = vmatpush1.msra.mxu0 0.0
    %2657 = vmatprep.subr.mxu0 0.0
    %2658 = vmatpush1.msra.mxu0 0.0
    %2659 = vmatprep.subr.mxu0 0.0
    %2660 = vmatpush1.msra.mxu0 0.0
    %2661 = vmatprep.subr.mxu0 0.0
    %2662 = vmatpush1.msra.mxu0 0.0
    %2663 = vmatprep.subr.mxu0 0.0
    %2664 = vmatpush1.msra.mxu0 0.0
    %2665 = vmatprep.subr.mxu0 0.0
    %2666 = vmatpush1.msra.mxu0 0.0
    %2667 = vmatprep.subr.mxu0 0.0
    %2668 = vmatpush1.msra.mxu0 0.0
    %2669 = vmatprep.subr.mxu0 0.0
    %2670 = vmatpush1.msra.mxu0 0.0
    %2671 = vmatprep.subr.mxu0 0.0
    %2672 = vmatpush1.msra.mxu0 0.0
    %2673 = vmatprep.subr.mxu0 0.0
    %2674 = vmatpush1.msra.mxu0 0.0
    %2675 = vmatprep.subr.mxu0 0.0
    %2676 = vmatpush1.msra.mxu0 0.0
    %2677 = vmatprep.subr.mxu0 0.0
    %2678 = vmatpush1.msra.mxu0 0.0
    %2679 = vmatprep.subr.mxu0 0.0
    %2680 = vmatpush1.msra.mxu0 0.0
    %2681 = vmatprep.mubr.f32.mxu0 0.0
    %2682 = vmatmul.mubr.f32.gmra.mrb[0].mxu0 %v2473
    %v2683 = vpop.f32.mrb[0].mxu0
    %v2684 = vadd.f32 %v2437, %v2683
    %v2685 = vpop.f32.mrb[0].mxu0
    %v2686 = vadd.f32 %v2437, %v2685
    %2687 = vdwg.mxu0
    %2688 = vmatprep.subr.mxu0 %v2296
    %2689 = vmatpush1.msra.mxu0 %v2295
    %2690 = vmatprep.subr.mxu0 %v2312
    %2691 = vmatpush1.msra.mxu0 %v2311
    %2692 = vmatprep.subr.mxu0 %v2328
    %2693 = vmatpush1.msra.mxu0 %v2327
    %2694 = vmatprep.subr.mxu0 %v2344
    %2695 = vmatpush1.msra.mxu0 %v2343
    %2696 = vmatprep.subr.mxu0 %v2360
    %2697 = vmatpush1.msra.mxu0 %v2359
    %2698 = vmatprep.subr.mxu0 %v2376
    %2699 = vmatpush1.msra.mxu0 %v2375
    %2700 = vmatprep.subr.mxu0 %v2392
    %2701 = vmatpush1.msra.mxu0 %v2391
    %2702 = vmatprep.subr.mxu0 %v2408
    %2703 = vmatpush1.msra.mxu0 %v2407
    %2704 = vmatprep.subr.mxu0 %v2424
    %2705 = vmatpush1.msra.mxu0 %v2423
    %2706 = vmatprep.subr.mxu0 0.0
    %2707 = vmatpush1.msra.mxu0 0.0
    %2708 = vmatprep.subr.mxu0 0.0
    %2709 = vmatpush1.msra.mxu0 0.0
    %2710 = vmatprep.subr.mxu0 0.0
    %2711 = vmatpush1.msra.mxu0 0.0
    %2712 = vmatprep.subr.mxu0 0.0
    %2713 = vmatpush1.msra.mxu0 0.0
    %2714 = vmatprep.subr.mxu0 0.0
    %2715 = vmatpush1.msra.mxu0 0.0
    %2716 = vmatprep.subr.mxu0 0.0
    %2717 = vmatpush1.msra.mxu0 0.0
    %2718 = vmatprep.subr.mxu0 0.0
    %2719 = vmatpush1.msra.mxu0 0.0
    %2720 = vmatprep.subr.mxu0 0.0
    %2721 = vmatpush1.msra.mxu0 0.0
    %2722 = vmatprep.subr.mxu0 0.0
    %2723 = vmatpush1.msra.mxu0 0.0
    %2724 = vmatprep.subr.mxu0 0.0
    %2725 = vmatpush1.msra.mxu0 0.0
    %2726 = vmatprep.subr.mxu0 0.0
    %2727 = vmatpush1.msra.mxu0 0.0
    %2728 = vmatprep.subr.mxu0 0.0
    %2729 = vmatpush1.msra.mxu0 0.0
    %2730 = vmatprep.subr.mxu0 0.0
    %2731 = vmatpush1.msra.mxu0 0.0
    %2732 = vmatprep.subr.mxu0 0.0
    %2733 = vmatpush1.msra.mxu0 0.0
    %2734 = vmatprep.subr.mxu0 0.0
    %2735 = vmatpush1.msra.mxu0 0.0
    %2736 = vmatprep.subr.mxu0 0.0
    %2737 = vmatpush1.msra.mxu0 0.0
    %2738 = vmatprep.subr.mxu0 0.0
    %2739 = vmatpush1.msra.mxu0 0.0
    %2740 = vmatprep.subr.mxu0 0.0
    %2741 = vmatpush1.msra.mxu0 0.0
    %2742 = vmatprep.subr.mxu0 0.0
    %2743 = vmatpush1.msra.mxu0 0.0
    %2744 = vmatprep.subr.mxu0 0.0
    %2745 = vmatpush1.msra.mxu0 0.0
    %2746 = vmatprep.subr.mxu0 0.0
    %2747 = vmatpush1.msra.mxu0 0.0
    %2748 = vmatprep.subr.mxu0 0.0
    %2749 = vmatpush1.msra.mxu0 0.0
    %2750 = vmatprep.subr.mxu0 0.0
    %2751 = vmatpush1.msra.mxu0 0.0
    %2752 = vmatprep.mubr.f32.mxu0 0.0
    %2753 = vmatmul.mubr.f32.gmra.mrb[0].mxu0 %v2473
    %v2754 = vpop.f32.mrb[0].mxu0
    %v2755 = vadd.f32 %v2437, %v2754
    %v2756 = vpop.f32.mrb[0].mxu0
    %v2757 = vadd.f32 %v2437, %v2756
    %2758 = vdwg.mxu0
    %2759 = vmatprep.subr.mxu0 %v2298
    %2760 = vmatpush1.msra.mxu0 %v2297
    %2761 = vmatprep.subr.mxu0 %v2314
    %2762 = vmatpush1.msra.mxu0 %v2313
    %2763 = vmatprep.subr.mxu0 %v2330
    %2764 = vmatpush1.msra.mxu0 %v2329
    %2765 = vmatprep.subr.mxu0 %v2346
    %2766 = vmatpush1.msra.mxu0 %v2345
    %2767 = vmatprep.subr.mxu0 %v2362
    %2768 = vmatpush1.msra.mxu0 %v2361
    %2769 = vmatprep.subr.mxu0 %v2378
    %2770 = vmatpush1.msra.mxu0 %v2377
    %2771 = vmatprep.subr.mxu0 %v2394
    %2772 = vmatpush1.msra.mxu0 %v2393
    %2773 = vmatprep.subr.mxu0 %v2410
    %2774 = vmatpush1.msra.mxu0 %v2409
    %2775 = vmatprep.subr.mxu0 %v2426
    %2776 = vmatpush1.msra.mxu0 %v2425
    %2777 = vmatprep.subr.mxu0 0.0
    %2778 = vmatpush1.msra.mxu0 0.0
    %2779 = vmatprep.subr.mxu0 0.0
    %2780 = vmatpush1.msra.mxu0 0.0
    %2781 = vmatprep.subr.mxu0 0.0
    %2782 = vmatpush1.msra.mxu0 0.0
    %2783 = vmatprep.subr.mxu0 0.0
    %2784 = vmatpush1.msra.mxu0 0.0
    %2785 = vmatprep.subr.mxu0 0.0
    %2786 = vmatpush1.msra.mxu0 0.0
    %2787 = vmatprep.subr.mxu0 0.0
    %2788 = vmatpush1.msra.mxu0 0.0
    %2789 = vmatprep.subr.mxu0 0.0
    %2790 = vmatpush1.msra.mxu0 0.0
    %2791 = vmatprep.subr.mxu0 0.0
    %2792 = vmatpush1.msra.mxu0 0.0
    %2793 = vmatprep.subr.mxu0 0.0
    %2794 = vmatpush1.msra.mxu0 0.0
    %2795 = vmatprep.subr.mxu0 0.0
    %2796 = vmatpush1.msra.mxu0 0.0
    %2797 = vmatprep.subr.mxu0 0.0
    %2798 = vmatpush1.msra.mxu0 0.0
    %2799 = vmatprep.subr.mxu0 0.0
    %2800 = vmatpush1.msra.mxu0 0.0
    %2801 = vmatprep.subr.mxu0 0.0
    %2802 = vmatpush1.msra.mxu0 0.0
    %2803 = vmatprep.subr.mxu0 0.0
    %2804 = vmatpush1.msra.mxu0 0.0
    %2805 = vmatprep.subr.mxu0 0.0
    %2806 = vmatpush1.msra.mxu0 0.0
    %2807 = vmatprep.subr.mxu0 0.0
    %2808 = vmatpush1.msra.mxu0 0.0
    %2809 = vmatprep.subr.mxu0 0.0
    %2810 = vmatpush1.msra.mxu0 0.0
    %2811 = vmatprep.subr.mxu0 0.0
    %2812 = vmatpush1.msra.mxu0 0.0
    %2813 = vmatprep.subr.mxu0 0.0
    %2814 = vmatpush1.msra.mxu0 0.0
    %2815 = vmatprep.subr.mxu0 0.0
    %2816 = vmatpush1.msra.mxu0 0.0
    %2817 = vmatprep.subr.mxu0 0.0
    %2818 = vmatpush1.msra.mxu0 0.0
    %2819 = vmatprep.subr.mxu0 0.0
    %2820 = vmatpush1.msra.mxu0 0.0
    %2821 = vmatprep.subr.mxu0 0.0
    %2822 = vmatpush1.msra.mxu0 0.0
    %2823 = vmatprep.mubr.f32.mxu0 0.0
    %2824 = vmatmul.mubr.f32.gmra.mrb[0].mxu0 %v2473
    %v2825 = vpop.f32.mrb[0].mxu0
    %v2826 = vadd.f32 %v2437, %v2825
    %v2827 = vpop.f32.mrb[0].mxu0
    %v2828 = vadd.f32 %v2437, %v2827
    %2829 = vdwg.mxu0
    %2830 = vmatprep.subr.mxu0 %v2300
    %2831 = vmatpush1.msra.mxu0 %v2299
    %2832 = vmatprep.subr.mxu0 %v2316
    %2833 = vmatpush1.msra.mxu0 %v2315
    %2834 = vmatprep.subr.mxu0 %v2332
    %2835 = vmatpush1.msra.mxu0 %v2331
    %2836 = vmatprep.subr.mxu0 %v2348
    %2837 = vmatpush1.msra.mxu0 %v2347
    %2838 = vmatprep.subr.mxu0 %v2364
    %2839 = vmatpush1.msra.mxu0 %v2363
    %2840 = vmatprep.subr.mxu0 %v2380
    %2841 = vmatpush1.msra.mxu0 %v2379
    %2842 = vmatprep.subr.mxu0 %v2396
    %2843 = vmatpush1.msra.mxu0 %v2395
    %2844 = vmatprep.subr.mxu0 %v2412
    %2845 = vmatpush1.msra.mxu0 %v2411
    %2846 = vmatprep.subr.mxu0 %v2428
    %2847 = vmatpush1.msra.mxu0 %v2427
    %2848 = vmatprep.subr.mxu0 0.0
    %2849 = vmatpush1.msra.mxu0 0.0
    %2850 = vmatprep.subr.mxu0 0.0
    %2851 = vmatpush1.msra.mxu0 0.0
    %2852 = vmatprep.subr.mxu0 0.0
    %2853 = vmatpush1.msra.mxu0 0.0
    %2854 = vmatprep.subr.mxu0 0.0
    %2855 = vmatpush1.msra.mxu0 0.0
    %2856 = vmatprep.subr.mxu0 0.0
    %2857 = vmatpush1.msra.mxu0 0.0
    %2858 = vmatprep.subr.mxu0 0.0
    %2859 = vmatpush1.msra.mxu0 0.0
    %2860 = vmatprep.subr.mxu0 0.0
    %2861 = vmatpush1.msra.mxu0 0.0
    %2862 = vmatprep.subr.mxu0 0.0
    %2863 = vmatpush1.msra.mxu0 0.0
    %2864 = vmatprep.subr.mxu0 0.0
    %2865 = vmatpush1.msra.mxu0 0.0
    %2866 = vmatprep.subr.mxu0 0.0
    %2867 = vmatpush1.msra.mxu0 0.0
    %2868 = vmatprep.subr.mxu0 0.0
    %2869 = vmatpush1.msra.mxu0 0.0
    %2870 = vmatprep.subr.mxu0 0.0
    %2871 = vmatpush1.msra.mxu0 0.0
    %2872 = vmatprep.subr.mxu0 0.0
    %2873 = vmatpush1.msra.mxu0 0.0
    %2874 = vmatprep.subr.mxu0 0.0
    %2875 = vmatpush1.msra.mxu0 0.0
    %2876 = vmatprep.subr.mxu0 0.0
    %2877 = vmatpush1.msra.mxu0 0.0
    %2878 = vmatprep.subr.mxu0 0.0
    %2879 = vmatpush1.msra.mxu0 0.0
    %2880 = vmatprep.subr.mxu0 0.0
    %2881 = vmatpush1.msra.mxu0 0.0
    %2882 = vmatprep.subr.mxu0 0.0
    %2883 = vmatpush1.msra.mxu0 0.0
    %2884 = vmatprep.subr.mxu0 0.0
    %2885 = vmatpush1.msra.mxu0 0.0
    %2886 = vmatprep.subr.mxu0 0.0
    %2887 = vmatpush1.msra.mxu0 0.0
    %2888 = vmatprep.subr.mxu0 0.0
    %2889 = vmatpush1.msra.mxu0 0.0
    %2890 = vmatprep.subr.mxu0 0.0
    %2891 = vmatpush1.msra.mxu0 0.0
    %2892 = vmatprep.subr.mxu0 0.0
    %2893 = vmatpush1.msra.mxu0 0.0
    %2894 = vmatprep.mubr.f32.mxu0 0.0
    %2895 = vmatmul.mubr.f32.gmra.mrb[0].mxu0 %v2473
    %v2896 = vpop.f32.mrb[0].mxu0
    %v2897 = vadd.f32 %v2437, %v2896
    %v2898 = vpop.f32.mrb[0].mxu0
    %v2899 = vadd.f32 %v2437, %v2898
    %2900 = vdwg.mxu0
    %2901 = vmatprep.subr.mxu0 %v2302
    %2902 = vmatpush1.msra.mxu0 %v2301
    %2903 = vmatprep.subr.mxu0 %v2318
    %2904 = vmatpush1.msra.mxu0 %v2317
    %2905 = vmatprep.subr.mxu0 %v2334
    %2906 = vmatpush1.msra.mxu0 %v2333
    %2907 = vmatprep.subr.mxu0 %v2350
    %2908 = vmatpush1.msra.mxu0 %v2349
    %2909 = vmatprep.subr.mxu0 %v2366
    %2910 = vmatpush1.msra.mxu0 %v2365
    %2911 = vmatprep.subr.mxu0 %v2382
    %2912 = vmatpush1.msra.mxu0 %v2381
    %2913 = vmatprep.subr.mxu0 %v2398
    %2914 = vmatpush1.msra.mxu0 %v2397
    %2915 = vmatprep.subr.mxu0 %v2414
    %2916 = vmatpush1.msra.mxu0 %v2413
    %2917 = vmatprep.subr.mxu0 %v2430
    %2918 = vmatpush1.msra.mxu0 %v2429
    %2919 = vmatprep.subr.mxu0 0.0
    %2920 = vmatpush1.msra.mxu0 0.0
    %2921 = vmatprep.subr.mxu0 0.0
    %2922 = vmatpush1.msra.mxu0 0.0
    %2923 = vmatprep.subr.mxu0 0.0
    %2924 = vmatpush1.msra.mxu0 0.0
    %2925 = vmatprep.subr.mxu0 0.0
    %2926 = vmatpush1.msra.mxu0 0.0
    %2927 = vmatprep.subr.mxu0 0.0
    %2928 = vmatpush1.msra.mxu0 0.0
    %2929 = vmatprep.subr.mxu0 0.0
    %2930 = vmatpush1.msra.mxu0 0.0
    %2931 = vmatprep.subr.mxu0 0.0
    %2932 = vmatpush1.msra.mxu0 0.0
    %2933 = vmatprep.subr.mxu0 0.0
    %2934 = vmatpush1.msra.mxu0 0.0
    %2935 = vmatprep.subr.mxu0 0.0
    %2936 = vmatpush1.msra.mxu0 0.0
    %2937 = vmatprep.subr.mxu0 0.0
    %2938 = vmatpush1.msra.mxu0 0.0
    %2939 = vmatprep.subr.mxu0 0.0
    %2940 = vmatpush1.msra.mxu0 0.0
    %2941 = vmatprep.subr.mxu0 0.0
    %2942 = vmatpush1.msra.mxu0 0.0
    %2943 = vmatprep.subr.mxu0 0.0
    %2944 = vmatpush1.msra.mxu0 0.0
    %2945 = vmatprep.subr.mxu0 0.0
    %2946 = vmatpush1.msra.mxu0 0.0
    %2947 = vmatprep.subr.mxu0 0.0
    %2948 = vmatpush1.msra.mxu0 0.0
    %2949 = vmatprep.subr.mxu0 0.0
    %2950 = vmatpush1.msra.mxu0 0.0
    %2951 = vmatprep.subr.mxu0 0.0
    %2952 = vmatpush1.msra.mxu0 0.0
    %2953 = vmatprep.subr.mxu0 0.0
    %2954 = vmatpush1.msra.mxu0 0.0
    %2955 = vmatprep.subr.mxu0 0.0
    %2956 = vmatpush1.msra.mxu0 0.0
    %2957 = vmatprep.subr.mxu0 0.0
    %2958 = vmatpush1.msra.mxu0 0.0
    %2959 = vmatprep.subr.mxu0 0.0
    %2960 = vmatpush1.msra.mxu0 0.0
    %2961 = vmatprep.subr.mxu0 0.0
    %2962 = vmatpush1.msra.mxu0 0.0
    %2963 = vmatprep.subr.mxu0 0.0
    %2964 = vmatpush1.msra.mxu0 0.0
    %2965 = vmatprep.mubr.f32.mxu0 0.0
    %2966 = vmatmul.mubr.f32.gmra.mrb[0].mxu0 %v2473
    %v2967 = vpop.f32.mrb[0].mxu0
    %v2968 = vadd.f32 %v2437, %v2967
    %v2969 = vpop.f32.mrb[0].mxu0
    %v2970 = vadd.f32 %v2437, %v2969
    %2971 = vdwg.mxu0
    %2972 = vmatprep.subr.mxu0 %v2304
    %2973 = vmatpush1.msra.mxu0 %v2303
    %2974 = vmatprep.subr.mxu0 %v2320
    %2975 = vmatpush1.msra.mxu0 %v2319
    %2976 = vmatprep.subr.mxu0 %v2336
    %2977 = vmatpush1.msra.mxu0 %v2335
    %2978 = vmatprep.subr.mxu0 %v2352
    %2979 = vmatpush1.msra.mxu0 %v2351
    %2980 = vmatprep.subr.mxu0 %v2368
    %2981 = vmatpush1.msra.mxu0 %v2367
    %2982 = vmatprep.subr.mxu0 %v2384
    %2983 = vmatpush1.msra.mxu0 %v2383
    %2984 = vmatprep.subr.mxu0 %v2400
    %2985 = vmatpush1.msra.mxu0 %v2399
    %2986 = vmatprep.subr.mxu0 %v2416
    %2987 = vmatpush1.msra.mxu0 %v2415
    %2988 = vmatprep.subr.mxu0 %v2432
    %2989 = vmatpush1.msra.mxu0 %v2431
    %2990 = vmatprep.subr.mxu0 0.0
    %2991 = vmatpush1.msra.mxu0 0.0
    %2992 = vmatprep.subr.mxu0 0.0
    %2993 = vmatpush1.msra.mxu0 0.0
    %2994 = vmatprep.subr.mxu0 0.0
    %2995 = vmatpush1.msra.mxu0 0.0
    %2996 = vmatprep.subr.mxu0 0.0
    %2997 = vmatpush1.msra.mxu0 0.0
    %2998 = vmatprep.subr.mxu0 0.0
    %2999 = vmatpush1.msra.mxu0 0.0
    %3000 = vmatprep.subr.mxu0 0.0
    %3001 = vmatpush1.msra.mxu0 0.0
    %3002 = vmatprep.subr.mxu0 0.0
    %3003 = vmatpush1.msra.mxu0 0.0
    %3004 = vmatprep.subr.mxu0 0.0
    %3005 = vmatpush1.msra.mxu0 0.0
    %3006 = vmatprep.subr.mxu0 0.0
    %3007 = vmatpush1.msra.mxu0 0.0
    %3008 = vmatprep.subr.mxu0 0.0
    %3009 = vmatpush1.msra.mxu0 0.0
    %3010 = vmatprep.subr.mxu0 0.0
    %3011 = vmatpush1.msra.mxu0 0.0
    %3012 = vmatprep.subr.mxu0 0.0
    %3013 = vmatpush1.msra.mxu0 0.0
    %3014 = vmatprep.subr.mxu0 0.0
    %3015 = vmatpush1.msra.mxu0 0.0
    %3016 = vmatprep.subr.mxu0 0.0
    %3017 = vmatpush1.msra.mxu0 0.0
    %3018 = vmatprep.subr.mxu0 0.0
    %3019 = vmatpush1.msra.mxu0 0.0
    %3020 = vmatprep.subr.mxu0 0.0
    %3021 = vmatpush1.msra.mxu0 0.0
    %3022 = vmatprep.subr.mxu0 0.0
    %3023 = vmatpush1.msra.mxu0 0.0
    %3024 = vmatprep.subr.mxu0 0.0
    %3025 = vmatpush1.msra.mxu0 0.0
    %3026 = vmatprep.subr.mxu0 0.0
    %3027 = vmatpush1.msra.mxu0 0.0
    %3028 = vmatprep.subr.mxu0 0.0
    %3029 = vmatpush1.msra.mxu0 0.0
    %3030 = vmatprep.subr.mxu0 0.0
    %3031 = vmatpush1.msra.mxu0 0.0
    %3032 = vmatprep.subr.mxu0 0.0
    %3033 = vmatpush1.msra.mxu0 0.0
    %3034 = vmatprep.subr.mxu0 0.0
    %3035 = vmatpush1.msra.mxu0 0.0
    %3036 = vmatprep.mubr.f32.mxu0 0.0
    %3037 = vmatmul.mubr.f32.gmra.mrb[0].mxu0 %v2473
    %v3038 = vpop.f32.mrb[0].mxu0
    %v3039 = vadd.f32 %v2437, %v3038
    %v3040 = vpop.f32.mrb[0].mxu0
    %v3041 = vadd.f32 %v2437, %v3040
    %3042 = vdwg.mxu0
    %v3043 = vadd.f32 %v2542, %v2544
    %v3044 = vadd.f32 %v3043, %v2613
    %v3045 = vadd.f32 %v3044, %v2615
    %v3046 = vadd.f32 %v3045, %v2684
    %v3047 = vadd.f32 %v3046, %v2686
    %v3048 = vadd.f32 %v3047, %v2755
    %v3049 = vadd.f32 %v3048, %v2757
    %v3050 = vadd.f32 %v3049, %v2826
    %v3051 = vadd.f32 %v3050, %v2828
    %v3052 = vadd.f32 %v3051, %v2897
    %v3053 = vadd.f32 %v3052, %v2899
    %v3054 = vadd.f32 %v3053, %v2968
    %v3055 = vadd.f32 %v3054, %v2970
    %v3056 = vadd.f32 %v3055, %v3039
    %v3057 = vadd.f32 %v3056, %v3041
    %3058 = vadd.xlane.f32.xlu0 %v3057
    %v3059 = vpop.xlane.xlu0 %3058
    %v3060 = vmul.f32 %v3059, %v646
    %v3061 = vsub.f32 %v2542, %v3060
    %v3062 = vsub.f32 %v2544, %v3060
    %v3063 = vsub.f32 %v2613, %v3060
    %v3064 = vsub.f32 %v2615, %v3060
    %v3065 = vsub.f32 %v2684, %v3060
    %v3066 = vsub.f32 %v2686, %v3060
    %v3067 = vsub.f32 %v2755, %v3060
    %v3068 = vsub.f32 %v2757, %v3060
    %v3069 = vsub.f32 %v2826, %v3060
    %v3070 = vsub.f32 %v2828, %v3060
    %v3071 = vsub.f32 %v2897, %v3060
    %v3072 = vsub.f32 %v2899, %v3060
    %v3073 = vsub.f32 %v2968, %v3060
    %v3074 = vsub.f32 %v2970, %v3060
    %v3075 = vsub.f32 %v3039, %v3060
    %v3076 = vsub.f32 %v3041, %v3060
    %v3077 = vmul.f32 %v3061, %v3061
    %v3078 = vmul.f32 %v3062, %v3062
    %v3079 = vmul.f32 %v3063, %v3063
    %v3080 = vmul.f32 %v3064, %v3064
    %v3081 = vmul.f32 %v3065, %v3065
    %v3082 = vmul.f32 %v3066, %v3066
    %v3083 = vmul.f32 %v3067, %v3067
    %v3084 = vmul.f32 %v3068, %v3068
    %v3085 = vmul.f32 %v3069, %v3069
    %v3086 = vmul.f32 %v3070, %v3070
    %v3087 = vmul.f32 %v3071, %v3071
    %v3088 = vmul.f32 %v3072, %v3072
    %v3089 = vmul.f32 %v3073, %v3073
    %v3090 = vmul.f32 %v3074, %v3074
    %v3091 = vmul.f32 %v3075, %v3075
    %v3092 = vmul.f32 %v3076, %v3076
    %v3093 = vadd.f32 %v3077, %v3078
    %v3094 = vadd.f32 %v3093, %v3079
    %v3095 = vadd.f32 %v3094, %v3080
    %v3096 = vadd.f32 %v3095, %v3081
    %v3097 = vadd.f32 %v3096, %v3082
    %v3098 = vadd.f32 %v3097, %v3083
    %v3099 = vadd.f32 %v3098, %v3084
    %v3100 = vadd.f32 %v3099, %v3085
    %v3101 = vadd.f32 %v3100, %v3086
    %v3102 = vadd.f32 %v3101, %v3087
    %v3103 = vadd.f32 %v3102, %v3088
    %v3104 = vadd.f32 %v3103, %v3089
    %v3105 = vadd.f32 %v3104, %v3090
    %v3106 = vadd.f32 %v3105, %v3091
    %v3107 = vadd.f32 %v3106, %v3092
    %3108 = vadd.xlane.f32.xlu0 %v3107
    %v3109 = vpop.xlane.xlu0 %3108
    %v3110 = vmul.f32 %v3109, %v646
    %v3111 = vld [vmem:[%s7] sm:$0xff]
    %v3112 = vadd.f32 %v3110, 1e-05
    %v3113 = vrsqrt.pop %v3112
    %v3114 = vmul.f32 %v3111, %v3113
    %3116 = vset.pattern.permute.xlu0 0
    %3117 = vperm.xlu0 %3116, %v3114
    %v3118 = vpop.permute.xlu0 %3117
    %v3120 = vmul.f32 %v3061, %v3118
    %v3121 = vmul.f32 %v3062, %v3118
    %v3122 = vmul.f32 %v3063, %v3118
    %v3123 = vmul.f32 %v3064, %v3118
    %v3124 = vmul.f32 %v3065, %v3118
    %v3125 = vmul.f32 %v3066, %v3118
    %v3126 = vmul.f32 %v3067, %v3118
    %v3127 = vmul.f32 %v3068, %v3118
    %v3128 = vmul.f32 %v3069, %v3118
    %v3129 = vmul.f32 %v3070, %v3118
    %v3130 = vmul.f32 %v3071, %v3118
    %v3131 = vmul.f32 %v3072, %v3118
    %v3132 = vmul.f32 %v3073, %v3118
    %v3133 = vmul.f32 %v3074, %v3118
    %v3134 = vmul.f32 %v3075, %v3118
    %v3135 = vmul.f32 %v3076, %v3118
    %v3136 = vld [vmem:[%s8] sm:$0xff]
    %3138 = vset.pattern.permute.xlu0 0
    %3139 = vperm.xlu0 %3138, %v3136
    %v3140 = vpop.permute.xlu0 %3139
    %v3142 = vadd.f32 %v3120, %v3140
    %v3143 = vadd.f32 %v3121, %v3140
    %v3144 = vadd.f32 %v3122, %v3140
    %v3145 = vadd.f32 %v3123, %v3140
    %v3146 = vadd.f32 %v3124, %v3140
    %v3147 = vadd.f32 %v3125, %v3140
    %v3148 = vadd.f32 %v3126, %v3140
    %v3149 = vadd.f32 %v3127, %v3140
    %v3150 = vadd.f32 %v3128, %v3140
    %v3151 = vadd.f32 %v3129, %v3140
    %v3152 = vadd.f32 %v3130, %v3140
    %v3153 = vadd.f32 %v3131, %v3140
    %v3154 = vadd.f32 %v3132, %v3140
    %v3155 = vadd.f32 %v3133, %v3140
    %v3156 = vadd.f32 %v3134, %v3140
    %v3157 = vadd.f32 %v3135, %v3140
    %v3158 = vmax.f32 %v3142, 0.0
    %v3159 = vmax.f32 %v3143, 0.0
    %v3160 = vmax.f32 %v3144, 0.0
    %v3161 = vmax.f32 %v3145, 0.0
    %v3162 = vmax.f32 %v3146, 0.0
    %v3163 = vmax.f32 %v3147, 0.0
    %v3164 = vmax.f32 %v3148, 0.0
    %v3165 = vmax.f32 %v3149, 0.0
    %v3166 = vmax.f32 %v3150, 0.0
    %v3167 = vmax.f32 %v3151, 0.0
    %v3168 = vmax.f32 %v3152, 0.0
    %v3169 = vmax.f32 %v3153, 0.0
    %v3170 = vmax.f32 %v3154, 0.0
    %v3171 = vmax.f32 %v3155, 0.0
    %v3172 = vmax.f32 %v3156, 0.0
    %v3173 = vmax.f32 %v3157, 0.0
    %3174 = vst [vmem:[#allocation8] sm:$0xff] %v3158
    %3175 = vst [vmem:[#allocation8 + $0x8] sm:$0xff] %v3159
    %3176 = vst [vmem:[#allocation8 + $0x10] sm:$0xff] %v3160
    %3177 = vst [vmem:[#allocation8 + $0x18] sm:$0xff] %v3161
    %3178 = vst [vmem:[#allocation8 + $0x20] sm:$0xff] %v3162
    %3179 = vst [vmem:[#allocation8 + $0x28] sm:$0xff] %v3163
    %3180 = vst [vmem:[#allocation8 + $0x30] sm:$0xff] %v3164
    %3181 = vst [vmem:[#allocation8 + $0x38] sm:$0xff] %v3165
    %s3182 = scalar_lea.vmem [#allocation8], 64
    %3183 = vst [vmem:[%s3182] sm:$0xff] %v3166
    %3184 = vst [vmem:[%s3182 + $0x8] sm:$0xff] %v3167
    %3185 = vst [vmem:[%s3182 + $0x10] sm:$0xff] %v3168
    %3186 = vst [vmem:[%s3182 + $0x18] sm:$0xff] %v3169
    %3187 = vst [vmem:[%s3182 + $0x20] sm:$0xff] %v3170
    %3188 = vst [vmem:[%s3182 + $0x28] sm:$0xff] %v3171
    %3189 = vst [vmem:[%s3182 + $0x30] sm:$0xff] %v3172
    %3190 = vst [vmem:[%s3182 + $0x38] sm:$0xff] %v3173
    // Predicated region
    $region46: #{tpu_custom_call.1} parent=1 // pred_check
      _
    $region47: #{tpu_custom_call.1} parent=1 // pred_check_branch
      %3192 = sbr.rel (0) target = $region49
    $region48: #{tpu_custom_call.1} parent=1 // pred_region
      %s3194 = ssub.s32 2048, 2048
      %3195 = vsyncadd [#allocation5], %s3194
      %s3196 = sshll.u32 [#allocation8], 4
      %s3197 = int_to_ptr.vmem [resolvable:$true] %s3196
      %3202 = dma.vmem_to_hbm [thread:$0]  %s3197, 2048, %s9, [#allocation5], 1024, 1024, 64
    $region49: #{tpu_custom_call.1} parent=1 // pred_fallthru
      _
    // Predicated region
    $region50: #{tpu_custom_call.1} parent=1 // pred_check
      _
    $region51: #{tpu_custom_call.1} parent=1 // pred_check_branch
      %3204 = sbr.rel (0) target = $region53
    $region52: #{tpu_custom_call.1} parent=1 // pred_region
      %3205 = dma.done [#allocation5], 2048
    $region53: #{tpu_custom_call.1} parent=1 // pred_fallthru
      _
    %3206 = vsyncpa [#allocation4], 1
    %3207 = vsyncpa [#allocation7], 1
    %3208 = vsyncpa [#allocation5], 1

</llo_original>
